<compile_context>
chip_gen: v7x
topology: tpu7x:2x2x1
jax: 0.10.0
libtpu: 0.0.40
codegen_flags: <defaults>
</compile_context>

<pallas_src>
import jax
import jax.numpy as jnp
from jax.experimental import pallas as pl
from jax.experimental.pallas import tpu as pltpu

LANE = 128          # vreg lane width (last dim)
ROW_ALIGN = 16      # bf16-friendly sublane multiple for batch tiles
MIB = 1024 * 1024


def _round_up(n, m):
    return ((n + m - 1) // m) * m


def _cdiv(a, b):
    return (a + b - 1) // b


# ----------------------------------------------------------------------------
# Kernel body: fused 3-layer MLP on one batch tile.
# ----------------------------------------------------------------------------
def _mlp_kernel(x_ref, w1_ref, b1_ref, w2_ref, b2_ref, w3_ref, b3_ref, o_ref):
    wdt = w1_ref.dtype  # bf16 MXU input dtype; accumulation is f32
    # layer 1: x already bf16 (cast fused into the wrapper), f32 accumulate.
    h = jnp.dot(x_ref[...], w1_ref[...], preferred_element_type=jnp.float32)
    h = jnp.maximum(h + b1_ref[...], 0.0)
    # layer 2
    h = jnp.dot(h.astype(wdt), w2_ref[...], preferred_element_type=jnp.float32)
    h = jnp.maximum(h + b2_ref[...], 0.0)
    # layer 3
    h = jnp.dot(h.astype(wdt), w3_ref[...], preferred_element_type=jnp.float32)
    h = jnp.maximum(h + b3_ref[...], 0.0)
    o_ref[...] = h.astype(o_ref.dtype)


# ----------------------------------------------------------------------------
# Parameter preparation: pad to lane-dense shapes, cast weights to bf16.
# ----------------------------------------------------------------------------
def prepare_params(params, weight_dtype=jnp.bfloat16):
    """w* are [in_features, out_features] (transposed vs PyTorch Linear),
    b* are [1, out_features].  Zero padding is inert through matmul+bias+ReLU."""
    w1, b1, w2, b2, w3, b3 = (params["w1"], params["b1"], params["w2"],
                              params["b2"], params["w3"], params["b3"])
    clip_dim, hidden = w1.shape
    lang_dim = w3.shape[1]
    cp = _round_up(clip_dim, LANE)
    hp = _round_up(hidden, LANE)      # 500 -> 512
    lp = _round_up(lang_dim, LANE)

    def pad2(a, rows, cols):
        return jnp.pad(a, ((0, rows - a.shape[0]), (0, cols - a.shape[1])))

    return {
        "w1": pad2(w1, cp, hp).astype(weight_dtype),
        "b1": pad2(b1, 1, hp).astype(jnp.float32),
        "w2": pad2(w2, hp, hp).astype(weight_dtype),
        "b2": pad2(b2, 1, hp).astype(jnp.float32),
        "w3": pad2(w3, hp, lp).astype(weight_dtype),
        "b3": pad2(b3, 1, lp).astype(jnp.float32),
        "clip_dim": clip_dim,
        "lang_dim": lang_dim,
    }


# ----------------------------------------------------------------------------
# Device / VMEM sizing helpers.
# ----------------------------------------------------------------------------
def _device_config():
    kind = ""
    try:
        kind = jax.devices()[0].device_kind.lower()
    except Exception:
        pass
    is_v7 = "7" in kind                      # e.g. "tpu7x"
    if is_v7:
        # 64 MiB physical VMEM, 2 TensorCores per chip.
        return {"is_v7": True, "default_tile_m": 256, "vmem_cap": 56 * MIB}
    # v5e / v6e: 128 MiB physical VMEM, single TensorCore.
    return {"is_v7": False, "default_tile_m": 512, "vmem_cap": 100 * MIB}


def _vmem_bytes(tile_m, cp, hp, lp, weight_bufs):
    """Conservative VMEM footprint estimate for one grid step."""
    weights = (cp * hp + hp * hp + hp * lp) * 2 * weight_bufs   # bf16
    biases = (hp + hp + lp) * 4 * weight_bufs                   # f32
    x_stream = 2 * tile_m * cp * 2        # bf16 x tile, double-buffered
    o_stream = 2 * tile_m * lp * 4        # f32 out tile, double-buffered
    interm = tile_m * (hp + lp) * 4       # f32 hidden temporaries
    return weights + biases + x_stream + o_stream + interm


def _make_call(tile_m, b_pad, cp, hp, lp, out_dtype, single_buffer_weights,
               vmem_limit):
    def wspec(shape):
        # Constant index_map -> block fetched once; request a single buffer.
        if single_buffer_weights:
            return pl.BlockSpec(shape, lambda i: (0, 0),
                                pipeline_mode=pl.Buffered(1))
        return pl.BlockSpec(shape, lambda i: (0, 0))

    return pl.pallas_call(
        _mlp_kernel,
        out_shape=jax.ShapeDtypeStruct((b_pad, lp), out_dtype),
        grid_spec=pltpu.PrefetchScalarGridSpec(
            num_scalar_prefetch=0,
            grid=(b_pad // tile_m,),
            in_specs=[
                pl.BlockSpec((tile_m, cp), lambda i: (i, 0)),  # x tile (streams)
                wspec((cp, hp)),                               # w1 (resident)
                wspec((1, hp)),                                # b1
                wspec((hp, hp)),                               # w2 (resident)
                wspec((1, hp)),                                # b2
                wspec((hp, lp)),                               # w3 (resident)
                wspec((1, lp)),                                # b3
            ],
            out_specs=pl.BlockSpec((tile_m, lp), lambda i: (i, 0)),
        ),
        compiler_params=pltpu.CompilerParams(
            dimension_semantics=("parallel",),   # batch tiles shard across TCs
            vmem_limit_bytes=vmem_limit,
        ),
    )


# ----------------------------------------------------------------------------
# Public wrapper.
# ----------------------------------------------------------------------------
def mark_vlm_adapter(x, prepared, *, tile_m=None, out_dtype=jnp.float32):
    """x: [B, clip_dim] float32 -> [B, lang_embed_dim] out_dtype (default f32)."""
    B, clip_dim = x.shape
    assert clip_dim == prepared["clip_dim"], "clip_dim mismatch with params"
    lang_dim = prepared["lang_dim"]
    w1, b1, w2, b2, w3, b3 = (prepared["w1"], prepared["b1"], prepared["w2"],
                              prepared["b2"], prepared["w3"], prepared["b3"])
    cp, hp = w1.shape
    lp = w3.shape[1]

    cfg = _device_config()
    if tile_m is None:
        tile_m = cfg["default_tile_m"]
    vmem_cap = cfg["vmem_cap"]

    # Batch tile: multiple of ROW_ALIGN, capped by the aligned batch.
    b_aligned = _round_up(B, ROW_ALIGN)
    tile_m = _round_up(max(int(tile_m), ROW_ALIGN), ROW_ALIGN)
    tile_m = min(tile_m, b_aligned)

    # Shrink until the (conservative, double-buffered-weights) estimate fits.
    while tile_m > ROW_ALIGN and _vmem_bytes(tile_m, cp, hp, lp, 2) > vmem_cap:
        tile_m = _round_up(tile_m // 2, ROW_ALIGN)

    # On v7x, make sure there are >=2 grid steps so both TensorCores are used.
    if cfg["is_v7"] and b_aligned >= 2 * ROW_ALIGN and _cdiv(b_aligned, tile_m) < 2:
        tile_m = _round_up(_cdiv(b_aligned, 2), ROW_ALIGN)

    # Balance grid steps (avoid one big tile + a tiny trailing tile).
    n_steps = _cdiv(b_aligned, tile_m)
    tile_m = _round_up(_cdiv(b_aligned, n_steps), ROW_ALIGN)
    b_pad = n_steps * tile_m

    est = _vmem_bytes(tile_m, cp, hp, lp, 2)
    vmem_limit = min(vmem_cap, max(32 * MIB, _round_up(int(est * 1.25), MIB)))

    # bf16 x stream; skip the pad entirely for already-aligned shapes.
    xb = x.astype(jnp.bfloat16)
    if b_pad != B or cp != clip_dim:
        xb = jnp.pad(xb, ((0, b_pad - B), (0, cp - clip_dim)))

    want_single = hasattr(pl, "Buffered")
    try:
        call = _make_call(tile_m, b_pad, cp, hp, lp, out_dtype,
                          single_buffer_weights=want_single,
                          vmem_limit=vmem_limit)
        out_padded = call(xb, w1, b1, w2, b2, w3, b3)
    except Exception:
        if not want_single:
            raise
        # Fallback: some JAX versions reject pipeline_mode / Buffered(1).
        call = _make_call(tile_m, b_pad, cp, hp, lp, out_dtype,
                          single_buffer_weights=False,
                          vmem_limit=vmem_limit)
        out_padded = call(xb, w1, b1, w2, b2, w3, b3)

    return out_padded[:B, :lang_dim]


# ----------------------------------------------------------------------------
# Synthetic params / reference / demo.
# ----------------------------------------------------------------------------
def init_params(key, clip_dim, lang_embed_dim, hidden=500):
    """Deterministic synthetic init (PyTorch-Linear-like uniform bounds)."""
    ks = jax.random.split(key, 6)

    def lin(kw, kb, fan_in, fan_out):
        bound = 1.0 / jnp.sqrt(fan_in)
        w = jax.random.uniform(kw, (fan_in, fan_out), jnp.float32, -bound, bound)
        b = jax.random.uniform(kb, (1, fan_out), jnp.float32, -bound, bound)
        return w, b

    w1, b1 = lin(ks[0], ks[1], clip_dim, hidden)
    w2, b2 = lin(ks[2], ks[3], hidden, hidden)
    w3, b3 = lin(ks[4], ks[5], hidden, lang_embed_dim)
    return {"w1": w1, "b1": b1, "w2": w2, "b2": b2, "w3": w3, "b3": b3}


def reference(x, p):
    h = jnp.maximum(x @ p["w1"] + p["b1"], 0.0)
    h = jnp.maximum(h @ p["w2"] + p["b2"], 0.0)
    return jnp.maximum(h @ p["w3"] + p["b3"], 0.0)


if __name__ == "__main__":
    key = jax.random.PRNGKey(0)
    k_x, k_p, k_x2 = jax.random.split(key, 3)

    clip_dim = 32        # CLIP feature dim (small demo size)
    lang_embed_dim = 32  # language-model embedding dim (small demo size)
    batch = 8

    params = init_params(k_p, clip_dim, lang_embed_dim, hidden=500)
    prepared = prepare_params(params)   # pad to lane-dense shapes + cast to bf16

    # Small batch (single grid step on v5e/v6e).
    x = jax.random.normal(k_x, (batch, clip_dim), jnp.float32)
    out = jax.block_until_ready(mark_vlm_adapter(x, prepared))
    ref = reference(x, params)
    assert out.shape == (batch, lang_embed_dim)
    assert out.dtype == jnp.float32
    assert jnp.allclose(out, ref, atol=5e-2, rtol=5e-2), "mismatch vs reference"

    # Non-tile-aligned batch: exercises batch padding + multiple grid steps.
    x2 = jax.random.normal(k_x2, (300, clip_dim), jnp.float32)
    out2 = jax.block_until_ready(mark_vlm_adapter(x2, prepared, tile_m=128))
    ref2 = reference(x2, params)
    assert out2.shape == (300, lang_embed_dim)
    assert jnp.allclose(out2, ref2, atol=5e-2, rtol=5e-2), "mismatch vs reference (tiled)"

    print("KERNEL_OK")
</pallas_src>

<mosaic_0001>
module attributes {stable_mosaic.version = 11 : i64} {
  func.func @_mlp_kernel(%arg0: i32, %arg1: memref<16x128xbf16, #tpu.memory_space<vmem>>, %arg2: memref<128x512xbf16, #tpu.memory_space<vmem>>, %arg3: memref<1x512xf32, #tpu.memory_space<vmem>>, %arg4: memref<512x512xbf16, #tpu.memory_space<vmem>>, %arg5: memref<1x512xf32, #tpu.memory_space<vmem>>, %arg6: memref<512x128xbf16, #tpu.memory_space<vmem>>, %arg7: memref<1x128xf32, #tpu.memory_space<vmem>>, %arg8: memref<16x128xf32, #tpu.memory_space<vmem>>) attributes {dimension_semantics = [#tpu.dimension_semantics<parallel>], iteration_bounds = array<i64: 1>, scalar_prefetch = 0 : i64, scratch_operands = 0 : i64, tpu.core_type = #tpu.core_type<tc>, window_params = [{transform_indices = @transform_0, window_bounds = array<i64: 16, 128>}, {pipeline_mode = #tpu.pipeline_mode<synchronous>, transform_indices = @transform_1, window_bounds = array<i64: 128, 512>}, {pipeline_mode = #tpu.pipeline_mode<synchronous>, transform_indices = @transform_2, window_bounds = array<i64: 1, 512>}, {pipeline_mode = #tpu.pipeline_mode<synchronous>, transform_indices = @transform_3, window_bounds = array<i64: 512, 512>}, {pipeline_mode = #tpu.pipeline_mode<synchronous>, transform_indices = @transform_4, window_bounds = array<i64: 1, 512>}, {pipeline_mode = #tpu.pipeline_mode<synchronous>, transform_indices = @transform_5, window_bounds = array<i64: 512, 128>}, {pipeline_mode = #tpu.pipeline_mode<synchronous>, transform_indices = @transform_6, window_bounds = array<i64: 1, 128>}, {transform_indices = @transform_7, window_bounds = array<i64: 16, 128>}]} {
    %c0 = arith.constant 0 : index
    %c0_0 = arith.constant 0 : index
    %0 = vector.load %arg1[%c0, %c0_0] : memref<16x128xbf16, #tpu.memory_space<vmem>>, vector<16x128xbf16>
    %c0_1 = arith.constant 0 : index
    %c0_2 = arith.constant 0 : index
    %1 = vector.load %arg2[%c0_1, %c0_2] : memref<128x512xbf16, #tpu.memory_space<vmem>>, vector<128x512xbf16>
    %cst = arith.constant dense<0.000000e+00> : vector<16x512xf32>
    %2 = tpu.matmul %0, %1, %cst {dimension_numbers = #tpu.dot_dimension_numbers<[1], [0], [0], [1], [0, 0, 1, 1], [], []>} : vector<16x128xbf16>, vector<128x512xbf16>, vector<16x512xf32> -> vector<16x512xf32>
    %c0_3 = arith.constant 0 : index
    %c0_4 = arith.constant 0 : index
    %3 = vector.load %arg3[%c0_3, %c0_4] : memref<1x512xf32, #tpu.memory_space<vmem>>, vector<1x512xf32>
    %4 = vector.broadcast %3 : vector<1x512xf32> to vector<16x512xf32>
    %5 = arith.addf %2, %4 : vector<16x512xf32>
    %cst_5 = arith.constant 0.000000e+00 : f32
    %6 = vector.broadcast %cst_5 : f32 to vector<16x512xf32>
    %7 = arith.maximumf %5, %6 : vector<16x512xf32>
    %8 = arith.truncf %7 : vector<16x512xf32> to vector<16x512xbf16>
    %c0_6 = arith.constant 0 : index
    %c0_7 = arith.constant 0 : index
    %9 = vector.load %arg4[%c0_6, %c0_7] : memref<512x512xbf16, #tpu.memory_space<vmem>>, vector<512x512xbf16>
    %cst_8 = arith.constant dense<0.000000e+00> : vector<16x512xf32>
    %10 = tpu.matmul %8, %9, %cst_8 {dimension_numbers = #tpu.dot_dimension_numbers<[1], [0], [0], [1], [0, 0, 1, 1], [], []>} : vector<16x512xbf16>, vector<512x512xbf16>, vector<16x512xf32> -> vector<16x512xf32>
    %c0_9 = arith.constant 0 : index
    %c0_10 = arith.constant 0 : index
    %11 = vector.load %arg5[%c0_9, %c0_10] : memref<1x512xf32, #tpu.memory_space<vmem>>, vector<1x512xf32>
    %12 = vector.broadcast %11 : vector<1x512xf32> to vector<16x512xf32>
    %13 = arith.addf %10, %12 : vector<16x512xf32>
    %cst_11 = arith.constant 0.000000e+00 : f32
    %14 = vector.broadcast %cst_11 : f32 to vector<16x512xf32>
    %15 = arith.maximumf %13, %14 : vector<16x512xf32>
    %16 = arith.truncf %15 : vector<16x512xf32> to vector<16x512xbf16>
    %c0_12 = arith.constant 0 : index
    %c0_13 = arith.constant 0 : index
    %17 = vector.load %arg6[%c0_12, %c0_13] : memref<512x128xbf16, #tpu.memory_space<vmem>>, vector<512x128xbf16>
    %cst_14 = arith.constant dense<0.000000e+00> : vector<16x128xf32>
    %18 = tpu.matmul %16, %17, %cst_14 {dimension_numbers = #tpu.dot_dimension_numbers<[1], [0], [0], [1], [0, 0, 1, 1], [], []>} : vector<16x512xbf16>, vector<512x128xbf16>, vector<16x128xf32> -> vector<16x128xf32>
    %c0_15 = arith.constant 0 : index
    %c0_16 = arith.constant 0 : index
    %19 = vector.load %arg7[%c0_15, %c0_16] : memref<1x128xf32, #tpu.memory_space<vmem>>, vector<1x128xf32>
    %20 = vector.broadcast %19 : vector<1x128xf32> to vector<16x128xf32>
    %21 = arith.addf %18, %20 : vector<16x128xf32>
    %cst_17 = arith.constant 0.000000e+00 : f32
    %22 = vector.broadcast %cst_17 : f32 to vector<16x128xf32>
    %23 = arith.maximumf %21, %22 : vector<16x128xf32>
    %c0_18 = arith.constant 0 : index
    %c0_19 = arith.constant 0 : index
    %24 = vector.load %arg8[%c0_18, %c0_19] : memref<16x128xf32, #tpu.memory_space<vmem>>, vector<16x128xf32>
    tpu.vector_store %arg8[%c0_18, %c0_19], %23 {strides = array<i32>} : memref<16x128xf32, #tpu.memory_space<vmem>>, vector<16x128xf32>,
    return
  }
  func.func @transform_0(%arg0: i32) -> (i32, i32) {
    %c0_i32 = arith.constant 0 : i32
    %c0_i32_0 = arith.constant 0 : i32
    return %arg0, %c0_i32 : i32, i32
  }
  func.func @transform_1(%arg0: i32) -> (i32, i32) {
    %c0_i32 = arith.constant 0 : i32
    %c0_i32_0 = arith.constant 0 : i32
    %c0_i32_1 = arith.constant 0 : i32
    return %c0_i32, %c0_i32_0 : i32, i32
  }
  func.func @transform_2(%arg0: i32) -> (i32, i32) {
    %c0_i32 = arith.constant 0 : i32
    %c0_i32_0 = arith.constant 0 : i32
    %c0_i32_1 = arith.constant 0 : i32
    return %c0_i32, %c0_i32_0 : i32, i32
  }
  func.func @transform_3(%arg0: i32) -> (i32, i32) {
    %c0_i32 = arith.constant 0 : i32
    %c0_i32_0 = arith.constant 0 : i32
    %c0_i32_1 = arith.constant 0 : i32
    return %c0_i32, %c0_i32_0 : i32, i32
  }
  func.func @transform_4(%arg0: i32) -> (i32, i32) {
    %c0_i32 = arith.constant 0 : i32
    %c0_i32_0 = arith.constant 0 : i32
    %c0_i32_1 = arith.constant 0 : i32
    return %c0_i32, %c0_i32_0 : i32, i32
  }
  func.func @transform_5(%arg0: i32) -> (i32, i32) {
    %c0_i32 = arith.constant 0 : i32
    %c0_i32_0 = arith.constant 0 : i32
    %c0_i32_1 = arith.constant 0 : i32
    return %c0_i32, %c0_i32_0 : i32, i32
  }
  func.func @transform_6(%arg0: i32) -> (i32, i32) {
    %c0_i32 = arith.constant 0 : i32
    %c0_i32_0 = arith.constant 0 : i32
    %c0_i32_1 = arith.constant 0 : i32
    return %c0_i32, %c0_i32_0 : i32, i32
  }
  func.func @transform_7(%arg0: i32) -> (i32, i32) {
    %c0_i32 = arith.constant 0 : i32
    %c0_i32_0 = arith.constant 0 : i32
    return %arg0, %c0_i32 : i32, i32
  }
}

module attributes {stable_mosaic.version = 11 : i64} {
  func.func @_mlp_kernel(%arg0: i32, %arg1: memref<16x128xbf16, #tpu.memory_space<vmem>>, %arg2: memref<128x512xbf16, #tpu.memory_space<vmem>>, %arg3: memref<1x512xf32, #tpu.memory_space<vmem>>, %arg4: memref<512x512xbf16, #tpu.memory_space<vmem>>, %arg5: memref<1x512xf32, #tpu.memory_space<vmem>>, %arg6: memref<512x128xbf16, #tpu.memory_space<vmem>>, %arg7: memref<1x128xf32, #tpu.memory_space<vmem>>, %arg8: memref<16x128xf32, #tpu.memory_space<vmem>>) attributes {dimension_semantics = [#tpu.dimension_semantics<parallel>], iteration_bounds = array<i64: 1>, scalar_prefetch = 0 : i64, scratch_operands = 0 : i64, tpu.core_type = #tpu.core_type<tc>, window_params = [{transform_indices = @transform_0, window_bounds = array<i64: 16, 128>}, {pipeline_mode = #tpu.pipeline_mode<synchronous>, transform_indices = @transform_1, window_bounds = array<i64: 128, 512>}, {pipeline_mode = #tpu.pipeline_mode<synchronous>, transform_indices = @transform_2, window_bounds = array<i64: 1, 512>}, {pipeline_mode = #tpu.pipeline_mode<synchronous>, transform_indices = @transform_3, window_bounds = array<i64: 512, 512>}, {pipeline_mode = #tpu.pipeline_mode<synchronous>, transform_indices = @transform_4, window_bounds = array<i64: 1, 512>}, {pipeline_mode = #tpu.pipeline_mode<synchronous>, transform_indices = @transform_5, window_bounds = array<i64: 512, 128>}, {pipeline_mode = #tpu.pipeline_mode<synchronous>, transform_indices = @transform_6, window_bounds = array<i64: 1, 128>}, {transform_indices = @transform_7, window_bounds = array<i64: 16, 128>}]} {
    %c0 = arith.constant 0 : index
    %c0_0 = arith.constant 0 : index
    %0 = vector.load %arg1[%c0, %c0_0] : memref<16x128xbf16, #tpu.memory_space<vmem>>, vector<16x128xbf16>
    %c0_1 = arith.constant 0 : index
    %c0_2 = arith.constant 0 : index
    %1 = vector.load %arg2[%c0_1, %c0_2] : memref<128x512xbf16, #tpu.memory_space<vmem>>, vector<128x512xbf16>
    %cst = arith.constant dense<0.000000e+00> : vector<16x512xf32>
    %2 = tpu.matmul %0, %1, %cst {dimension_numbers = #tpu.dot_dimension_numbers<[1], [0], [0], [1], [0, 0, 1, 1], [], []>} : vector<16x128xbf16>, vector<128x512xbf16>, vector<16x512xf32> -> vector<16x512xf32>
    %c0_3 = arith.constant 0 : index
    %c0_4 = arith.constant 0 : index
    %3 = vector.load %arg3[%c0_3, %c0_4] : memref<1x512xf32, #tpu.memory_space<vmem>>, vector<1x512xf32>
    %4 = vector.broadcast %3 : vector<1x512xf32> to vector<16x512xf32>
    %5 = arith.addf %2, %4 : vector<16x512xf32>
    %cst_5 = arith.constant 0.000000e+00 : f32
    %6 = vector.broadcast %cst_5 : f32 to vector<16x512xf32>
    %7 = arith.maximumf %5, %6 : vector<16x512xf32>
    %8 = arith.truncf %7 : vector<16x512xf32> to vector<16x512xbf16>
    %c0_6 = arith.constant 0 : index
    %c0_7 = arith.constant 0 : index
    %9 = vector.load %arg4[%c0_6, %c0_7] : memref<512x512xbf16, #tpu.memory_space<vmem>>, vector<512x512xbf16>
    %cst_8 = arith.constant dense<0.000000e+00> : vector<16x512xf32>
    %10 = tpu.matmul %8, %9, %cst_8 {dimension_numbers = #tpu.dot_dimension_numbers<[1], [0], [0], [1], [0, 0, 1, 1], [], []>} : vector<16x512xbf16>, vector<512x512xbf16>, vector<16x512xf32> -> vector<16x512xf32>
    %c0_9 = arith.constant 0 : index
    %c0_10 = arith.constant 0 : index
    %11 = vector.load %arg5[%c0_9, %c0_10] : memref<1x512xf32, #tpu.memory_space<vmem>>, vector<1x512xf32>
    %12 = vector.broadcast %11 : vector<1x512xf32> to vector<16x512xf32>
    %13 = arith.addf %10, %12 : vector<16x512xf32>
    %cst_11 = arith.constant 0.000000e+00 : f32
    %14 = vector.broadcast %cst_11 : f32 to vector<16x512xf32>
    %15 = arith.maximumf %13, %14 : vector<16x512xf32>
    %16 = arith.truncf %15 : vector<16x512xf32> to vector<16x512xbf16>
    %c0_12 = arith.constant 0 : index
    %c0_13 = arith.constant 0 : index
    %17 = vector.load %arg6[%c0_12, %c0_13] : memref<512x128xbf16, #tpu.memory_space<vmem>>, vector<512x128xbf16>
    %cst_14 = arith.constant dense<0.000000e+00> : vector<16x128xf32>
    %18 = tpu.matmul %16, %17, %cst_14 {dimension_numbers = #tpu.dot_dimension_numbers<[1], [0], [0], [1], [0, 0, 1, 1], [], []>} : vector<16x512xbf16>, vector<512x128xbf16>, vector<16x128xf32> -> vector<16x128xf32>
    %c0_15 = arith.constant 0 : index
    %c0_16 = arith.constant 0 : index
    %19 = vector.load %arg7[%c0_15, %c0_16] : memref<1x128xf32, #tpu.memory_space<vmem>>, vector<1x128xf32>
    %20 = vector.broadcast %19 : vector<1x128xf32> to vector<16x128xf32>
    %21 = arith.addf %18, %20 : vector<16x128xf32>
    %cst_17 = arith.constant 0.000000e+00 : f32
    %22 = vector.broadcast %cst_17 : f32 to vector<16x128xf32>
    %23 = arith.maximumf %21, %22 : vector<16x128xf32>
    %c0_18 = arith.constant 0 : index
    %c0_19 = arith.constant 0 : index
    %24 = vector.load %arg8[%c0_18, %c0_19] : memref<16x128xf32, #tpu.memory_space<vmem>>, vector<16x128xf32>
    tpu.vector_store %arg8[%c0_18, %c0_19], %23 {strides = array<i32>} : memref<16x128xf32, #tpu.memory_space<vmem>>, vector<16x128xf32>,
    return
  }
  func.func @transform_0(%arg0: i32) -> (i32, i32) {
    %c0_i32 = arith.constant 0 : i32
    %c0_i32_0 = arith.constant 0 : i32
    return %arg0, %c0_i32 : i32, i32
  }
  func.func @transform_1(%arg0: i32) -> (i32, i32) {
    %c0_i32 = arith.constant 0 : i32
    %c0_i32_0 = arith.constant 0 : i32
    %c0_i32_1 = arith.constant 0 : i32
    return %c0_i32, %c0_i32_0 : i32, i32
  }
  func.func @transform_2(%arg0: i32) -> (i32, i32) {
    %c0_i32 = arith.constant 0 : i32
    %c0_i32_0 = arith.constant 0 : i32
    %c0_i32_1 = arith.constant 0 : i32
    return %c0_i32, %c0_i32_0 : i32, i32
  }
  func.func @transform_3(%arg0: i32) -> (i32, i32) {
    %c0_i32 = arith.constant 0 : i32
    %c0_i32_0 = arith.constant 0 : i32
    %c0_i32_1 = arith.constant 0 : i32
    return %c0_i32, %c0_i32_0 : i32, i32
  }
  func.func @transform_4(%arg0: i32) -> (i32, i32) {
    %c0_i32 = arith.constant 0 : i32
    %c0_i32_0 = arith.constant 0 : i32
    %c0_i32_1 = arith.constant 0 : i32
    return %c0_i32, %c0_i32_0 : i32, i32
  }
  func.func @transform_5(%arg0: i32) -> (i32, i32) {
    %c0_i32 = arith.constant 0 : i32
    %c0_i32_0 = arith.constant 0 : i32
    %c0_i32_1 = arith.constant 0 : i32
    return %c0_i32, %c0_i32_0 : i32, i32
  }
  func.func @transform_6(%arg0: i32) -> (i32, i32) {
    %c0_i32 = arith.constant 0 : i32
    %c0_i32_0 = arith.constant 0 : i32
    %c0_i32_1 = arith.constant 0 : i32
    return %c0_i32, %c0_i32_0 : i32, i32
  }
  func.func @transform_7(%arg0: i32) -> (i32, i32) {
    %c0_i32 = arith.constant 0 : i32
    %c0_i32_0 = arith.constant 0 : i32
    return %arg0, %c0_i32 : i32, i32
  }
}

</mosaic_0001>

<llo_original>
// kernel: tpu_custom_call.1
$region0: #{tpu_custom_call.1}
  #allocation0 [shape = 'u32[]', space=smem, size = 0x4, offset = 0x4, fixed_abs, tag = 'smem constant byte address 0x4 - core index']
  #allocation1 [shape = 'u32[144,128]{1,0:T(1,128)}', space=vmem, size = 0x12000, scoped, tag = 'internal scratch']
  %s0 = inlined_call_operand.hbm [shape: bf16[16,128], index: 0, kind: input, shape index: {}]
  %s1 = inlined_call_operand.hbm [shape: bf16[128,512], index: 1, kind: input, shape index: {}]
  %s2 = inlined_call_operand.vmem [shape: f32[1,512], index: 2, kind: input, shape index: {}]
  %s3 = inlined_call_operand.hbm [shape: bf16[512,512], index: 3, kind: input, shape index: {}]
  %s4 = inlined_call_operand.vmem [shape: f32[1,512], index: 4, kind: input, shape index: {}]
  %s5 = inlined_call_operand.hbm [shape: bf16[512,128], index: 5, kind: input, shape index: {}]
  %s6 = inlined_call_operand.vmem [shape: f32[1,128], index: 6, kind: input, shape index: {}]
  %s7 = inlined_call_operand.hbm [shape: f32[16,128], index: 7, kind: output, shape index: {}]
  %s8 = sld [smem:[#allocation0]]
  $region54: #{tpu_custom_call.1} parent=0
    _
  %s10 = ssub.s32 1, %s8
  %s11 = scalar_select 0, %s10, %s8
  $region1: #{tpu_custom_call.1} parent=0
    #allocation2 [shape = 'u8[4096]{0}', space=vmem, size = 0x1000, scoped, tag = 'input window, operand 0, single buffered']
    #allocation3 [shape = 's32[1]{0}', space=sflag, size = 0x4, scoped, tag = 'scoped memory for tpu_custom_call.1']
    #allocation4 [shape = 's32[1]{0}', space=sflag, size = 0x4, scoped, tag = 'scoped memory for tpu_custom_call.1']
    #allocation5 [shape = 'u8[131072]{0}', space=vmem, size = 0x20000, scoped, tag = 'input window, operand 1, single buffered']
    #allocation6 [shape = 's32[1]{0}', space=sflag, size = 0x4, scoped, tag = 'scoped memory for tpu_custom_call.1']
    #allocation7 [shape = 'u8[524288]{0}', space=vmem, size = 0x80000, scoped, tag = 'input window, operand 3, single buffered']
    #allocation8 [shape = 'u8[131072]{0}', space=vmem, size = 0x20000, scoped, tag = 'input window, operand 5, single buffered']
    #allocation9 [shape = 's32[1]{0}', space=sflag, size = 0x4, scoped, tag = 'scoped memory for tpu_custom_call.1']
    #allocation10 [shape = 'u8[8192]{0}', space=vmem, size = 0x2000, scoped, tag = 'output window, operand 0, single buffered']
    %12 = vsyncpa [#allocation3], 0
    %13 = vsyncpa [#allocation6], 0
    %14 = vsyncpa [#allocation9], 0
    %15 = vsyncpa [#allocation4], 0
    // Predicated region
    $region2: #{tpu_custom_call.1} parent=1 // pred_check
      _
    $region3: #{tpu_custom_call.1} parent=1 // pred_check_branch
      %17 = sbr.rel (0) target = $region5
    $region4: #{tpu_custom_call.1} parent=1 // pred_region
      %s19 = ssub.s32 128, 128
      %20 = vsyncadd [#allocation3], %s19
      %s21 = sshll.u32 [#allocation2], 4
      %s22 = int_to_ptr.vmem [resolvable:$true] %s21
      %27 = dma.hbm_to_vmem [thread:$0]  %s0, 128, %s22, [#allocation3], 64, 64, 4
    $region5: #{tpu_custom_call.1} parent=1 // pred_fallthru
      _
    // Predicated region
    $region6: #{tpu_custom_call.1} parent=1 // pred_check
      _
    $region7: #{tpu_custom_call.1} parent=1 // pred_check_branch
      %29 = sbr.rel (0) target = $region9
    $region8: #{tpu_custom_call.1} parent=1 // pred_region
      %s31 = ssub.s32 4096, 4096
      %32 = vsyncadd [#allocation6], %s31
      %s33 = sshll.u32 [#allocation5], 4
      %s34 = int_to_ptr.vmem [resolvable:$true] %s33
      %39 = dma.hbm_to_vmem [thread:$0]  %s1, 4096, %s34, [#allocation6], 256, 256, 16
    $region9: #{tpu_custom_call.1} parent=1 // pred_fallthru
      _
    // Predicated region
    $region10: #{tpu_custom_call.1} parent=1 // pred_check
      _
    $region11: #{tpu_custom_call.1} parent=1 // pred_check_branch
      %41 = sbr.rel (0) target = $region13
    $region12: #{tpu_custom_call.1} parent=1 // pred_region
      _
    $region13: #{tpu_custom_call.1} parent=1 // pred_fallthru
      _
    // Predicated region
    $region14: #{tpu_custom_call.1} parent=1 // pred_check
      _
    $region15: #{tpu_custom_call.1} parent=1 // pred_check_branch
      %43 = sbr.rel (0) target = $region17
    $region16: #{tpu_custom_call.1} parent=1 // pred_region
      %s45 = ssub.s32 16384, 16384
      %46 = vsyncadd [#allocation6], %s45
      %s47 = sshll.u32 [#allocation7], 4
      %s48 = int_to_ptr.vmem [resolvable:$true] %s47
      %53 = dma.hbm_to_vmem [thread:$0]  %s3, 16384, %s48, [#allocation6], 256, 256, 16
    $region17: #{tpu_custom_call.1} parent=1 // pred_fallthru
      _
    // Predicated region
    $region18: #{tpu_custom_call.1} parent=1 // pred_check
      _
    $region19: #{tpu_custom_call.1} parent=1 // pred_check_branch
      %55 = sbr.rel (0) target = $region21
    $region20: #{tpu_custom_call.1} parent=1 // pred_region
      _
    $region21: #{tpu_custom_call.1} parent=1 // pred_fallthru
      _
    // Predicated region
    $region22: #{tpu_custom_call.1} parent=1 // pred_check
      _
    $region23: #{tpu_custom_call.1} parent=1 // pred_check_branch
      %57 = sbr.rel (0) target = $region25
    $region24: #{tpu_custom_call.1} parent=1 // pred_region
      %s59 = ssub.s32 4096, 4096
      %60 = vsyncadd [#allocation9], %s59
      %s61 = sshll.u32 [#allocation8], 4
      %s62 = int_to_ptr.vmem [resolvable:$true] %s61
      %67 = dma.hbm_to_vmem [thread:$0]  %s5, 4096, %s62, [#allocation9], 64, 64, 4
    $region25: #{tpu_custom_call.1} parent=1 // pred_fallthru
      _
    // Predicated region
    $region26: #{tpu_custom_call.1} parent=1 // pred_check
      _
    $region27: #{tpu_custom_call.1} parent=1 // pred_check_branch
      %69 = sbr.rel (0) target = $region29
    $region28: #{tpu_custom_call.1} parent=1 // pred_region
      _
    $region29: #{tpu_custom_call.1} parent=1 // pred_fallthru
      _
    // Predicated region
    $region30: #{tpu_custom_call.1} parent=1 // pred_check
      _
    $region31: #{tpu_custom_call.1} parent=1 // pred_check_branch
      %71 = sbr.rel (0) target = $region33
    $region32: #{tpu_custom_call.1} parent=1 // pred_region
      %72 = dma.done [#allocation3], 128
    $region33: #{tpu_custom_call.1} parent=1 // pred_fallthru
      _
    // Predicated region
    $region34: #{tpu_custom_call.1} parent=1 // pred_check
      _
    $region35: #{tpu_custom_call.1} parent=1 // pred_check_branch
      %74 = sbr.rel (0) target = $region37
    $region36: #{tpu_custom_call.1} parent=1 // pred_region
      %75 = dma.done [#allocation6], 4096
    $region37: #{tpu_custom_call.1} parent=1 // pred_fallthru
      _
    // Predicated region
    $region38: #{tpu_custom_call.1} parent=1 // pred_check
      _
    $region39: #{tpu_custom_call.1} parent=1 // pred_check_branch
      %77 = sbr.rel (0) target = $region41
    $region40: #{tpu_custom_call.1} parent=1 // pred_region
      %78 = dma.done [#allocation6], 16384
    $region41: #{tpu_custom_call.1} parent=1 // pred_fallthru
      _
    // Predicated region
    $region42: #{tpu_custom_call.1} parent=1 // pred_check
      _
    $region43: #{tpu_custom_call.1} parent=1 // pred_check_branch
      %80 = sbr.rel (0) target = $region45
    $region44: #{tpu_custom_call.1} parent=1 // pred_region
      %81 = dma.done [#allocation9], 4096
    $region45: #{tpu_custom_call.1} parent=1 // pred_fallthru
      _
    %v83 = vld [vmem:[#allocation2] sm:$0xf]
    %v84 = vld [vmem:[#allocation2 + $0x4] sm:$0xf]
    %v85 = vld [vmem:[#allocation5] sm:$0xff]
    %v86 = vld [vmem:[#allocation5 + $0x8] sm:$0xff]
    %v87 = vld [vmem:[#allocation5 + $0x10] sm:$0xff]
    %v88 = vld [vmem:[#allocation5 + $0x18] sm:$0xff]
    %v89 = vld [vmem:[#allocation5 + $0x20] sm:$0xff]
    %v90 = vld [vmem:[#allocation5 + $0x28] sm:$0xff]
    %v91 = vld [vmem:[#allocation5 + $0x30] sm:$0xff]
    %v92 = vld [vmem:[#allocation5 + $0x38] sm:$0xff]
    %v93 = vld [vmem:[#allocation5 + $0x40] sm:$0xff]
    %v94 = vld [vmem:[#allocation5 + $0x48] sm:$0xff]
    %v95 = vld [vmem:[#allocation5 + $0x50] sm:$0xff]
    %v96 = vld [vmem:[#allocation5 + $0x58] sm:$0xff]
    %v97 = vld [vmem:[#allocation5 + $0x60] sm:$0xff]
    %v98 = vld [vmem:[#allocation5 + $0x68] sm:$0xff]
    %v99 = vld [vmem:[#allocation5 + $0x70] sm:$0xff]
    %v100 = vld [vmem:[#allocation5 + $0x78] sm:$0xff]
    %v101 = vld [vmem:[#allocation5 + $0x80] sm:$0xff]
    %v102 = vld [vmem:[#allocation5 + $0x88] sm:$0xff]
    %v103 = vld [vmem:[#allocation5 + $0x90] sm:$0xff]
    %v104 = vld [vmem:[#allocation5 + $0x98] sm:$0xff]
    %v105 = vld [vmem:[#allocation5 + $0xa0] sm:$0xff]
    %v106 = vld [vmem:[#allocation5 + $0xa8] sm:$0xff]
    %v107 = vld [vmem:[#allocation5 + $0xb0] sm:$0xff]
    %v108 = vld [vmem:[#allocation5 + $0xb8] sm:$0xff]
    %v109 = vld [vmem:[#allocation5 + $0xc0] sm:$0xff]
    %v110 = vld [vmem:[#allocation5 + $0xc8] sm:$0xff]
    %v111 = vld [vmem:[#allocation5 + $0xd0] sm:$0xff]
    %v112 = vld [vmem:[#allocation5 + $0xd8] sm:$0xff]
    %v113 = vld [vmem:[#allocation5 + $0xe0] sm:$0xff]
    %v114 = vld [vmem:[#allocation5 + $0xe8] sm:$0xff]
    %v115 = vld [vmem:[#allocation5 + $0xf0] sm:$0xff]
    %v116 = vld [vmem:[#allocation5 + $0xf8] sm:$0xff]
    %v117 = vld [vmem:[%s2] sm:$0xf]
    %v119 = vlaneseq
    %v120 = vshrl.u32 %v119, 7
    %v121 = vsub.s32 0, %v120
    %v122 = vrot.slane %v117, %v121
    %v123 = vlaneseq
    %v124 = vshrl.u32 %v123, 7
    %v125 = vsub.s32 1, %v124
    %v126 = vrot.slane %v117, %v125
    %v127 = vlaneseq
    %v128 = vshrl.u32 %v127, 7
    %v129 = vsub.s32 2, %v128
    %v130 = vrot.slane %v117, %v129
    %v131 = vlaneseq
    %v132 = vshrl.u32 %v131, 7
    %v133 = vsub.s32 3, %v132
    %v134 = vrot.slane %v117, %v133
    %v141 = vunpack.c.l.b16 %v83
    %v142 = vunpack.c.l.b16 %v84
    %v143 = vpack.c.b16 %v142, %v141
    %v177 = vunpack.c.l.b16 %v85
    %v178 = vunpack.c.h.b16 %v85
    %v179 = vunpack.c.l.b16 %v86
    %v180 = vunpack.c.h.b16 %v86
    %v181 = vunpack.c.l.b16 %v87
    %v182 = vunpack.c.h.b16 %v87
    %v183 = vunpack.c.l.b16 %v88
    %v184 = vunpack.c.h.b16 %v88
    %v185 = vunpack.c.l.b16 %v89
    %v186 = vunpack.c.h.b16 %v89
    %v187 = vunpack.c.l.b16 %v90
    %v188 = vunpack.c.h.b16 %v90
    %v189 = vunpack.c.l.b16 %v91
    %v190 = vunpack.c.h.b16 %v91
    %v191 = vunpack.c.l.b16 %v92
    %v192 = vunpack.c.h.b16 %v92
    %v193 = vunpack.c.l.b16 %v93
    %v194 = vunpack.c.h.b16 %v93
    %v195 = vunpack.c.l.b16 %v94
    %v196 = vunpack.c.h.b16 %v94
    %v197 = vunpack.c.l.b16 %v95
    %v198 = vunpack.c.h.b16 %v95
    %v199 = vunpack.c.l.b16 %v96
    %v200 = vunpack.c.h.b16 %v96
    %v201 = vunpack.c.l.b16 %v97
    %v202 = vunpack.c.h.b16 %v97
    %v203 = vunpack.c.l.b16 %v98
    %v204 = vunpack.c.h.b16 %v98
    %v205 = vunpack.c.l.b16 %v99
    %v206 = vunpack.c.h.b16 %v99
    %v207 = vunpack.c.l.b16 %v100
    %v208 = vunpack.c.h.b16 %v100
    %v209 = vunpack.c.l.b16 %v101
    %v210 = vunpack.c.h.b16 %v101
    %v211 = vunpack.c.l.b16 %v102
    %v212 = vunpack.c.h.b16 %v102
    %v213 = vunpack.c.l.b16 %v103
    %v214 = vunpack.c.h.b16 %v103
    %v215 = vunpack.c.l.b16 %v104
    %v216 = vunpack.c.h.b16 %v104
    %v217 = vunpack.c.l.b16 %v105
    %v218 = vunpack.c.h.b16 %v105
    %v219 = vunpack.c.l.b16 %v106
    %v220 = vunpack.c.h.b16 %v106
    %v221 = vunpack.c.l.b16 %v107
    %v222 = vunpack.c.h.b16 %v107
    %v223 = vunpack.c.l.b16 %v108
    %v224 = vunpack.c.h.b16 %v108
    %v225 = vunpack.c.l.b16 %v109
    %v226 = vunpack.c.h.b16 %v109
    %v227 = vunpack.c.l.b16 %v110
    %v228 = vunpack.c.h.b16 %v110
    %v229 = vunpack.c.l.b16 %v111
    %v230 = vunpack.c.h.b16 %v111
    %v231 = vunpack.c.l.b16 %v112
    %v232 = vunpack.c.h.b16 %v112
    %v233 = vunpack.c.l.b16 %v113
    %v234 = vunpack.c.h.b16 %v113
    %v235 = vunpack.c.l.b16 %v114
    %v236 = vunpack.c.h.b16 %v114
    %v237 = vunpack.c.l.b16 %v115
    %v238 = vunpack.c.h.b16 %v115
    %v239 = vunpack.c.l.b16 %v116
    %v240 = vunpack.c.h.b16 %v116
    %v241 = vpack.c.b16 %v181, %v177
    %v242 = vpack.c.b16 %v182, %v178
    %v243 = vpack.c.b16 %v183, %v179
    %v244 = vpack.c.b16 %v184, %v180
    %v245 = vpack.c.b16 %v189, %v185
    %v246 = vpack.c.b16 %v190, %v186
    %v247 = vpack.c.b16 %v191, %v187
    %v248 = vpack.c.b16 %v192, %v188
    %v249 = vpack.c.b16 %v197, %v193
    %v250 = vpack.c.b16 %v198, %v194
    %v251 = vpack.c.b16 %v199, %v195
    %v252 = vpack.c.b16 %v200, %v196
    %v253 = vpack.c.b16 %v205, %v201
    %v254 = vpack.c.b16 %v206, %v202
    %v255 = vpack.c.b16 %v207, %v203
    %v256 = vpack.c.b16 %v208, %v204
    %v257 = vpack.c.b16 %v213, %v209
    %v258 = vpack.c.b16 %v214, %v210
    %v259 = vpack.c.b16 %v215, %v211
    %v260 = vpack.c.b16 %v216, %v212
    %v261 = vpack.c.b16 %v221, %v217
    %v262 = vpack.c.b16 %v222, %v218
    %v263 = vpack.c.b16 %v223, %v219
    %v264 = vpack.c.b16 %v224, %v220
    %v265 = vpack.c.b16 %v229, %v225
    %v266 = vpack.c.b16 %v230, %v226
    %v267 = vpack.c.b16 %v231, %v227
    %v268 = vpack.c.b16 %v232, %v228
    %v269 = vpack.c.b16 %v237, %v233
    %v270 = vpack.c.b16 %v238, %v234
    %v271 = vpack.c.b16 %v239, %v235
    %v272 = vpack.c.b16 %v240, %v236
    %305 = vmatprep.subr.bf16.mxu0 %v242
    %306 = vmatpush1.bf16.msra.mxu0 %v241
    %307 = vmatprep.subr.bf16.mxu0 %v246
    %308 = vmatpush1.bf16.msra.mxu0 %v245
    %309 = vmatprep.subr.bf16.mxu0 %v250
    %310 = vmatpush1.bf16.msra.mxu0 %v249
    %311 = vmatprep.subr.bf16.mxu0 %v254
    %312 = vmatpush1.bf16.msra.mxu0 %v253
    %313 = vmatprep.subr.bf16.mxu0 %v258
    %314 = vmatpush1.bf16.msra.mxu0 %v257
    %315 = vmatprep.subr.bf16.mxu0 %v262
    %316 = vmatpush1.bf16.msra.mxu0 %v261
    %317 = vmatprep.subr.bf16.mxu0 %v266
    %318 = vmatpush1.bf16.msra.mxu0 %v265
    %319 = vmatprep.subr.bf16.mxu0 %v270
    %320 = vmatpush1.bf16.msra.mxu0 %v269
    %321 = vmatprep.subr.bf16.mxu0 0
    %322 = vmatpush1.bf16.msra.mxu0 0
    %323 = vmatprep.subr.bf16.mxu0 0
    %324 = vmatpush1.bf16.msra.mxu0 0
    %325 = vmatprep.subr.bf16.mxu0 0
    %326 = vmatpush1.bf16.msra.mxu0 0
    %327 = vmatprep.subr.bf16.mxu0 0
    %328 = vmatpush1.bf16.msra.mxu0 0
    %329 = vmatprep.subr.bf16.mxu0 0
    %330 = vmatpush1.bf16.msra.mxu0 0
    %331 = vmatprep.subr.bf16.mxu0 0
    %332 = vmatpush1.bf16.msra.mxu0 0
    %333 = vmatprep.subr.bf16.mxu0 0
    %334 = vmatpush1.bf16.msra.mxu0 0
    %335 = vmatprep.subr.bf16.mxu0 0
    %336 = vmatpush1.bf16.msra.mxu0 0
    %337 = vmatprep.mubr.bf16.mxu0 0
    %338 = vmatmul.mubr.bf16.gmra.mrb[0].mxu0 %v143
    %v339 = vpop.f32.mrb[0].mxu0
    %v340 = vadd.f32 %v122, %v339
    %v341 = vpop.f32.mrb[0].mxu0
    %v342 = vadd.f32 %v126, %v341
    %v343 = vpop.f32.mrb[0].mxu0
    %v344 = vadd.f32 %v122, %v343
    %v345 = vpop.f32.mrb[0].mxu0
    %v346 = vadd.f32 %v126, %v345
    %347 = vdwg.mxu0
    %348 = vmatprep.subr.bf16.mxu0 %v244
    %349 = vmatpush1.bf16.msra.mxu0 %v243
    %350 = vmatprep.subr.bf16.mxu0 %v248
    %351 = vmatpush1.bf16.msra.mxu0 %v247
    %352 = vmatprep.subr.bf16.mxu0 %v252
    %353 = vmatpush1.bf16.msra.mxu0 %v251
    %354 = vmatprep.subr.bf16.mxu0 %v256
    %355 = vmatpush1.bf16.msra.mxu0 %v255
    %356 = vmatprep.subr.bf16.mxu0 %v260
    %357 = vmatpush1.bf16.msra.mxu0 %v259
    %358 = vmatprep.subr.bf16.mxu0 %v264
    %359 = vmatpush1.bf16.msra.mxu0 %v263
    %360 = vmatprep.subr.bf16.mxu0 %v268
    %361 = vmatpush1.bf16.msra.mxu0 %v267
    %362 = vmatprep.subr.bf16.mxu0 %v272
    %363 = vmatpush1.bf16.msra.mxu0 %v271
    %364 = vmatprep.subr.bf16.mxu0 0
    %365 = vmatpush1.bf16.msra.mxu0 0
    %366 = vmatprep.subr.bf16.mxu0 0
    %367 = vmatpush1.bf16.msra.mxu0 0
    %368 = vmatprep.subr.bf16.mxu0 0
    %369 = vmatpush1.bf16.msra.mxu0 0
    %370 = vmatprep.subr.bf16.mxu0 0
    %371 = vmatpush1.bf16.msra.mxu0 0
    %372 = vmatprep.subr.bf16.mxu0 0
    %373 = vmatpush1.bf16.msra.mxu0 0
    %374 = vmatprep.subr.bf16.mxu0 0
    %375 = vmatpush1.bf16.msra.mxu0 0
    %376 = vmatprep.subr.bf16.mxu0 0
    %377 = vmatpush1.bf16.msra.mxu0 0
    %378 = vmatprep.subr.bf16.mxu0 0
    %379 = vmatpush1.bf16.msra.mxu0 0
    %380 = vmatprep.mubr.bf16.mxu0 0
    %381 = vmatmul.mubr.bf16.gmra.mrb[0].mxu0 %v143
    %v382 = vpop.f32.mrb[0].mxu0
    %v383 = vadd.f32 %v130, %v382
    %v384 = vpop.f32.mrb[0].mxu0
    %v385 = vadd.f32 %v134, %v384
    %v386 = vpop.f32.mrb[0].mxu0
    %v387 = vadd.f32 %v130, %v386
    %v388 = vpop.f32.mrb[0].mxu0
    %v389 = vadd.f32 %v134, %v388
    %390 = vdwg.mxu0
    %v391 = vmax.f32 %v340, 0.0
    %v392 = vmax.f32 %v342, 0.0
    %v393 = vmax.f32 %v383, 0.0
    %v394 = vmax.f32 %v385, 0.0
    %v395 = vmax.f32 %v344, 0.0
    %v396 = vmax.f32 %v346, 0.0
    %v397 = vmax.f32 %v387, 0.0
    %v398 = vmax.f32 %v389, 0.0
    %v399 = vpack.c.bf16 %v395, %v391
    %v400 = vpack.c.bf16 %v396, %v392
    %v401 = vpack.c.bf16 %v397, %v393
    %v402 = vpack.c.bf16 %v398, %v394
    %v403 = vld [vmem:[#allocation7] sm:$0xff]
    %v404 = vld [vmem:[#allocation7 + $0x8] sm:$0xff]
    %v405 = vld [vmem:[#allocation7 + $0x10] sm:$0xff]
    %v406 = vld [vmem:[#allocation7 + $0x18] sm:$0xff]
    %v407 = vld [vmem:[#allocation7 + $0x20] sm:$0xff]
    %v408 = vld [vmem:[#allocation7 + $0x28] sm:$0xff]
    %v409 = vld [vmem:[#allocation7 + $0x30] sm:$0xff]
    %v410 = vld [vmem:[#allocation7 + $0x38] sm:$0xff]
    %v411 = vld [vmem:[#allocation7 + $0x40] sm:$0xff]
    %v412 = vld [vmem:[#allocation7 + $0x48] sm:$0xff]
    %v413 = vld [vmem:[#allocation7 + $0x50] sm:$0xff]
    %v414 = vld [vmem:[#allocation7 + $0x58] sm:$0xff]
    %v415 = vld [vmem:[#allocation7 + $0x60] sm:$0xff]
    %v416 = vld [vmem:[#allocation7 + $0x68] sm:$0xff]
    %v417 = vld [vmem:[#allocation7 + $0x70] sm:$0xff]
    %v418 = vld [vmem:[#allocation7 + $0x78] sm:$0xff]
    %v419 = vld [vmem:[#allocation7 + $0x80] sm:$0xff]
    %v420 = vld [vmem:[#allocation7 + $0x88] sm:$0xff]
    %v421 = vld [vmem:[#allocation7 + $0x90] sm:$0xff]
    %v422 = vld [vmem:[#allocation7 + $0x98] sm:$0xff]
    %v423 = vld [vmem:[#allocation7 + $0xa0] sm:$0xff]
    %v424 = vld [vmem:[#allocation7 + $0xa8] sm:$0xff]
    %v425 = vld [vmem:[#allocation7 + $0xb0] sm:$0xff]
    %v426 = vld [vmem:[#allocation7 + $0xb8] sm:$0xff]
    %v427 = vld [vmem:[#allocation7 + $0xc0] sm:$0xff]
    %v428 = vld [vmem:[#allocation7 + $0xc8] sm:$0xff]
    %v429 = vld [vmem:[#allocation7 + $0xd0] sm:$0xff]
    %v430 = vld [vmem:[#allocation7 + $0xd8] sm:$0xff]
    %v431 = vld [vmem:[#allocation7 + $0xe0] sm:$0xff]
    %v432 = vld [vmem:[#allocation7 + $0xe8] sm:$0xff]
    %v433 = vld [vmem:[#allocation7 + $0xf0] sm:$0xff]
    %v434 = vld [vmem:[#allocation7 + $0xf8] sm:$0xff]
    %v435 = vld [vmem:[#allocation7 + $0x100] sm:$0xff]
    %v436 = vld [vmem:[#allocation7 + $0x108] sm:$0xff]
    %v437 = vld [vmem:[#allocation7 + $0x110] sm:$0xff]
    %v438 = vld [vmem:[#allocation7 + $0x118] sm:$0xff]
    %v439 = vld [vmem:[#allocation7 + $0x120] sm:$0xff]
    %v440 = vld [vmem:[#allocation7 + $0x128] sm:$0xff]
    %v441 = vld [vmem:[#allocation7 + $0x130] sm:$0xff]
    %v442 = vld [vmem:[#allocation7 + $0x138] sm:$0xff]
    %v443 = vld [vmem:[#allocation7 + $0x140] sm:$0xff]
    %v444 = vld [vmem:[#allocation7 + $0x148] sm:$0xff]
    %v445 = vld [vmem:[#allocation7 + $0x150] sm:$0xff]
    %v446 = vld [vmem:[#allocation7 + $0x158] sm:$0xff]
    %v447 = vld [vmem:[#allocation7 + $0x160] sm:$0xff]
    %v448 = vld [vmem:[#allocation7 + $0x168] sm:$0xff]
    %v449 = vld [vmem:[#allocation7 + $0x170] sm:$0xff]
    %v450 = vld [vmem:[#allocation7 + $0x178] sm:$0xff]
    %v451 = vld [vmem:[#allocation7 + $0x180] sm:$0xff]
    %v452 = vld [vmem:[#allocation7 + $0x188] sm:$0xff]
    %v453 = vld [vmem:[#allocation7 + $0x190] sm:$0xff]
    %v454 = vld [vmem:[#allocation7 + $0x198] sm:$0xff]
    %v455 = vld [vmem:[#allocation7 + $0x1a0] sm:$0xff]
    %v456 = vld [vmem:[#allocation7 + $0x1a8] sm:$0xff]
    %v457 = vld [vmem:[#allocation7 + $0x1b0] sm:$0xff]
    %v458 = vld [vmem:[#allocation7 + $0x1b8] sm:$0xff]
    %v459 = vld [vmem:[#allocation7 + $0x1c0] sm:$0xff]
    %v460 = vld [vmem:[#allocation7 + $0x1c8] sm:$0xff]
    %v461 = vld [vmem:[#allocation7 + $0x1d0] sm:$0xff]
    %v462 = vld [vmem:[#allocation7 + $0x1d8] sm:$0xff]
    %v463 = vld [vmem:[#allocation7 + $0x1e0] sm:$0xff]
    %v464 = vld [vmem:[#allocation7 + $0x1e8] sm:$0xff]
    %v465 = vld [vmem:[#allocation7 + $0x1f0] sm:$0xff]
    %v466 = vld [vmem:[#allocation7 + $0x1f8] sm:$0xff]
    %v467 = vld [vmem:[#allocation7 + $0x200] sm:$0xff]
    %v468 = vld [vmem:[#allocation7 + $0x208] sm:$0xff]
    %v469 = vld [vmem:[#allocation7 + $0x210] sm:$0xff]
    %v470 = vld [vmem:[#allocation7 + $0x218] sm:$0xff]
    %v471 = vld [vmem:[#allocation7 + $0x220] sm:$0xff]
    %v472 = vld [vmem:[#allocation7 + $0x228] sm:$0xff]
    %v473 = vld [vmem:[#allocation7 + $0x230] sm:$0xff]
    %v474 = vld [vmem:[#allocation7 + $0x238] sm:$0xff]
    %v475 = vld [vmem:[#allocation7 + $0x240] sm:$0xff]
    %v476 = vld [vmem:[#allocation7 + $0x248] sm:$0xff]
    %v477 = vld [vmem:[#allocation7 + $0x250] sm:$0xff]
    %v478 = vld [vmem:[#allocation7 + $0x258] sm:$0xff]
    %v479 = vld [vmem:[#allocation7 + $0x260] sm:$0xff]
    %v480 = vld [vmem:[#allocation7 + $0x268] sm:$0xff]
    %v481 = vld [vmem:[#allocation7 + $0x270] sm:$0xff]
    %v482 = vld [vmem:[#allocation7 + $0x278] sm:$0xff]
    %v483 = vld [vmem:[#allocation7 + $0x280] sm:$0xff]
    %v484 = vld [vmem:[#allocation7 + $0x288] sm:$0xff]
    %v485 = vld [vmem:[#allocation7 + $0x290] sm:$0xff]
    %v486 = vld [vmem:[#allocation7 + $0x298] sm:$0xff]
    %v487 = vld [vmem:[#allocation7 + $0x2a0] sm:$0xff]
    %v488 = vld [vmem:[#allocation7 + $0x2a8] sm:$0xff]
    %v489 = vld [vmem:[#allocation7 + $0x2b0] sm:$0xff]
    %v490 = vld [vmem:[#allocation7 + $0x2b8] sm:$0xff]
    %v491 = vld [vmem:[#allocation7 + $0x2c0] sm:$0xff]
    %v492 = vld [vmem:[#allocation7 + $0x2c8] sm:$0xff]
    %v493 = vld [vmem:[#allocation7 + $0x2d0] sm:$0xff]
    %v494 = vld [vmem:[#allocation7 + $0x2d8] sm:$0xff]
    %v495 = vld [vmem:[#allocation7 + $0x2e0] sm:$0xff]
    %v496 = vld [vmem:[#allocation7 + $0x2e8] sm:$0xff]
    %v497 = vld [vmem:[#allocation7 + $0x2f0] sm:$0xff]
    %v498 = vld [vmem:[#allocation7 + $0x2f8] sm:$0xff]
    %v499 = vld [vmem:[#allocation7 + $0x300] sm:$0xff]
    %v500 = vld [vmem:[#allocation7 + $0x308] sm:$0xff]
    %v501 = vld [vmem:[#allocation7 + $0x310] sm:$0xff]
    %v502 = vld [vmem:[#allocation7 + $0x318] sm:$0xff]
    %v503 = vld [vmem:[#allocation7 + $0x320] sm:$0xff]
    %v504 = vld [vmem:[#allocation7 + $0x328] sm:$0xff]
    %v505 = vld [vmem:[#allocation7 + $0x330] sm:$0xff]
    %v506 = vld [vmem:[#allocation7 + $0x338] sm:$0xff]
    %v507 = vld [vmem:[#allocation7 + $0x340] sm:$0xff]
    %v508 = vld [vmem:[#allocation7 + $0x348] sm:$0xff]
    %v509 = vld [vmem:[#allocation7 + $0x350] sm:$0xff]
    %v510 = vld [vmem:[#allocation7 + $0x358] sm:$0xff]
    %v511 = vld [vmem:[#allocation7 + $0x360] sm:$0xff]
    %v512 = vld [vmem:[#allocation7 + $0x368] sm:$0xff]
    %v513 = vld [vmem:[#allocation7 + $0x370] sm:$0xff]
    %v514 = vld [vmem:[#allocation7 + $0x378] sm:$0xff]
    %v515 = vld [vmem:[#allocation7 + $0x380] sm:$0xff]
    %v516 = vld [vmem:[#allocation7 + $0x388] sm:$0xff]
    %v517 = vld [vmem:[#allocation7 + $0x390] sm:$0xff]
    %v518 = vld [vmem:[#allocation7 + $0x398] sm:$0xff]
    %v519 = vld [vmem:[#allocation7 + $0x3a0] sm:$0xff]
    %v520 = vld [vmem:[#allocation7 + $0x3a8] sm:$0xff]
    %v521 = vld [vmem:[#allocation7 + $0x3b0] sm:$0xff]
    %v522 = vld [vmem:[#allocation7 + $0x3b8] sm:$0xff]
    %v523 = vld [vmem:[#allocation7 + $0x3c0] sm:$0xff]
    %v524 = vld [vmem:[#allocation7 + $0x3c8] sm:$0xff]
    %v525 = vld [vmem:[#allocation7 + $0x3d0] sm:$0xff]
    %v526 = vld [vmem:[#allocation7 + $0x3d8] sm:$0xff]
    %v527 = vld [vmem:[#allocation7 + $0x3e0] sm:$0xff]
    %v528 = vld [vmem:[#allocation7 + $0x3e8] sm:$0xff]
    %v529 = vld [vmem:[#allocation7 + $0x3f0] sm:$0xff]
    %v530 = vld [vmem:[#allocation7 + $0x3f8] sm:$0xff]
    %v531 = vld [vmem:[%s4] sm:$0xf]
    %v533 = vlaneseq
    %v534 = vshrl.u32 %v533, 7
    %v535 = vsub.s32 0, %v534
    %v536 = vrot.slane %v531, %v535
    %v537 = vlaneseq
    %v538 = vshrl.u32 %v537, 7
    %v539 = vsub.s32 1, %v538
    %v540 = vrot.slane %v531, %v539
    %v541 = vlaneseq
    %v542 = vshrl.u32 %v541, 7
    %v543 = vsub.s32 2, %v542
    %v544 = vrot.slane %v531, %v543
    %v545 = vlaneseq
    %v546 = vshrl.u32 %v545, 7
    %v547 = vsub.s32 3, %v546
    %v548 = vrot.slane %v531, %v547
    %v681 = vunpack.c.l.b16 %v403
    %v682 = vunpack.c.h.b16 %v403
    %v683 = vunpack.c.l.b16 %v404
    %v684 = vunpack.c.h.b16 %v404
    %v685 = vunpack.c.l.b16 %v405
    %v686 = vunpack.c.h.b16 %v405
    %v687 = vunpack.c.l.b16 %v406
    %v688 = vunpack.c.h.b16 %v406
    %v689 = vunpack.c.l.b16 %v407
    %v690 = vunpack.c.h.b16 %v407
    %v691 = vunpack.c.l.b16 %v408
    %v692 = vunpack.c.h.b16 %v408
    %v693 = vunpack.c.l.b16 %v409
    %v694 = vunpack.c.h.b16 %v409
    %v695 = vunpack.c.l.b16 %v410
    %v696 = vunpack.c.h.b16 %v410
    %v697 = vunpack.c.l.b16 %v411
    %v698 = vunpack.c.h.b16 %v411
    %v699 = vunpack.c.l.b16 %v412
    %v700 = vunpack.c.h.b16 %v412
    %v701 = vunpack.c.l.b16 %v413
    %v702 = vunpack.c.h.b16 %v413
    %v703 = vunpack.c.l.b16 %v414
    %v704 = vunpack.c.h.b16 %v414
    %v705 = vunpack.c.l.b16 %v415
    %v706 = vunpack.c.h.b16 %v415
    %v707 = vunpack.c.l.b16 %v416
    %v708 = vunpack.c.h.b16 %v416
    %v709 = vunpack.c.l.b16 %v417
    %v710 = vunpack.c.h.b16 %v417
    %v711 = vunpack.c.l.b16 %v418
    %v712 = vunpack.c.h.b16 %v418
    %v713 = vunpack.c.l.b16 %v419
    %v714 = vunpack.c.h.b16 %v419
    %v715 = vunpack.c.l.b16 %v420
    %v716 = vunpack.c.h.b16 %v420
    %v717 = vunpack.c.l.b16 %v421
    %v718 = vunpack.c.h.b16 %v421
    %v719 = vunpack.c.l.b16 %v422
    %v720 = vunpack.c.h.b16 %v422
    %v721 = vunpack.c.l.b16 %v423
    %v722 = vunpack.c.h.b16 %v423
    %v723 = vunpack.c.l.b16 %v424
    %v724 = vunpack.c.h.b16 %v424
    %v725 = vunpack.c.l.b16 %v425
    %v726 = vunpack.c.h.b16 %v425
    %v727 = vunpack.c.l.b16 %v426
    %v728 = vunpack.c.h.b16 %v426
    %v729 = vunpack.c.l.b16 %v427
    %v730 = vunpack.c.h.b16 %v427
    %v731 = vunpack.c.l.b16 %v428
    %v732 = vunpack.c.h.b16 %v428
    %v733 = vunpack.c.l.b16 %v429
    %v734 = vunpack.c.h.b16 %v429
    %v735 = vunpack.c.l.b16 %v430
    %v736 = vunpack.c.h.b16 %v430
    %v737 = vunpack.c.l.b16 %v431
    %v738 = vunpack.c.h.b16 %v431
    %v739 = vunpack.c.l.b16 %v432
    %v740 = vunpack.c.h.b16 %v432
    %v741 = vunpack.c.l.b16 %v433
    %v742 = vunpack.c.h.b16 %v433
    %v743 = vunpack.c.l.b16 %v434
    %v744 = vunpack.c.h.b16 %v434
    %v745 = vunpack.c.l.b16 %v435
    %v746 = vunpack.c.h.b16 %v435
    %v747 = vunpack.c.l.b16 %v436
    %v748 = vunpack.c.h.b16 %v436
    %v749 = vunpack.c.l.b16 %v437
    %v750 = vunpack.c.h.b16 %v437
    %v751 = vunpack.c.l.b16 %v438
    %v752 = vunpack.c.h.b16 %v438
    %v753 = vunpack.c.l.b16 %v439
    %v754 = vunpack.c.h.b16 %v439
    %v755 = vunpack.c.l.b16 %v440
    %v756 = vunpack.c.h.b16 %v440
    %v757 = vunpack.c.l.b16 %v441
    %v758 = vunpack.c.h.b16 %v441
    %v759 = vunpack.c.l.b16 %v442
    %v760 = vunpack.c.h.b16 %v442
    %v761 = vunpack.c.l.b16 %v443
    %v762 = vunpack.c.h.b16 %v443
    %v763 = vunpack.c.l.b16 %v444
    %v764 = vunpack.c.h.b16 %v444
    %v765 = vunpack.c.l.b16 %v445
    %v766 = vunpack.c.h.b16 %v445
    %v767 = vunpack.c.l.b16 %v446
    %v768 = vunpack.c.h.b16 %v446
    %v769 = vunpack.c.l.b16 %v447
    %v770 = vunpack.c.h.b16 %v447
    %v771 = vunpack.c.l.b16 %v448
    %v772 = vunpack.c.h.b16 %v448
    %v773 = vunpack.c.l.b16 %v449
    %v774 = vunpack.c.h.b16 %v449
    %v775 = vunpack.c.l.b16 %v450
    %v776 = vunpack.c.h.b16 %v450
    %v777 = vunpack.c.l.b16 %v451
    %v778 = vunpack.c.h.b16 %v451
    %v779 = vunpack.c.l.b16 %v452
    %v780 = vunpack.c.h.b16 %v452
    %v781 = vunpack.c.l.b16 %v453
    %v782 = vunpack.c.h.b16 %v453
    %v783 = vunpack.c.l.b16 %v454
    %v784 = vunpack.c.h.b16 %v454
    %v785 = vunpack.c.l.b16 %v455
    %v786 = vunpack.c.h.b16 %v455
    %v787 = vunpack.c.l.b16 %v456
    %v788 = vunpack.c.h.b16 %v456
    %v789 = vunpack.c.l.b16 %v457
    %v790 = vunpack.c.h.b16 %v457
    %v791 = vunpack.c.l.b16 %v458
    %v792 = vunpack.c.h.b16 %v458
    %v793 = vunpack.c.l.b16 %v459
    %v794 = vunpack.c.h.b16 %v459
    %v795 = vunpack.c.l.b16 %v460
    %v796 = vunpack.c.h.b16 %v460
    %v797 = vunpack.c.l.b16 %v461
    %v798 = vunpack.c.h.b16 %v461
    %v799 = vunpack.c.l.b16 %v462
    %v800 = vunpack.c.h.b16 %v462
    %v801 = vunpack.c.l.b16 %v463
    %v802 = vunpack.c.h.b16 %v463
    %v803 = vunpack.c.l.b16 %v464
    %v804 = vunpack.c.h.b16 %v464
    %v805 = vunpack.c.l.b16 %v465
    %v806 = vunpack.c.h.b16 %v465
    %v807 = vunpack.c.l.b16 %v466
    %v808 = vunpack.c.h.b16 %v466
    %v809 = vunpack.c.l.b16 %v467
    %v810 = vunpack.c.h.b16 %v467
    %v811 = vunpack.c.l.b16 %v468
    %v812 = vunpack.c.h.b16 %v468
    %v813 = vunpack.c.l.b16 %v469
    %v814 = vunpack.c.h.b16 %v469
    %v815 = vunpack.c.l.b16 %v470
    %v816 = vunpack.c.h.b16 %v470
    %v817 = vunpack.c.l.b16 %v471
    %v818 = vunpack.c.h.b16 %v471
    %v819 = vunpack.c.l.b16 %v472
    %v820 = vunpack.c.h.b16 %v472
    %v821 = vunpack.c.l.b16 %v473
    %v822 = vunpack.c.h.b16 %v473
    %v823 = vunpack.c.l.b16 %v474
    %v824 = vunpack.c.h.b16 %v474
    %v825 = vunpack.c.l.b16 %v475
    %v826 = vunpack.c.h.b16 %v475
    %v827 = vunpack.c.l.b16 %v476
    %v828 = vunpack.c.h.b16 %v476
    %v829 = vunpack.c.l.b16 %v477
    %v830 = vunpack.c.h.b16 %v477
    %v831 = vunpack.c.l.b16 %v478
    %v832 = vunpack.c.h.b16 %v478
    %v833 = vunpack.c.l.b16 %v479
    %v834 = vunpack.c.h.b16 %v479
    %v835 = vunpack.c.l.b16 %v480
    %v836 = vunpack.c.h.b16 %v480
    %v837 = vunpack.c.l.b16 %v481
    %v838 = vunpack.c.h.b16 %v481
    %v839 = vunpack.c.l.b16 %v482
    %v840 = vunpack.c.h.b16 %v482
    %v841 = vunpack.c.l.b16 %v483
    %v842 = vunpack.c.h.b16 %v483
    %v843 = vunpack.c.l.b16 %v484
    %v844 = vunpack.c.h.b16 %v484
    %v845 = vunpack.c.l.b16 %v485
    %v846 = vunpack.c.h.b16 %v485
    %v847 = vunpack.c.l.b16 %v486
    %v848 = vunpack.c.h.b16 %v486
    %v849 = vunpack.c.l.b16 %v487
    %v850 = vunpack.c.h.b16 %v487
    %v851 = vunpack.c.l.b16 %v488
    %v852 = vunpack.c.h.b16 %v488
    %v853 = vunpack.c.l.b16 %v489
    %v854 = vunpack.c.h.b16 %v489
    %v855 = vunpack.c.l.b16 %v490
    %v856 = vunpack.c.h.b16 %v490
    %v857 = vunpack.c.l.b16 %v491
    %v858 = vunpack.c.h.b16 %v491
    %v859 = vunpack.c.l.b16 %v492
    %v860 = vunpack.c.h.b16 %v492
    %v861 = vunpack.c.l.b16 %v493
    %v862 = vunpack.c.h.b16 %v493
    %v863 = vunpack.c.l.b16 %v494
    %v864 = vunpack.c.h.b16 %v494
    %v865 = vunpack.c.l.b16 %v495
    %v866 = vunpack.c.h.b16 %v495
    %v867 = vunpack.c.l.b16 %v496
    %v868 = vunpack.c.h.b16 %v496
    %v869 = vunpack.c.l.b16 %v497
    %v870 = vunpack.c.h.b16 %v497
    %v871 = vunpack.c.l.b16 %v498
    %v872 = vunpack.c.h.b16 %v498
    %v873 = vunpack.c.l.b16 %v499
    %v874 = vunpack.c.h.b16 %v499
    %v875 = vunpack.c.l.b16 %v500
    %v876 = vunpack.c.h.b16 %v500
    %v877 = vunpack.c.l.b16 %v501
    %v878 = vunpack.c.h.b16 %v501
    %v879 = vunpack.c.l.b16 %v502
    %v880 = vunpack.c.h.b16 %v502
    %v881 = vunpack.c.l.b16 %v503
    %v882 = vunpack.c.h.b16 %v503
    %v883 = vunpack.c.l.b16 %v504
    %v884 = vunpack.c.h.b16 %v504
    %v885 = vunpack.c.l.b16 %v505
    %v886 = vunpack.c.h.b16 %v505
    %v887 = vunpack.c.l.b16 %v506
    %v888 = vunpack.c.h.b16 %v506
    %v889 = vunpack.c.l.b16 %v507
    %v890 = vunpack.c.h.b16 %v507
    %v891 = vunpack.c.l.b16 %v508
    %v892 = vunpack.c.h.b16 %v508
    %v893 = vunpack.c.l.b16 %v509
    %v894 = vunpack.c.h.b16 %v509
    %v895 = vunpack.c.l.b16 %v510
    %v896 = vunpack.c.h.b16 %v510
    %v897 = vunpack.c.l.b16 %v511
    %v898 = vunpack.c.h.b16 %v511
    %v899 = vunpack.c.l.b16 %v512
    %v900 = vunpack.c.h.b16 %v512
    %v901 = vunpack.c.l.b16 %v513
    %v902 = vunpack.c.h.b16 %v513
    %v903 = vunpack.c.l.b16 %v514
    %v904 = vunpack.c.h.b16 %v514
    %v905 = vunpack.c.l.b16 %v515
    %v906 = vunpack.c.h.b16 %v515
    %v907 = vunpack.c.l.b16 %v516
    %v908 = vunpack.c.h.b16 %v516
    %v909 = vunpack.c.l.b16 %v517
    %v910 = vunpack.c.h.b16 %v517
    %v911 = vunpack.c.l.b16 %v518
    %v912 = vunpack.c.h.b16 %v518
    %v913 = vunpack.c.l.b16 %v519
    %v914 = vunpack.c.h.b16 %v519
    %v915 = vunpack.c.l.b16 %v520
    %v916 = vunpack.c.h.b16 %v520
    %v917 = vunpack.c.l.b16 %v521
    %v918 = vunpack.c.h.b16 %v521
    %v919 = vunpack.c.l.b16 %v522
    %v920 = vunpack.c.h.b16 %v522
    %v921 = vunpack.c.l.b16 %v523
    %v922 = vunpack.c.h.b16 %v523
    %v923 = vunpack.c.l.b16 %v524
    %v924 = vunpack.c.h.b16 %v524
    %v925 = vunpack.c.l.b16 %v525
    %v926 = vunpack.c.h.b16 %v525
    %v927 = vunpack.c.l.b16 %v526
    %v928 = vunpack.c.h.b16 %v526
    %v929 = vunpack.c.l.b16 %v527
    %v930 = vunpack.c.h.b16 %v527
    %v931 = vunpack.c.l.b16 %v528
    %v932 = vunpack.c.h.b16 %v528
    %v933 = vunpack.c.l.b16 %v529
    %v934 = vunpack.c.h.b16 %v529
    %v935 = vunpack.c.l.b16 %v530
    %v936 = vunpack.c.h.b16 %v530
    %v937 = vpack.c.b16 %v685, %v681
    %v938 = vpack.c.b16 %v686, %v682
    %v939 = vpack.c.b16 %v687, %v683
    %v940 = vpack.c.b16 %v688, %v684
    %v941 = vpack.c.b16 %v693, %v689
    %v942 = vpack.c.b16 %v694, %v690
    %v943 = vpack.c.b16 %v695, %v691
    %v944 = vpack.c.b16 %v696, %v692
    %v945 = vpack.c.b16 %v701, %v697
    %v946 = vpack.c.b16 %v702, %v698
    %v947 = vpack.c.b16 %v703, %v699
    %v948 = vpack.c.b16 %v704, %v700
    %v949 = vpack.c.b16 %v709, %v705
    %v950 = vpack.c.b16 %v710, %v706
    %v951 = vpack.c.b16 %v711, %v707
    %v952 = vpack.c.b16 %v712, %v708
    %v953 = vpack.c.b16 %v717, %v713
    %v954 = vpack.c.b16 %v718, %v714
    %v955 = vpack.c.b16 %v719, %v715
    %v956 = vpack.c.b16 %v720, %v716
    %v957 = vpack.c.b16 %v725, %v721
    %v958 = vpack.c.b16 %v726, %v722
    %v959 = vpack.c.b16 %v727, %v723
    %v960 = vpack.c.b16 %v728, %v724
    %v961 = vpack.c.b16 %v733, %v729
    %v962 = vpack.c.b16 %v734, %v730
    %v963 = vpack.c.b16 %v735, %v731
    %v964 = vpack.c.b16 %v736, %v732
    %v965 = vpack.c.b16 %v741, %v737
    %v966 = vpack.c.b16 %v742, %v738
    %v967 = vpack.c.b16 %v743, %v739
    %v968 = vpack.c.b16 %v744, %v740
    %v969 = vpack.c.b16 %v749, %v745
    %v970 = vpack.c.b16 %v750, %v746
    %v971 = vpack.c.b16 %v751, %v747
    %v972 = vpack.c.b16 %v752, %v748
    %v973 = vpack.c.b16 %v757, %v753
    %v974 = vpack.c.b16 %v758, %v754
    %v975 = vpack.c.b16 %v759, %v755
    %v976 = vpack.c.b16 %v760, %v756
    %v977 = vpack.c.b16 %v765, %v761
    %v978 = vpack.c.b16 %v766, %v762
    %v979 = vpack.c.b16 %v767, %v763
    %v980 = vpack.c.b16 %v768, %v764
    %v981 = vpack.c.b16 %v773, %v769
    %v982 = vpack.c.b16 %v774, %v770
    %v983 = vpack.c.b16 %v775, %v771
    %v984 = vpack.c.b16 %v776, %v772
    %v985 = vpack.c.b16 %v781, %v777
    %v986 = vpack.c.b16 %v782, %v778
    %v987 = vpack.c.b16 %v783, %v779
    %v988 = vpack.c.b16 %v784, %v780
    %v989 = vpack.c.b16 %v789, %v785
    %v990 = vpack.c.b16 %v790, %v786
    %v991 = vpack.c.b16 %v791, %v787
    %v992 = vpack.c.b16 %v792, %v788
    %v993 = vpack.c.b16 %v797, %v793
    %v994 = vpack.c.b16 %v798, %v794
    %v995 = vpack.c.b16 %v799, %v795
    %v996 = vpack.c.b16 %v800, %v796
    %v997 = vpack.c.b16 %v805, %v801
    %v998 = vpack.c.b16 %v806, %v802
    %v999 = vpack.c.b16 %v807, %v803
    %v1000 = vpack.c.b16 %v808, %v804
    %v1001 = vpack.c.b16 %v813, %v809
    %v1002 = vpack.c.b16 %v814, %v810
    %v1003 = vpack.c.b16 %v815, %v811
    %v1004 = vpack.c.b16 %v816, %v812
    %v1005 = vpack.c.b16 %v821, %v817
    %v1006 = vpack.c.b16 %v822, %v818
    %v1007 = vpack.c.b16 %v823, %v819
    %v1008 = vpack.c.b16 %v824, %v820
    %v1009 = vpack.c.b16 %v829, %v825
    %v1010 = vpack.c.b16 %v830, %v826
    %v1011 = vpack.c.b16 %v831, %v827
    %v1012 = vpack.c.b16 %v832, %v828
    %v1013 = vpack.c.b16 %v837, %v833
    %v1014 = vpack.c.b16 %v838, %v834
    %v1015 = vpack.c.b16 %v839, %v835
    %v1016 = vpack.c.b16 %v840, %v836
    %v1017 = vpack.c.b16 %v845, %v841
    %v1018 = vpack.c.b16 %v846, %v842
    %v1019 = vpack.c.b16 %v847, %v843
    %v1020 = vpack.c.b16 %v848, %v844
    %v1021 = vpack.c.b16 %v853, %v849
    %v1022 = vpack.c.b16 %v854, %v850
    %v1023 = vpack.c.b16 %v855, %v851
    %v1024 = vpack.c.b16 %v856, %v852
    %v1025 = vpack.c.b16 %v861, %v857
    %v1026 = vpack.c.b16 %v862, %v858
    %v1027 = vpack.c.b16 %v863, %v859
    %v1028 = vpack.c.b16 %v864, %v860
    %v1029 = vpack.c.b16 %v869, %v865
    %v1030 = vpack.c.b16 %v870, %v866
    %v1031 = vpack.c.b16 %v871, %v867
    %v1032 = vpack.c.b16 %v872, %v868
    %v1033 = vpack.c.b16 %v877, %v873
    %v1034 = vpack.c.b16 %v878, %v874
    %v1035 = vpack.c.b16 %v879, %v875
    %v1036 = vpack.c.b16 %v880, %v876
    %v1037 = vpack.c.b16 %v885, %v881
    %v1038 = vpack.c.b16 %v886, %v882
    %v1039 = vpack.c.b16 %v887, %v883
    %v1040 = vpack.c.b16 %v888, %v884
    %v1041 = vpack.c.b16 %v893, %v889
    %v1042 = vpack.c.b16 %v894, %v890
    %v1043 = vpack.c.b16 %v895, %v891
    %v1044 = vpack.c.b16 %v896, %v892
    %v1045 = vpack.c.b16 %v901, %v897
    %v1046 = vpack.c.b16 %v902, %v898
    %v1047 = vpack.c.b16 %v903, %v899
    %v1048 = vpack.c.b16 %v904, %v900
    %v1049 = vpack.c.b16 %v909, %v905
    %v1050 = vpack.c.b16 %v910, %v906
    %v1051 = vpack.c.b16 %v911, %v907
    %v1052 = vpack.c.b16 %v912, %v908
    %v1053 = vpack.c.b16 %v917, %v913
    %v1054 = vpack.c.b16 %v918, %v914
    %v1055 = vpack.c.b16 %v919, %v915
    %v1056 = vpack.c.b16 %v920, %v916
    %v1057 = vpack.c.b16 %v925, %v921
    %v1058 = vpack.c.b16 %v926, %v922
    %v1059 = vpack.c.b16 %v927, %v923
    %v1060 = vpack.c.b16 %v928, %v924
    %v1061 = vpack.c.b16 %v933, %v929
    %v1062 = vpack.c.b16 %v934, %v930
    %v1063 = vpack.c.b16 %v935, %v931
    %v1064 = vpack.c.b16 %v936, %v932
    %1193 = vmatprep.subr.bf16.mxu0 %v938
    %1194 = vmatpush1.bf16.msra.mxu0 %v937
    %1195 = vmatprep.subr.bf16.mxu0 %v942
    %1196 = vmatpush1.bf16.msra.mxu0 %v941
    %1197 = vmatprep.subr.bf16.mxu0 %v946
    %1198 = vmatpush1.bf16.msra.mxu0 %v945
    %1199 = vmatprep.subr.bf16.mxu0 %v950
    %1200 = vmatpush1.bf16.msra.mxu0 %v949
    %1201 = vmatprep.subr.bf16.mxu0 %v954
    %1202 = vmatpush1.bf16.msra.mxu0 %v953
    %1203 = vmatprep.subr.bf16.mxu0 %v958
    %1204 = vmatpush1.bf16.msra.mxu0 %v957
    %1205 = vmatprep.subr.bf16.mxu0 %v962
    %1206 = vmatpush1.bf16.msra.mxu0 %v961
    %1207 = vmatprep.subr.bf16.mxu0 %v966
    %1208 = vmatpush1.bf16.msra.mxu0 %v965
    %1209 = vmatprep.subr.bf16.mxu0 %v970
    %1210 = vmatpush1.bf16.msra.mxu0 %v969
    %1211 = vmatprep.subr.bf16.mxu0 %v974
    %1212 = vmatpush1.bf16.msra.mxu0 %v973
    %1213 = vmatprep.subr.bf16.mxu0 %v978
    %1214 = vmatpush1.bf16.msra.mxu0 %v977
    %1215 = vmatprep.subr.bf16.mxu0 %v982
    %1216 = vmatpush1.bf16.msra.mxu0 %v981
    %1217 = vmatprep.subr.bf16.mxu0 %v986
    %1218 = vmatpush1.bf16.msra.mxu0 %v985
    %1219 = vmatprep.subr.bf16.mxu0 %v990
    %1220 = vmatpush1.bf16.msra.mxu0 %v989
    %1221 = vmatprep.subr.bf16.mxu0 %v994
    %1222 = vmatpush1.bf16.msra.mxu0 %v993
    %1223 = vmatprep.subr.bf16.mxu0 %v998
    %1224 = vmatpush1.bf16.msra.mxu0 %v997
    %1225 = vmatprep.mubr.bf16.mxu0 %v400
    %1226 = vmatmul.mubr.bf16.gmra.mrb[0].mxu0 %v399
    %v1227 = vpop.f32.mrb[0].mxu0
    %v1228 = vadd.f32 %v536, %v1227
    %v1229 = vpop.f32.mrb[0].mxu0
    %v1230 = vadd.f32 %v540, %v1229
    %v1231 = vpop.f32.mrb[0].mxu0
    %v1232 = vadd.f32 %v536, %v1231
    %v1233 = vpop.f32.mrb[0].mxu0
    %v1234 = vadd.f32 %v540, %v1233
    %1235 = vdwg.mxu0
    %1236 = vmatprep.subr.bf16.mxu0 %v1002
    %1237 = vmatpush1.bf16.msra.mxu0 %v1001
    %1238 = vmatprep.subr.bf16.mxu0 %v1006
    %1239 = vmatpush1.bf16.msra.mxu0 %v1005
    %1240 = vmatprep.subr.bf16.mxu0 %v1010
    %1241 = vmatpush1.bf16.msra.mxu0 %v1009
    %1242 = vmatprep.subr.bf16.mxu0 %v1014
    %1243 = vmatpush1.bf16.msra.mxu0 %v1013
    %1244 = vmatprep.subr.bf16.mxu0 %v1018
    %1245 = vmatpush1.bf16.msra.mxu0 %v1017
    %1246 = vmatprep.subr.bf16.mxu0 %v1022
    %1247 = vmatpush1.bf16.msra.mxu0 %v1021
    %1248 = vmatprep.subr.bf16.mxu0 %v1026
    %1249 = vmatpush1.bf16.msra.mxu0 %v1025
    %1250 = vmatprep.subr.bf16.mxu0 %v1030
    %1251 = vmatpush1.bf16.msra.mxu0 %v1029
    %1252 = vmatprep.subr.bf16.mxu0 %v1034
    %1253 = vmatpush1.bf16.msra.mxu0 %v1033
    %1254 = vmatprep.subr.bf16.mxu0 %v1038
    %1255 = vmatpush1.bf16.msra.mxu0 %v1037
    %1256 = vmatprep.subr.bf16.mxu0 %v1042
    %1257 = vmatpush1.bf16.msra.mxu0 %v1041
    %1258 = vmatprep.subr.bf16.mxu0 %v1046
    %1259 = vmatpush1.bf16.msra.mxu0 %v1045
    %1260 = vmatprep.subr.bf16.mxu0 %v1050
    %1261 = vmatpush1.bf16.msra.mxu0 %v1049
    %1262 = vmatprep.subr.bf16.mxu0 %v1054
    %1263 = vmatpush1.bf16.msra.mxu0 %v1053
    %1264 = vmatprep.subr.bf16.mxu0 %v1058
    %1265 = vmatpush1.bf16.msra.mxu0 %v1057
    %1266 = vmatprep.subr.bf16.mxu0 %v1062
    %1267 = vmatpush1.bf16.msra.mxu0 %v1061
    %1268 = vmatprep.mubr.bf16.mxu0 %v402
    %1269 = vmatmul.mubr.bf16.gmra.mrb[0].mxu0 %v401
    %v1270 = vpop.f32.mrb[0].mxu0
    %v1271 = vadd.f32 %v1228, %v1270
    %v1272 = vpop.f32.mrb[0].mxu0
    %v1273 = vadd.f32 %v1230, %v1272
    %v1274 = vpop.f32.mrb[0].mxu0
    %v1275 = vadd.f32 %v1232, %v1274
    %v1276 = vpop.f32.mrb[0].mxu0
    %v1277 = vadd.f32 %v1234, %v1276
    %1278 = vdwg.mxu0
    %1279 = vmatprep.subr.bf16.mxu0 %v940
    %1280 = vmatpush1.bf16.msra.mxu0 %v939
    %1281 = vmatprep.subr.bf16.mxu0 %v944
    %1282 = vmatpush1.bf16.msra.mxu0 %v943
    %1283 = vmatprep.subr.bf16.mxu0 %v948
    %1284 = vmatpush1.bf16.msra.mxu0 %v947
    %1285 = vmatprep.subr.bf16.mxu0 %v952
    %1286 = vmatpush1.bf16.msra.mxu0 %v951
    %1287 = vmatprep.subr.bf16.mxu0 %v956
    %1288 = vmatpush1.bf16.msra.mxu0 %v955
    %1289 = vmatprep.subr.bf16.mxu0 %v960
    %1290 = vmatpush1.bf16.msra.mxu0 %v959
    %1291 = vmatprep.subr.bf16.mxu0 %v964
    %1292 = vmatpush1.bf16.msra.mxu0 %v963
    %1293 = vmatprep.subr.bf16.mxu0 %v968
    %1294 = vmatpush1.bf16.msra.mxu0 %v967
    %1295 = vmatprep.subr.bf16.mxu0 %v972
    %1296 = vmatpush1.bf16.msra.mxu0 %v971
    %1297 = vmatprep.subr.bf16.mxu0 %v976
    %1298 = vmatpush1.bf16.msra.mxu0 %v975
    %1299 = vmatprep.subr.bf16.mxu0 %v980
    %1300 = vmatpush1.bf16.msra.mxu0 %v979
    %1301 = vmatprep.subr.bf16.mxu0 %v984
    %1302 = vmatpush1.bf16.msra.mxu0 %v983
    %1303 = vmatprep.subr.bf16.mxu0 %v988
    %1304 = vmatpush1.bf16.msra.mxu0 %v987
    %1305 = vmatprep.subr.bf16.mxu0 %v992
    %1306 = vmatpush1.bf16.msra.mxu0 %v991
    %1307 = vmatprep.subr.bf16.mxu0 %v996
    %1308 = vmatpush1.bf16.msra.mxu0 %v995
    %1309 = vmatprep.subr.bf16.mxu0 %v1000
    %1310 = vmatpush1.bf16.msra.mxu0 %v999
    %1311 = vmatprep.mubr.bf16.mxu0 %v400
    %1312 = vmatmul.mubr.bf16.gmra.mrb[0].mxu0 %v399
    %v1313 = vpop.f32.mrb[0].mxu0
    %v1314 = vadd.f32 %v544, %v1313
    %v1315 = vpop.f32.mrb[0].mxu0
    %v1316 = vadd.f32 %v548, %v1315
    %v1317 = vpop.f32.mrb[0].mxu0
    %v1318 = vadd.f32 %v544, %v1317
    %v1319 = vpop.f32.mrb[0].mxu0
    %v1320 = vadd.f32 %v548, %v1319
    %1321 = vdwg.mxu0
    %1322 = vmatprep.subr.bf16.mxu0 %v1004
    %1323 = vmatpush1.bf16.msra.mxu0 %v1003
    %1324 = vmatprep.subr.bf16.mxu0 %v1008
    %1325 = vmatpush1.bf16.msra.mxu0 %v1007
    %1326 = vmatprep.subr.bf16.mxu0 %v1012
    %1327 = vmatpush1.bf16.msra.mxu0 %v1011
    %1328 = vmatprep.subr.bf16.mxu0 %v1016
    %1329 = vmatpush1.bf16.msra.mxu0 %v1015
    %1330 = vmatprep.subr.bf16.mxu0 %v1020
    %1331 = vmatpush1.bf16.msra.mxu0 %v1019
    %1332 = vmatprep.subr.bf16.mxu0 %v1024
    %1333 = vmatpush1.bf16.msra.mxu0 %v1023
    %1334 = vmatprep.subr.bf16.mxu0 %v1028
    %1335 = vmatpush1.bf16.msra.mxu0 %v1027
    %1336 = vmatprep.subr.bf16.mxu0 %v1032
    %1337 = vmatpush1.bf16.msra.mxu0 %v1031
    %1338 = vmatprep.subr.bf16.mxu0 %v1036
    %1339 = vmatpush1.bf16.msra.mxu0 %v1035
    %1340 = vmatprep.subr.bf16.mxu0 %v1040
    %1341 = vmatpush1.bf16.msra.mxu0 %v1039
    %1342 = vmatprep.subr.bf16.mxu0 %v1044
    %1343 = vmatpush1.bf16.msra.mxu0 %v1043
    %1344 = vmatprep.subr.bf16.mxu0 %v1048
    %1345 = vmatpush1.bf16.msra.mxu0 %v1047
    %1346 = vmatprep.subr.bf16.mxu0 %v1052
    %1347 = vmatpush1.bf16.msra.mxu0 %v1051
    %1348 = vmatprep.subr.bf16.mxu0 %v1056
    %1349 = vmatpush1.bf16.msra.mxu0 %v1055
    %1350 = vmatprep.subr.bf16.mxu0 %v1060
    %1351 = vmatpush1.bf16.msra.mxu0 %v1059
    %1352 = vmatprep.subr.bf16.mxu0 %v1064
    %1353 = vmatpush1.bf16.msra.mxu0 %v1063
    %1354 = vmatprep.mubr.bf16.mxu0 %v402
    %1355 = vmatmul.mubr.bf16.gmra.mrb[0].mxu0 %v401
    %v1356 = vpop.f32.mrb[0].mxu0
    %v1357 = vadd.f32 %v1314, %v1356
    %v1358 = vpop.f32.mrb[0].mxu0
    %v1359 = vadd.f32 %v1316, %v1358
    %v1360 = vpop.f32.mrb[0].mxu0
    %v1361 = vadd.f32 %v1318, %v1360
    %v1362 = vpop.f32.mrb[0].mxu0
    %v1363 = vadd.f32 %v1320, %v1362
    %1364 = vdwg.mxu0
    %v1365 = vmax.f32 %v1271, 0.0
    %v1366 = vmax.f32 %v1273, 0.0
    %v1367 = vmax.f32 %v1357, 0.0
    %v1368 = vmax.f32 %v1359, 0.0
    %v1369 = vmax.f32 %v1275, 0.0
    %v1370 = vmax.f32 %v1277, 0.0
    %v1371 = vmax.f32 %v1361, 0.0
    %v1372 = vmax.f32 %v1363, 0.0
    %v1373 = vpack.c.bf16 %v1369, %v1365
    %v1374 = vpack.c.bf16 %v1370, %v1366
    %v1375 = vpack.c.bf16 %v1371, %v1367
    %v1376 = vpack.c.bf16 %v1372, %v1368
    %v1377 = vld [vmem:[#allocation8] sm:$0xf]
    %v1378 = vld [vmem:[#allocation8 + $0x4] sm:$0xf]
    %v1379 = vld [vmem:[#allocation8 + $0x8] sm:$0xf]
    %v1380 = vld [vmem:[#allocation8 + $0xc] sm:$0xf]
    %v1381 = vld [vmem:[#allocation8 + $0x10] sm:$0xf]
    %v1382 = vld [vmem:[#allocation8 + $0x14] sm:$0xf]
    %v1383 = vld [vmem:[#allocation8 + $0x18] sm:$0xf]
    %v1384 = vld [vmem:[#allocation8 + $0x1c] sm:$0xf]
    %v1385 = vld [vmem:[#allocation8 + $0x20] sm:$0xf]
    %v1386 = vld [vmem:[#allocation8 + $0x24] sm:$0xf]
    %v1387 = vld [vmem:[#allocation8 + $0x28] sm:$0xf]
    %v1388 = vld [vmem:[#allocation8 + $0x2c] sm:$0xf]
    %v1389 = vld [vmem:[#allocation8 + $0x30] sm:$0xf]
    %v1390 = vld [vmem:[#allocation8 + $0x34] sm:$0xf]
    %v1391 = vld [vmem:[#allocation8 + $0x38] sm:$0xf]
    %v1392 = vld [vmem:[#allocation8 + $0x3c] sm:$0xf]
    %v1393 = vld [vmem:[#allocation8 + $0x40] sm:$0xf]
    %v1394 = vld [vmem:[#allocation8 + $0x44] sm:$0xf]
    %v1395 = vld [vmem:[#allocation8 + $0x48] sm:$0xf]
    %v1396 = vld [vmem:[#allocation8 + $0x4c] sm:$0xf]
    %v1397 = vld [vmem:[#allocation8 + $0x50] sm:$0xf]
    %v1398 = vld [vmem:[#allocation8 + $0x54] sm:$0xf]
    %v1399 = vld [vmem:[#allocation8 + $0x58] sm:$0xf]
    %v1400 = vld [vmem:[#allocation8 + $0x5c] sm:$0xf]
    %v1401 = vld [vmem:[#allocation8 + $0x60] sm:$0xf]
    %v1402 = vld [vmem:[#allocation8 + $0x64] sm:$0xf]
    %v1403 = vld [vmem:[#allocation8 + $0x68] sm:$0xf]
    %v1404 = vld [vmem:[#allocation8 + $0x6c] sm:$0xf]
    %v1405 = vld [vmem:[#allocation8 + $0x70] sm:$0xf]
    %v1406 = vld [vmem:[#allocation8 + $0x74] sm:$0xf]
    %v1407 = vld [vmem:[#allocation8 + $0x78] sm:$0xf]
    %v1408 = vld [vmem:[#allocation8 + $0x7c] sm:$0xf]
    %v1409 = vld [vmem:[#allocation8 + $0x80] sm:$0xf]
    %v1410 = vld [vmem:[#allocation8 + $0x84] sm:$0xf]
    %v1411 = vld [vmem:[#allocation8 + $0x88] sm:$0xf]
    %v1412 = vld [vmem:[#allocation8 + $0x8c] sm:$0xf]
    %v1413 = vld [vmem:[#allocation8 + $0x90] sm:$0xf]
    %v1414 = vld [vmem:[#allocation8 + $0x94] sm:$0xf]
    %v1415 = vld [vmem:[#allocation8 + $0x98] sm:$0xf]
    %v1416 = vld [vmem:[#allocation8 + $0x9c] sm:$0xf]
    %v1417 = vld [vmem:[#allocation8 + $0xa0] sm:$0xf]
    %v1418 = vld [vmem:[#allocation8 + $0xa4] sm:$0xf]
    %v1419 = vld [vmem:[#allocation8 + $0xa8] sm:$0xf]
    %v1420 = vld [vmem:[#allocation8 + $0xac] sm:$0xf]
    %v1421 = vld [vmem:[#allocation8 + $0xb0] sm:$0xf]
    %v1422 = vld [vmem:[#allocation8 + $0xb4] sm:$0xf]
    %v1423 = vld [vmem:[#allocation8 + $0xb8] sm:$0xf]
    %v1424 = vld [vmem:[#allocation8 + $0xbc] sm:$0xf]
    %v1425 = vld [vmem:[#allocation8 + $0xc0] sm:$0xf]
    %v1426 = vld [vmem:[#allocation8 + $0xc4] sm:$0xf]
    %v1427 = vld [vmem:[#allocation8 + $0xc8] sm:$0xf]
    %v1428 = vld [vmem:[#allocation8 + $0xcc] sm:$0xf]
    %v1429 = vld [vmem:[#allocation8 + $0xd0] sm:$0xf]
    %v1430 = vld [vmem:[#allocation8 + $0xd4] sm:$0xf]
    %v1431 = vld [vmem:[#allocation8 + $0xd8] sm:$0xf]
    %v1432 = vld [vmem:[#allocation8 + $0xdc] sm:$0xf]
    %v1433 = vld [vmem:[#allocation8 + $0xe0] sm:$0xf]
    %v1434 = vld [vmem:[#allocation8 + $0xe4] sm:$0xf]
    %v1435 = vld [vmem:[#allocation8 + $0xe8] sm:$0xf]
    %v1436 = vld [vmem:[#allocation8 + $0xec] sm:$0xf]
    %v1437 = vld [vmem:[#allocation8 + $0xf0] sm:$0xf]
    %v1438 = vld [vmem:[#allocation8 + $0xf4] sm:$0xf]
    %v1439 = vld [vmem:[#allocation8 + $0xf8] sm:$0xf]
    %v1440 = vld [vmem:[#allocation8 + $0xfc] sm:$0xf]
    %v1441 = vld [vmem:[%s6] sm:$0x1]
    %v1443 = vlaneseq
    %v1444 = vshrl.u32 %v1443, 7
    %v1445 = vsub.s32 0, %v1444
    %v1446 = vrot.slane %v1441, %v1445
    %v1512 = vunpack.c.l.b16 %v1377
    %v1513 = vunpack.c.l.b16 %v1378
    %v1514 = vunpack.c.l.b16 %v1379
    %v1515 = vunpack.c.l.b16 %v1380
    %v1516 = vunpack.c.l.b16 %v1381
    %v1517 = vunpack.c.l.b16 %v1382
    %v1518 = vunpack.c.l.b16 %v1383
    %v1519 = vunpack.c.l.b16 %v1384
    %v1520 = vunpack.c.l.b16 %v1385
    %v1521 = vunpack.c.l.b16 %v1386
    %v1522 = vunpack.c.l.b16 %v1387
    %v1523 = vunpack.c.l.b16 %v1388
    %v1524 = vunpack.c.l.b16 %v1389
    %v1525 = vunpack.c.l.b16 %v1390
    %v1526 = vunpack.c.l.b16 %v1391
    %v1527 = vunpack.c.l.b16 %v1392
    %v1528 = vunpack.c.l.b16 %v1393
    %v1529 = vunpack.c.l.b16 %v1394
    %v1530 = vunpack.c.l.b16 %v1395
    %v1531 = vunpack.c.l.b16 %v1396
    %v1532 = vunpack.c.l.b16 %v1397
    %v1533 = vunpack.c.l.b16 %v1398
    %v1534 = vunpack.c.l.b16 %v1399
    %v1535 = vunpack.c.l.b16 %v1400
    %v1536 = vunpack.c.l.b16 %v1401
    %v1537 = vunpack.c.l.b16 %v1402
    %v1538 = vunpack.c.l.b16 %v1403
    %v1539 = vunpack.c.l.b16 %v1404
    %v1540 = vunpack.c.l.b16 %v1405
    %v1541 = vunpack.c.l.b16 %v1406
    %v1542 = vunpack.c.l.b16 %v1407
    %v1543 = vunpack.c.l.b16 %v1408
    %v1544 = vunpack.c.l.b16 %v1409
    %v1545 = vunpack.c.l.b16 %v1410
    %v1546 = vunpack.c.l.b16 %v1411
    %v1547 = vunpack.c.l.b16 %v1412
    %v1548 = vunpack.c.l.b16 %v1413
    %v1549 = vunpack.c.l.b16 %v1414
    %v1550 = vunpack.c.l.b16 %v1415
    %v1551 = vunpack.c.l.b16 %v1416
    %v1552 = vunpack.c.l.b16 %v1417
    %v1553 = vunpack.c.l.b16 %v1418
    %v1554 = vunpack.c.l.b16 %v1419
    %v1555 = vunpack.c.l.b16 %v1420
    %v1556 = vunpack.c.l.b16 %v1421
    %v1557 = vunpack.c.l.b16 %v1422
    %v1558 = vunpack.c.l.b16 %v1423
    %v1559 = vunpack.c.l.b16 %v1424
    %v1560 = vunpack.c.l.b16 %v1425
    %v1561 = vunpack.c.l.b16 %v1426
    %v1562 = vunpack.c.l.b16 %v1427
    %v1563 = vunpack.c.l.b16 %v1428
    %v1564 = vunpack.c.l.b16 %v1429
    %v1565 = vunpack.c.l.b16 %v1430
    %v1566 = vunpack.c.l.b16 %v1431
    %v1567 = vunpack.c.l.b16 %v1432
    %v1568 = vunpack.c.l.b16 %v1433
    %v1569 = vunpack.c.l.b16 %v1434
    %v1570 = vunpack.c.l.b16 %v1435
    %v1571 = vunpack.c.l.b16 %v1436
    %v1572 = vunpack.c.l.b16 %v1437
    %v1573 = vunpack.c.l.b16 %v1438
    %v1574 = vunpack.c.l.b16 %v1439
    %v1575 = vunpack.c.l.b16 %v1440
    %v1576 = vpack.c.b16 %v1513, %v1512
    %v1577 = vpack.c.b16 %v1515, %v1514
    %v1578 = vpack.c.b16 %v1517, %v1516
    %v1579 = vpack.c.b16 %v1519, %v1518
    %v1580 = vpack.c.b16 %v1521, %v1520
    %v1581 = vpack.c.b16 %v1523, %v1522
    %v1582 = vpack.c.b16 %v1525, %v1524
    %v1583 = vpack.c.b16 %v1527, %v1526
    %v1584 = vpack.c.b16 %v1529, %v1528
    %v1585 = vpack.c.b16 %v1531, %v1530
    %v1586 = vpack.c.b16 %v1533, %v1532
    %v1587 = vpack.c.b16 %v1535, %v1534
    %v1588 = vpack.c.b16 %v1537, %v1536
    %v1589 = vpack.c.b16 %v1539, %v1538
    %v1590 = vpack.c.b16 %v1541, %v1540
    %v1591 = vpack.c.b16 %v1543, %v1542
    %v1592 = vpack.c.b16 %v1545, %v1544
    %v1593 = vpack.c.b16 %v1547, %v1546
    %v1594 = vpack.c.b16 %v1549, %v1548
    %v1595 = vpack.c.b16 %v1551, %v1550
    %v1596 = vpack.c.b16 %v1553, %v1552
    %v1597 = vpack.c.b16 %v1555, %v1554
    %v1598 = vpack.c.b16 %v1557, %v1556
    %v1599 = vpack.c.b16 %v1559, %v1558
    %v1600 = vpack.c.b16 %v1561, %v1560
    %v1601 = vpack.c.b16 %v1563, %v1562
    %v1602 = vpack.c.b16 %v1565, %v1564
    %v1603 = vpack.c.b16 %v1567, %v1566
    %v1604 = vpack.c.b16 %v1569, %v1568
    %v1605 = vpack.c.b16 %v1571, %v1570
    %v1606 = vpack.c.b16 %v1573, %v1572
    %v1607 = vpack.c.b16 %v1575, %v1574
    %1640 = vmatprep.subr.bf16.mxu0 0
    %1641 = vmatpush1.bf16.msra.mxu0 %v1576
    %1642 = vmatprep.subr.bf16.mxu0 0
    %1643 = vmatpush1.bf16.msra.mxu0 %v1577
    %1644 = vmatprep.subr.bf16.mxu0 0
    %1645 = vmatpush1.bf16.msra.mxu0 %v1578
    %1646 = vmatprep.subr.bf16.mxu0 0
    %1647 = vmatpush1.bf16.msra.mxu0 %v1579
    %1648 = vmatprep.subr.bf16.mxu0 0
    %1649 = vmatpush1.bf16.msra.mxu0 %v1580
    %1650 = vmatprep.subr.bf16.mxu0 0
    %1651 = vmatpush1.bf16.msra.mxu0 %v1581
    %1652 = vmatprep.subr.bf16.mxu0 0
    %1653 = vmatpush1.bf16.msra.mxu0 %v1582
    %1654 = vmatprep.subr.bf16.mxu0 0
    %1655 = vmatpush1.bf16.msra.mxu0 %v1583
    %1656 = vmatprep.subr.bf16.mxu0 0
    %1657 = vmatpush1.bf16.msra.mxu0 %v1584
    %1658 = vmatprep.subr.bf16.mxu0 0
    %1659 = vmatpush1.bf16.msra.mxu0 %v1585
    %1660 = vmatprep.subr.bf16.mxu0 0
    %1661 = vmatpush1.bf16.msra.mxu0 %v1586
    %1662 = vmatprep.subr.bf16.mxu0 0
    %1663 = vmatpush1.bf16.msra.mxu0 %v1587
    %1664 = vmatprep.subr.bf16.mxu0 0
    %1665 = vmatpush1.bf16.msra.mxu0 %v1588
    %1666 = vmatprep.subr.bf16.mxu0 0
    %1667 = vmatpush1.bf16.msra.mxu0 %v1589
    %1668 = vmatprep.subr.bf16.mxu0 0
    %1669 = vmatpush1.bf16.msra.mxu0 %v1590
    %1670 = vmatprep.subr.bf16.mxu0 0
    %1671 = vmatpush1.bf16.msra.mxu0 %v1591
    %1672 = vmatprep.mubr.bf16.mxu0 %v1374
    %1673 = vmatmul.mubr.bf16.gmra.mrb[0].mxu0 %v1373
    %v1674 = vpop.f32.mrb[0].mxu0
    %v1675 = vadd.f32 %v1446, %v1674
    %v1676 = vpop.f32.mrb[0].mxu0
    %v1677 = vpop.f32.mrb[0].mxu0
    %v1678 = vadd.f32 %v1446, %v1677
    %v1679 = vpop.f32.mrb[0].mxu0
    %1680 = vdwg.mxu0
    %1681 = vmatprep.subr.bf16.mxu0 0
    %1682 = vmatpush1.bf16.msra.mxu0 %v1592
    %1683 = vmatprep.subr.bf16.mxu0 0
    %1684 = vmatpush1.bf16.msra.mxu0 %v1593
    %1685 = vmatprep.subr.bf16.mxu0 0
    %1686 = vmatpush1.bf16.msra.mxu0 %v1594
    %1687 = vmatprep.subr.bf16.mxu0 0
    %1688 = vmatpush1.bf16.msra.mxu0 %v1595
    %1689 = vmatprep.subr.bf16.mxu0 0
    %1690 = vmatpush1.bf16.msra.mxu0 %v1596
    %1691 = vmatprep.subr.bf16.mxu0 0
    %1692 = vmatpush1.bf16.msra.mxu0 %v1597
    %1693 = vmatprep.subr.bf16.mxu0 0
    %1694 = vmatpush1.bf16.msra.mxu0 %v1598
    %1695 = vmatprep.subr.bf16.mxu0 0
    %1696 = vmatpush1.bf16.msra.mxu0 %v1599
    %1697 = vmatprep.subr.bf16.mxu0 0
    %1698 = vmatpush1.bf16.msra.mxu0 %v1600
    %1699 = vmatprep.subr.bf16.mxu0 0
    %1700 = vmatpush1.bf16.msra.mxu0 %v1601
    %1701 = vmatprep.subr.bf16.mxu0 0
    %1702 = vmatpush1.bf16.msra.mxu0 %v1602
    %1703 = vmatprep.subr.bf16.mxu0 0
    %1704 = vmatpush1.bf16.msra.mxu0 %v1603
    %1705 = vmatprep.subr.bf16.mxu0 0
    %1706 = vmatpush1.bf16.msra.mxu0 %v1604
    %1707 = vmatprep.subr.bf16.mxu0 0
    %1708 = vmatpush1.bf16.msra.mxu0 %v1605
    %1709 = vmatprep.subr.bf16.mxu0 0
    %1710 = vmatpush1.bf16.msra.mxu0 %v1606
    %1711 = vmatprep.subr.bf16.mxu0 0
    %1712 = vmatpush1.bf16.msra.mxu0 %v1607
    %1713 = vmatprep.mubr.bf16.mxu0 %v1376
    %1714 = vmatmul.mubr.bf16.gmra.mrb[0].mxu0 %v1375
    %v1715 = vpop.f32.mrb[0].mxu0
    %v1716 = vadd.f32 %v1675, %v1715
    %v1717 = vpop.f32.mrb[0].mxu0
    %v1718 = vpop.f32.mrb[0].mxu0
    %v1719 = vadd.f32 %v1678, %v1718
    %v1720 = vpop.f32.mrb[0].mxu0
    %1721 = vdwg.mxu0
    %v1722 = vmax.f32 %v1716, 0.0
    %v1723 = vmax.f32 %v1719, 0.0
    %1724 = vst [vmem:[#allocation10] sm:$0xff] %v1722
    %1725 = vst [vmem:[#allocation10 + $0x8] sm:$0xff] %v1723
    // Predicated region
    $region46: #{tpu_custom_call.1} parent=1 // pred_check
      _
    $region47: #{tpu_custom_call.1} parent=1 // pred_check_branch
      %1727 = sbr.rel (0) target = $region49
    $region48: #{tpu_custom_call.1} parent=1 // pred_region
      %s1729 = ssub.s32 256, 256
      %1730 = vsyncadd [#allocation4], %s1729
      %s1731 = sshll.u32 [#allocation10], 4
      %s1732 = int_to_ptr.vmem [resolvable:$true] %s1731
      %1737 = dma.vmem_to_hbm [thread:$0]  %s1732, 256, %s7, [#allocation4], 128, 128, 8
    $region49: #{tpu_custom_call.1} parent=1 // pred_fallthru
      _
    // Predicated region
    $region50: #{tpu_custom_call.1} parent=1 // pred_check
      _
    $region51: #{tpu_custom_call.1} parent=1 // pred_check_branch
      %1739 = sbr.rel (0) target = $region53
    $region52: #{tpu_custom_call.1} parent=1 // pred_region
      %1740 = dma.done [#allocation4], 256
    $region53: #{tpu_custom_call.1} parent=1 // pred_fallthru
      _
    %1741 = vsyncpa [#allocation3], 1
    %1742 = vsyncpa [#allocation6], 1
    %1743 = vsyncpa [#allocation9], 1
    %1744 = vsyncpa [#allocation4], 1

// kernel: tpu_custom_call.1
$region0: #{tpu_custom_call.1}
  #allocation0 [shape = 'u32[]', space=smem, size = 0x4, offset = 0x4, fixed_abs, tag = 'smem constant byte address 0x4 - core index']
  #allocation1 [shape = 'u32[144,128]{1,0:T(1,128)}', space=vmem, size = 0x12000, scoped, tag = 'internal scratch']
  %s0 = inlined_call_operand.hbm [shape: bf16[16,128], index: 0, kind: input, shape index: {}]
  %s1 = inlined_call_operand.hbm [shape: bf16[128,512], index: 1, kind: input, shape index: {}]
  %s2 = inlined_call_operand.vmem [shape: f32[1,512], index: 2, kind: input, shape index: {}]
  %s3 = inlined_call_operand.hbm [shape: bf16[512,512], index: 3, kind: input, shape index: {}]
  %s4 = inlined_call_operand.vmem [shape: f32[1,512], index: 4, kind: input, shape index: {}]
  %s5 = inlined_call_operand.hbm [shape: bf16[512,128], index: 5, kind: input, shape index: {}]
  %s6 = inlined_call_operand.vmem [shape: f32[1,128], index: 6, kind: input, shape index: {}]
  %s7 = inlined_call_operand.hbm [shape: f32[16,128], index: 7, kind: output, shape index: {}]
  %s8 = sld [smem:[#allocation0]]
  $region54: #{tpu_custom_call.1} parent=0
    _
  %s10 = ssub.s32 1, %s8
  %s11 = scalar_select 0, %s10, %s8
  $region1: #{tpu_custom_call.1} parent=0
    #allocation2 [shape = 'u8[4096]{0}', space=vmem, size = 0x1000, scoped, tag = 'input window, operand 0, single buffered']
    #allocation3 [shape = 's32[1]{0}', space=sflag, size = 0x4, scoped, tag = 'scoped memory for tpu_custom_call.1']
    #allocation4 [shape = 's32[1]{0}', space=sflag, size = 0x4, scoped, tag = 'scoped memory for tpu_custom_call.1']
    #allocation5 [shape = 'u8[131072]{0}', space=vmem, size = 0x20000, scoped, tag = 'input window, operand 1, single buffered']
    #allocation6 [shape = 's32[1]{0}', space=sflag, size = 0x4, scoped, tag = 'scoped memory for tpu_custom_call.1']
    #allocation7 [shape = 'u8[524288]{0}', space=vmem, size = 0x80000, scoped, tag = 'input window, operand 3, single buffered']
    #allocation8 [shape = 'u8[131072]{0}', space=vmem, size = 0x20000, scoped, tag = 'input window, operand 5, single buffered']
    #allocation9 [shape = 's32[1]{0}', space=sflag, size = 0x4, scoped, tag = 'scoped memory for tpu_custom_call.1']
    #allocation10 [shape = 'u8[8192]{0}', space=vmem, size = 0x2000, scoped, tag = 'output window, operand 0, single buffered']
    %12 = vsyncpa [#allocation3], 0
    %13 = vsyncpa [#allocation6], 0
    %14 = vsyncpa [#allocation9], 0
    %15 = vsyncpa [#allocation4], 0
    // Predicated region
    $region2: #{tpu_custom_call.1} parent=1 // pred_check
      _
    $region3: #{tpu_custom_call.1} parent=1 // pred_check_branch
      %17 = sbr.rel (0) target = $region5
    $region4: #{tpu_custom_call.1} parent=1 // pred_region
      %s19 = ssub.s32 128, 128
      %20 = vsyncadd [#allocation3], %s19
      %s21 = sshll.u32 [#allocation2], 4
      %s22 = int_to_ptr.vmem [resolvable:$true] %s21
      %27 = dma.hbm_to_vmem [thread:$0]  %s0, 128, %s22, [#allocation3], 64, 64, 4
    $region5: #{tpu_custom_call.1} parent=1 // pred_fallthru
      _
    // Predicated region
    $region6: #{tpu_custom_call.1} parent=1 // pred_check
      _
    $region7: #{tpu_custom_call.1} parent=1 // pred_check_branch
      %29 = sbr.rel (0) target = $region9
    $region8: #{tpu_custom_call.1} parent=1 // pred_region
      %s31 = ssub.s32 4096, 4096
      %32 = vsyncadd [#allocation6], %s31
      %s33 = sshll.u32 [#allocation5], 4
      %s34 = int_to_ptr.vmem [resolvable:$true] %s33
      %39 = dma.hbm_to_vmem [thread:$0]  %s1, 4096, %s34, [#allocation6], 256, 256, 16
    $region9: #{tpu_custom_call.1} parent=1 // pred_fallthru
      _
    // Predicated region
    $region10: #{tpu_custom_call.1} parent=1 // pred_check
      _
    $region11: #{tpu_custom_call.1} parent=1 // pred_check_branch
      %41 = sbr.rel (0) target = $region13
    $region12: #{tpu_custom_call.1} parent=1 // pred_region
      _
    $region13: #{tpu_custom_call.1} parent=1 // pred_fallthru
      _
    // Predicated region
    $region14: #{tpu_custom_call.1} parent=1 // pred_check
      _
    $region15: #{tpu_custom_call.1} parent=1 // pred_check_branch
      %43 = sbr.rel (0) target = $region17
    $region16: #{tpu_custom_call.1} parent=1 // pred_region
      %s45 = ssub.s32 16384, 16384
      %46 = vsyncadd [#allocation6], %s45
      %s47 = sshll.u32 [#allocation7], 4
      %s48 = int_to_ptr.vmem [resolvable:$true] %s47
      %53 = dma.hbm_to_vmem [thread:$0]  %s3, 16384, %s48, [#allocation6], 256, 256, 16
    $region17: #{tpu_custom_call.1} parent=1 // pred_fallthru
      _
    // Predicated region
    $region18: #{tpu_custom_call.1} parent=1 // pred_check
      _
    $region19: #{tpu_custom_call.1} parent=1 // pred_check_branch
      %55 = sbr.rel (0) target = $region21
    $region20: #{tpu_custom_call.1} parent=1 // pred_region
      _
    $region21: #{tpu_custom_call.1} parent=1 // pred_fallthru
      _
    // Predicated region
    $region22: #{tpu_custom_call.1} parent=1 // pred_check
      _
    $region23: #{tpu_custom_call.1} parent=1 // pred_check_branch
      %57 = sbr.rel (0) target = $region25
    $region24: #{tpu_custom_call.1} parent=1 // pred_region
      %s59 = ssub.s32 4096, 4096
      %60 = vsyncadd [#allocation9], %s59
      %s61 = sshll.u32 [#allocation8], 4
      %s62 = int_to_ptr.vmem [resolvable:$true] %s61
      %67 = dma.hbm_to_vmem [thread:$0]  %s5, 4096, %s62, [#allocation9], 64, 64, 4
    $region25: #{tpu_custom_call.1} parent=1 // pred_fallthru
      _
    // Predicated region
    $region26: #{tpu_custom_call.1} parent=1 // pred_check
      _
    $region27: #{tpu_custom_call.1} parent=1 // pred_check_branch
      %69 = sbr.rel (0) target = $region29
    $region28: #{tpu_custom_call.1} parent=1 // pred_region
      _
    $region29: #{tpu_custom_call.1} parent=1 // pred_fallthru
      _
    // Predicated region
    $region30: #{tpu_custom_call.1} parent=1 // pred_check
      _
    $region31: #{tpu_custom_call.1} parent=1 // pred_check_branch
      %71 = sbr.rel (0) target = $region33
    $region32: #{tpu_custom_call.1} parent=1 // pred_region
      %72 = dma.done [#allocation3], 128
    $region33: #{tpu_custom_call.1} parent=1 // pred_fallthru
      _
    // Predicated region
    $region34: #{tpu_custom_call.1} parent=1 // pred_check
      _
    $region35: #{tpu_custom_call.1} parent=1 // pred_check_branch
      %74 = sbr.rel (0) target = $region37
    $region36: #{tpu_custom_call.1} parent=1 // pred_region
      %75 = dma.done [#allocation6], 4096
    $region37: #{tpu_custom_call.1} parent=1 // pred_fallthru
      _
    // Predicated region
    $region38: #{tpu_custom_call.1} parent=1 // pred_check
      _
    $region39: #{tpu_custom_call.1} parent=1 // pred_check_branch
      %77 = sbr.rel (0) target = $region41
    $region40: #{tpu_custom_call.1} parent=1 // pred_region
      %78 = dma.done [#allocation6], 16384
    $region41: #{tpu_custom_call.1} parent=1 // pred_fallthru
      _
    // Predicated region
    $region42: #{tpu_custom_call.1} parent=1 // pred_check
      _
    $region43: #{tpu_custom_call.1} parent=1 // pred_check_branch
      %80 = sbr.rel (0) target = $region45
    $region44: #{tpu_custom_call.1} parent=1 // pred_region
      %81 = dma.done [#allocation9], 4096
    $region45: #{tpu_custom_call.1} parent=1 // pred_fallthru
      _
    %v83 = vld [vmem:[#allocation2] sm:$0xf]
    %v84 = vld [vmem:[#allocation2 + $0x4] sm:$0xf]
    %v85 = vld [vmem:[#allocation5] sm:$0xff]
    %v86 = vld [vmem:[#allocation5 + $0x8] sm:$0xff]
    %v87 = vld [vmem:[#allocation5 + $0x10] sm:$0xff]
    %v88 = vld [vmem:[#allocation5 + $0x18] sm:$0xff]
    %v89 = vld [vmem:[#allocation5 + $0x20] sm:$0xff]
    %v90 = vld [vmem:[#allocation5 + $0x28] sm:$0xff]
    %v91 = vld [vmem:[#allocation5 + $0x30] sm:$0xff]
    %v92 = vld [vmem:[#allocation5 + $0x38] sm:$0xff]
    %v93 = vld [vmem:[#allocation5 + $0x40] sm:$0xff]
    %v94 = vld [vmem:[#allocation5 + $0x48] sm:$0xff]
    %v95 = vld [vmem:[#allocation5 + $0x50] sm:$0xff]
    %v96 = vld [vmem:[#allocation5 + $0x58] sm:$0xff]
    %v97 = vld [vmem:[#allocation5 + $0x60] sm:$0xff]
    %v98 = vld [vmem:[#allocation5 + $0x68] sm:$0xff]
    %v99 = vld [vmem:[#allocation5 + $0x70] sm:$0xff]
    %v100 = vld [vmem:[#allocation5 + $0x78] sm:$0xff]
    %v101 = vld [vmem:[#allocation5 + $0x80] sm:$0xff]
    %v102 = vld [vmem:[#allocation5 + $0x88] sm:$0xff]
    %v103 = vld [vmem:[#allocation5 + $0x90] sm:$0xff]
    %v104 = vld [vmem:[#allocation5 + $0x98] sm:$0xff]
    %v105 = vld [vmem:[#allocation5 + $0xa0] sm:$0xff]
    %v106 = vld [vmem:[#allocation5 + $0xa8] sm:$0xff]
    %v107 = vld [vmem:[#allocation5 + $0xb0] sm:$0xff]
    %v108 = vld [vmem:[#allocation5 + $0xb8] sm:$0xff]
    %v109 = vld [vmem:[#allocation5 + $0xc0] sm:$0xff]
    %v110 = vld [vmem:[#allocation5 + $0xc8] sm:$0xff]
    %v111 = vld [vmem:[#allocation5 + $0xd0] sm:$0xff]
    %v112 = vld [vmem:[#allocation5 + $0xd8] sm:$0xff]
    %v113 = vld [vmem:[#allocation5 + $0xe0] sm:$0xff]
    %v114 = vld [vmem:[#allocation5 + $0xe8] sm:$0xff]
    %v115 = vld [vmem:[#allocation5 + $0xf0] sm:$0xff]
    %v116 = vld [vmem:[#allocation5 + $0xf8] sm:$0xff]
    %v117 = vld [vmem:[%s2] sm:$0xf]
    %v119 = vlaneseq
    %v120 = vshrl.u32 %v119, 7
    %v121 = vsub.s32 0, %v120
    %v122 = vrot.slane %v117, %v121
    %v123 = vlaneseq
    %v124 = vshrl.u32 %v123, 7
    %v125 = vsub.s32 1, %v124
    %v126 = vrot.slane %v117, %v125
    %v127 = vlaneseq
    %v128 = vshrl.u32 %v127, 7
    %v129 = vsub.s32 2, %v128
    %v130 = vrot.slane %v117, %v129
    %v131 = vlaneseq
    %v132 = vshrl.u32 %v131, 7
    %v133 = vsub.s32 3, %v132
    %v134 = vrot.slane %v117, %v133
    %v141 = vunpack.c.l.b16 %v83
    %v142 = vunpack.c.l.b16 %v84
    %v143 = vpack.c.b16 %v142, %v141
    %v177 = vunpack.c.l.b16 %v85
    %v178 = vunpack.c.h.b16 %v85
    %v179 = vunpack.c.l.b16 %v86
    %v180 = vunpack.c.h.b16 %v86
    %v181 = vunpack.c.l.b16 %v87
    %v182 = vunpack.c.h.b16 %v87
    %v183 = vunpack.c.l.b16 %v88
    %v184 = vunpack.c.h.b16 %v88
    %v185 = vunpack.c.l.b16 %v89
    %v186 = vunpack.c.h.b16 %v89
    %v187 = vunpack.c.l.b16 %v90
    %v188 = vunpack.c.h.b16 %v90
    %v189 = vunpack.c.l.b16 %v91
    %v190 = vunpack.c.h.b16 %v91
    %v191 = vunpack.c.l.b16 %v92
    %v192 = vunpack.c.h.b16 %v92
    %v193 = vunpack.c.l.b16 %v93
    %v194 = vunpack.c.h.b16 %v93
    %v195 = vunpack.c.l.b16 %v94
    %v196 = vunpack.c.h.b16 %v94
    %v197 = vunpack.c.l.b16 %v95
    %v198 = vunpack.c.h.b16 %v95
    %v199 = vunpack.c.l.b16 %v96
    %v200 = vunpack.c.h.b16 %v96
    %v201 = vunpack.c.l.b16 %v97
    %v202 = vunpack.c.h.b16 %v97
    %v203 = vunpack.c.l.b16 %v98
    %v204 = vunpack.c.h.b16 %v98
    %v205 = vunpack.c.l.b16 %v99
    %v206 = vunpack.c.h.b16 %v99
    %v207 = vunpack.c.l.b16 %v100
    %v208 = vunpack.c.h.b16 %v100
    %v209 = vunpack.c.l.b16 %v101
    %v210 = vunpack.c.h.b16 %v101
    %v211 = vunpack.c.l.b16 %v102
    %v212 = vunpack.c.h.b16 %v102
    %v213 = vunpack.c.l.b16 %v103
    %v214 = vunpack.c.h.b16 %v103
    %v215 = vunpack.c.l.b16 %v104
    %v216 = vunpack.c.h.b16 %v104
    %v217 = vunpack.c.l.b16 %v105
    %v218 = vunpack.c.h.b16 %v105
    %v219 = vunpack.c.l.b16 %v106
    %v220 = vunpack.c.h.b16 %v106
    %v221 = vunpack.c.l.b16 %v107
    %v222 = vunpack.c.h.b16 %v107
    %v223 = vunpack.c.l.b16 %v108
    %v224 = vunpack.c.h.b16 %v108
    %v225 = vunpack.c.l.b16 %v109
    %v226 = vunpack.c.h.b16 %v109
    %v227 = vunpack.c.l.b16 %v110
    %v228 = vunpack.c.h.b16 %v110
    %v229 = vunpack.c.l.b16 %v111
    %v230 = vunpack.c.h.b16 %v111
    %v231 = vunpack.c.l.b16 %v112
    %v232 = vunpack.c.h.b16 %v112
    %v233 = vunpack.c.l.b16 %v113
    %v234 = vunpack.c.h.b16 %v113
    %v235 = vunpack.c.l.b16 %v114
    %v236 = vunpack.c.h.b16 %v114
    %v237 = vunpack.c.l.b16 %v115
    %v238 = vunpack.c.h.b16 %v115
    %v239 = vunpack.c.l.b16 %v116
    %v240 = vunpack.c.h.b16 %v116
    %v241 = vpack.c.b16 %v181, %v177
    %v242 = vpack.c.b16 %v182, %v178
    %v243 = vpack.c.b16 %v183, %v179
    %v244 = vpack.c.b16 %v184, %v180
    %v245 = vpack.c.b16 %v189, %v185
    %v246 = vpack.c.b16 %v190, %v186
    %v247 = vpack.c.b16 %v191, %v187
    %v248 = vpack.c.b16 %v192, %v188
    %v249 = vpack.c.b16 %v197, %v193
    %v250 = vpack.c.b16 %v198, %v194
    %v251 = vpack.c.b16 %v199, %v195
    %v252 = vpack.c.b16 %v200, %v196
    %v253 = vpack.c.b16 %v205, %v201
    %v254 = vpack.c.b16 %v206, %v202
    %v255 = vpack.c.b16 %v207, %v203
    %v256 = vpack.c.b16 %v208, %v204
    %v257 = vpack.c.b16 %v213, %v209
    %v258 = vpack.c.b16 %v214, %v210
    %v259 = vpack.c.b16 %v215, %v211
    %v260 = vpack.c.b16 %v216, %v212
    %v261 = vpack.c.b16 %v221, %v217
    %v262 = vpack.c.b16 %v222, %v218
    %v263 = vpack.c.b16 %v223, %v219
    %v264 = vpack.c.b16 %v224, %v220
    %v265 = vpack.c.b16 %v229, %v225
    %v266 = vpack.c.b16 %v230, %v226
    %v267 = vpack.c.b16 %v231, %v227
    %v268 = vpack.c.b16 %v232, %v228
    %v269 = vpack.c.b16 %v237, %v233
    %v270 = vpack.c.b16 %v238, %v234
    %v271 = vpack.c.b16 %v239, %v235
    %v272 = vpack.c.b16 %v240, %v236
    %305 = vmatprep.subr.bf16.mxu0 %v242
    %306 = vmatpush1.bf16.msra.mxu0 %v241
    %307 = vmatprep.subr.bf16.mxu0 %v246
    %308 = vmatpush1.bf16.msra.mxu0 %v245
    %309 = vmatprep.subr.bf16.mxu0 %v250
    %310 = vmatpush1.bf16.msra.mxu0 %v249
    %311 = vmatprep.subr.bf16.mxu0 %v254
    %312 = vmatpush1.bf16.msra.mxu0 %v253
    %313 = vmatprep.subr.bf16.mxu0 %v258
    %314 = vmatpush1.bf16.msra.mxu0 %v257
    %315 = vmatprep.subr.bf16.mxu0 %v262
    %316 = vmatpush1.bf16.msra.mxu0 %v261
    %317 = vmatprep.subr.bf16.mxu0 %v266
    %318 = vmatpush1.bf16.msra.mxu0 %v265
    %319 = vmatprep.subr.bf16.mxu0 %v270
    %320 = vmatpush1.bf16.msra.mxu0 %v269
    %321 = vmatprep.subr.bf16.mxu0 0
    %322 = vmatpush1.bf16.msra.mxu0 0
    %323 = vmatprep.subr.bf16.mxu0 0
    %324 = vmatpush1.bf16.msra.mxu0 0
    %325 = vmatprep.subr.bf16.mxu0 0
    %326 = vmatpush1.bf16.msra.mxu0 0
    %327 = vmatprep.subr.bf16.mxu0 0
    %328 = vmatpush1.bf16.msra.mxu0 0
    %329 = vmatprep.subr.bf16.mxu0 0
    %330 = vmatpush1.bf16.msra.mxu0 0
    %331 = vmatprep.subr.bf16.mxu0 0
    %332 = vmatpush1.bf16.msra.mxu0 0
    %333 = vmatprep.subr.bf16.mxu0 0
    %334 = vmatpush1.bf16.msra.mxu0 0
    %335 = vmatprep.subr.bf16.mxu0 0
    %336 = vmatpush1.bf16.msra.mxu0 0
    %337 = vmatprep.mubr.bf16.mxu0 0
    %338 = vmatmul.mubr.bf16.gmra.mrb[0].mxu0 %v143
    %v339 = vpop.f32.mrb[0].mxu0
    %v340 = vadd.f32 %v122, %v339
    %v341 = vpop.f32.mrb[0].mxu0
    %v342 = vadd.f32 %v126, %v341
    %v343 = vpop.f32.mrb[0].mxu0
    %v344 = vadd.f32 %v122, %v343
    %v345 = vpop.f32.mrb[0].mxu0
    %v346 = vadd.f32 %v126, %v345
    %347 = vdwg.mxu0
    %348 = vmatprep.subr.bf16.mxu0 %v244
    %349 = vmatpush1.bf16.msra.mxu0 %v243
    %350 = vmatprep.subr.bf16.mxu0 %v248
    %351 = vmatpush1.bf16.msra.mxu0 %v247
    %352 = vmatprep.subr.bf16.mxu0 %v252
    %353 = vmatpush1.bf16.msra.mxu0 %v251
    %354 = vmatprep.subr.bf16.mxu0 %v256
    %355 = vmatpush1.bf16.msra.mxu0 %v255
    %356 = vmatprep.subr.bf16.mxu0 %v260
    %357 = vmatpush1.bf16.msra.mxu0 %v259
    %358 = vmatprep.subr.bf16.mxu0 %v264
    %359 = vmatpush1.bf16.msra.mxu0 %v263
    %360 = vmatprep.subr.bf16.mxu0 %v268
    %361 = vmatpush1.bf16.msra.mxu0 %v267
    %362 = vmatprep.subr.bf16.mxu0 %v272
    %363 = vmatpush1.bf16.msra.mxu0 %v271
    %364 = vmatprep.subr.bf16.mxu0 0
    %365 = vmatpush1.bf16.msra.mxu0 0
    %366 = vmatprep.subr.bf16.mxu0 0
    %367 = vmatpush1.bf16.msra.mxu0 0
    %368 = vmatprep.subr.bf16.mxu0 0
    %369 = vmatpush1.bf16.msra.mxu0 0
    %370 = vmatprep.subr.bf16.mxu0 0
    %371 = vmatpush1.bf16.msra.mxu0 0
    %372 = vmatprep.subr.bf16.mxu0 0
    %373 = vmatpush1.bf16.msra.mxu0 0
    %374 = vmatprep.subr.bf16.mxu0 0
    %375 = vmatpush1.bf16.msra.mxu0 0
    %376 = vmatprep.subr.bf16.mxu0 0
    %377 = vmatpush1.bf16.msra.mxu0 0
    %378 = vmatprep.subr.bf16.mxu0 0
    %379 = vmatpush1.bf16.msra.mxu0 0
    %380 = vmatprep.mubr.bf16.mxu0 0
    %381 = vmatmul.mubr.bf16.gmra.mrb[0].mxu0 %v143
    %v382 = vpop.f32.mrb[0].mxu0
    %v383 = vadd.f32 %v130, %v382
    %v384 = vpop.f32.mrb[0].mxu0
    %v385 = vadd.f32 %v134, %v384
    %v386 = vpop.f32.mrb[0].mxu0
    %v387 = vadd.f32 %v130, %v386
    %v388 = vpop.f32.mrb[0].mxu0
    %v389 = vadd.f32 %v134, %v388
    %390 = vdwg.mxu0
    %v391 = vmax.f32 %v340, 0.0
    %v392 = vmax.f32 %v342, 0.0
    %v393 = vmax.f32 %v383, 0.0
    %v394 = vmax.f32 %v385, 0.0
    %v395 = vmax.f32 %v344, 0.0
    %v396 = vmax.f32 %v346, 0.0
    %v397 = vmax.f32 %v387, 0.0
    %v398 = vmax.f32 %v389, 0.0
    %v399 = vpack.c.bf16 %v395, %v391
    %v400 = vpack.c.bf16 %v396, %v392
    %v401 = vpack.c.bf16 %v397, %v393
    %v402 = vpack.c.bf16 %v398, %v394
    %v403 = vld [vmem:[#allocation7] sm:$0xff]
    %v404 = vld [vmem:[#allocation7 + $0x8] sm:$0xff]
    %v405 = vld [vmem:[#allocation7 + $0x10] sm:$0xff]
    %v406 = vld [vmem:[#allocation7 + $0x18] sm:$0xff]
    %v407 = vld [vmem:[#allocation7 + $0x20] sm:$0xff]
    %v408 = vld [vmem:[#allocation7 + $0x28] sm:$0xff]
    %v409 = vld [vmem:[#allocation7 + $0x30] sm:$0xff]
    %v410 = vld [vmem:[#allocation7 + $0x38] sm:$0xff]
    %v411 = vld [vmem:[#allocation7 + $0x40] sm:$0xff]
    %v412 = vld [vmem:[#allocation7 + $0x48] sm:$0xff]
    %v413 = vld [vmem:[#allocation7 + $0x50] sm:$0xff]
    %v414 = vld [vmem:[#allocation7 + $0x58] sm:$0xff]
    %v415 = vld [vmem:[#allocation7 + $0x60] sm:$0xff]
    %v416 = vld [vmem:[#allocation7 + $0x68] sm:$0xff]
    %v417 = vld [vmem:[#allocation7 + $0x70] sm:$0xff]
    %v418 = vld [vmem:[#allocation7 + $0x78] sm:$0xff]
    %v419 = vld [vmem:[#allocation7 + $0x80] sm:$0xff]
    %v420 = vld [vmem:[#allocation7 + $0x88] sm:$0xff]
    %v421 = vld [vmem:[#allocation7 + $0x90] sm:$0xff]
    %v422 = vld [vmem:[#allocation7 + $0x98] sm:$0xff]
    %v423 = vld [vmem:[#allocation7 + $0xa0] sm:$0xff]
    %v424 = vld [vmem:[#allocation7 + $0xa8] sm:$0xff]
    %v425 = vld [vmem:[#allocation7 + $0xb0] sm:$0xff]
    %v426 = vld [vmem:[#allocation7 + $0xb8] sm:$0xff]
    %v427 = vld [vmem:[#allocation7 + $0xc0] sm:$0xff]
    %v428 = vld [vmem:[#allocation7 + $0xc8] sm:$0xff]
    %v429 = vld [vmem:[#allocation7 + $0xd0] sm:$0xff]
    %v430 = vld [vmem:[#allocation7 + $0xd8] sm:$0xff]
    %v431 = vld [vmem:[#allocation7 + $0xe0] sm:$0xff]
    %v432 = vld [vmem:[#allocation7 + $0xe8] sm:$0xff]
    %v433 = vld [vmem:[#allocation7 + $0xf0] sm:$0xff]
    %v434 = vld [vmem:[#allocation7 + $0xf8] sm:$0xff]
    %v435 = vld [vmem:[#allocation7 + $0x100] sm:$0xff]
    %v436 = vld [vmem:[#allocation7 + $0x108] sm:$0xff]
    %v437 = vld [vmem:[#allocation7 + $0x110] sm:$0xff]
    %v438 = vld [vmem:[#allocation7 + $0x118] sm:$0xff]
    %v439 = vld [vmem:[#allocation7 + $0x120] sm:$0xff]
    %v440 = vld [vmem:[#allocation7 + $0x128] sm:$0xff]
    %v441 = vld [vmem:[#allocation7 + $0x130] sm:$0xff]
    %v442 = vld [vmem:[#allocation7 + $0x138] sm:$0xff]
    %v443 = vld [vmem:[#allocation7 + $0x140] sm:$0xff]
    %v444 = vld [vmem:[#allocation7 + $0x148] sm:$0xff]
    %v445 = vld [vmem:[#allocation7 + $0x150] sm:$0xff]
    %v446 = vld [vmem:[#allocation7 + $0x158] sm:$0xff]
    %v447 = vld [vmem:[#allocation7 + $0x160] sm:$0xff]
    %v448 = vld [vmem:[#allocation7 + $0x168] sm:$0xff]
    %v449 = vld [vmem:[#allocation7 + $0x170] sm:$0xff]
    %v450 = vld [vmem:[#allocation7 + $0x178] sm:$0xff]
    %v451 = vld [vmem:[#allocation7 + $0x180] sm:$0xff]
    %v452 = vld [vmem:[#allocation7 + $0x188] sm:$0xff]
    %v453 = vld [vmem:[#allocation7 + $0x190] sm:$0xff]
    %v454 = vld [vmem:[#allocation7 + $0x198] sm:$0xff]
    %v455 = vld [vmem:[#allocation7 + $0x1a0] sm:$0xff]
    %v456 = vld [vmem:[#allocation7 + $0x1a8] sm:$0xff]
    %v457 = vld [vmem:[#allocation7 + $0x1b0] sm:$0xff]
    %v458 = vld [vmem:[#allocation7 + $0x1b8] sm:$0xff]
    %v459 = vld [vmem:[#allocation7 + $0x1c0] sm:$0xff]
    %v460 = vld [vmem:[#allocation7 + $0x1c8] sm:$0xff]
    %v461 = vld [vmem:[#allocation7 + $0x1d0] sm:$0xff]
    %v462 = vld [vmem:[#allocation7 + $0x1d8] sm:$0xff]
    %v463 = vld [vmem:[#allocation7 + $0x1e0] sm:$0xff]
    %v464 = vld [vmem:[#allocation7 + $0x1e8] sm:$0xff]
    %v465 = vld [vmem:[#allocation7 + $0x1f0] sm:$0xff]
    %v466 = vld [vmem:[#allocation7 + $0x1f8] sm:$0xff]
    %v467 = vld [vmem:[#allocation7 + $0x200] sm:$0xff]
    %v468 = vld [vmem:[#allocation7 + $0x208] sm:$0xff]
    %v469 = vld [vmem:[#allocation7 + $0x210] sm:$0xff]
    %v470 = vld [vmem:[#allocation7 + $0x218] sm:$0xff]
    %v471 = vld [vmem:[#allocation7 + $0x220] sm:$0xff]
    %v472 = vld [vmem:[#allocation7 + $0x228] sm:$0xff]
    %v473 = vld [vmem:[#allocation7 + $0x230] sm:$0xff]
    %v474 = vld [vmem:[#allocation7 + $0x238] sm:$0xff]
    %v475 = vld [vmem:[#allocation7 + $0x240] sm:$0xff]
    %v476 = vld [vmem:[#allocation7 + $0x248] sm:$0xff]
    %v477 = vld [vmem:[#allocation7 + $0x250] sm:$0xff]
    %v478 = vld [vmem:[#allocation7 + $0x258] sm:$0xff]
    %v479 = vld [vmem:[#allocation7 + $0x260] sm:$0xff]
    %v480 = vld [vmem:[#allocation7 + $0x268] sm:$0xff]
    %v481 = vld [vmem:[#allocation7 + $0x270] sm:$0xff]
    %v482 = vld [vmem:[#allocation7 + $0x278] sm:$0xff]
    %v483 = vld [vmem:[#allocation7 + $0x280] sm:$0xff]
    %v484 = vld [vmem:[#allocation7 + $0x288] sm:$0xff]
    %v485 = vld [vmem:[#allocation7 + $0x290] sm:$0xff]
    %v486 = vld [vmem:[#allocation7 + $0x298] sm:$0xff]
    %v487 = vld [vmem:[#allocation7 + $0x2a0] sm:$0xff]
    %v488 = vld [vmem:[#allocation7 + $0x2a8] sm:$0xff]
    %v489 = vld [vmem:[#allocation7 + $0x2b0] sm:$0xff]
    %v490 = vld [vmem:[#allocation7 + $0x2b8] sm:$0xff]
    %v491 = vld [vmem:[#allocation7 + $0x2c0] sm:$0xff]
    %v492 = vld [vmem:[#allocation7 + $0x2c8] sm:$0xff]
    %v493 = vld [vmem:[#allocation7 + $0x2d0] sm:$0xff]
    %v494 = vld [vmem:[#allocation7 + $0x2d8] sm:$0xff]
    %v495 = vld [vmem:[#allocation7 + $0x2e0] sm:$0xff]
    %v496 = vld [vmem:[#allocation7 + $0x2e8] sm:$0xff]
    %v497 = vld [vmem:[#allocation7 + $0x2f0] sm:$0xff]
    %v498 = vld [vmem:[#allocation7 + $0x2f8] sm:$0xff]
    %v499 = vld [vmem:[#allocation7 + $0x300] sm:$0xff]
    %v500 = vld [vmem:[#allocation7 + $0x308] sm:$0xff]
    %v501 = vld [vmem:[#allocation7 + $0x310] sm:$0xff]
    %v502 = vld [vmem:[#allocation7 + $0x318] sm:$0xff]
    %v503 = vld [vmem:[#allocation7 + $0x320] sm:$0xff]
    %v504 = vld [vmem:[#allocation7 + $0x328] sm:$0xff]
    %v505 = vld [vmem:[#allocation7 + $0x330] sm:$0xff]
    %v506 = vld [vmem:[#allocation7 + $0x338] sm:$0xff]
    %v507 = vld [vmem:[#allocation7 + $0x340] sm:$0xff]
    %v508 = vld [vmem:[#allocation7 + $0x348] sm:$0xff]
    %v509 = vld [vmem:[#allocation7 + $0x350] sm:$0xff]
    %v510 = vld [vmem:[#allocation7 + $0x358] sm:$0xff]
    %v511 = vld [vmem:[#allocation7 + $0x360] sm:$0xff]
    %v512 = vld [vmem:[#allocation7 + $0x368] sm:$0xff]
    %v513 = vld [vmem:[#allocation7 + $0x370] sm:$0xff]
    %v514 = vld [vmem:[#allocation7 + $0x378] sm:$0xff]
    %v515 = vld [vmem:[#allocation7 + $0x380] sm:$0xff]
    %v516 = vld [vmem:[#allocation7 + $0x388] sm:$0xff]
    %v517 = vld [vmem:[#allocation7 + $0x390] sm:$0xff]
    %v518 = vld [vmem:[#allocation7 + $0x398] sm:$0xff]
    %v519 = vld [vmem:[#allocation7 + $0x3a0] sm:$0xff]
    %v520 = vld [vmem:[#allocation7 + $0x3a8] sm:$0xff]
    %v521 = vld [vmem:[#allocation7 + $0x3b0] sm:$0xff]
    %v522 = vld [vmem:[#allocation7 + $0x3b8] sm:$0xff]
    %v523 = vld [vmem:[#allocation7 + $0x3c0] sm:$0xff]
    %v524 = vld [vmem:[#allocation7 + $0x3c8] sm:$0xff]
    %v525 = vld [vmem:[#allocation7 + $0x3d0] sm:$0xff]
    %v526 = vld [vmem:[#allocation7 + $0x3d8] sm:$0xff]
    %v527 = vld [vmem:[#allocation7 + $0x3e0] sm:$0xff]
    %v528 = vld [vmem:[#allocation7 + $0x3e8] sm:$0xff]
    %v529 = vld [vmem:[#allocation7 + $0x3f0] sm:$0xff]
    %v530 = vld [vmem:[#allocation7 + $0x3f8] sm:$0xff]
    %v531 = vld [vmem:[%s4] sm:$0xf]
    %v533 = vlaneseq
    %v534 = vshrl.u32 %v533, 7
    %v535 = vsub.s32 0, %v534
    %v536 = vrot.slane %v531, %v535
    %v537 = vlaneseq
    %v538 = vshrl.u32 %v537, 7
    %v539 = vsub.s32 1, %v538
    %v540 = vrot.slane %v531, %v539
    %v541 = vlaneseq
    %v542 = vshrl.u32 %v541, 7
    %v543 = vsub.s32 2, %v542
    %v544 = vrot.slane %v531, %v543
    %v545 = vlaneseq
    %v546 = vshrl.u32 %v545, 7
    %v547 = vsub.s32 3, %v546
    %v548 = vrot.slane %v531, %v547
    %v681 = vunpack.c.l.b16 %v403
    %v682 = vunpack.c.h.b16 %v403
    %v683 = vunpack.c.l.b16 %v404
    %v684 = vunpack.c.h.b16 %v404
    %v685 = vunpack.c.l.b16 %v405
    %v686 = vunpack.c.h.b16 %v405
    %v687 = vunpack.c.l.b16 %v406
    %v688 = vunpack.c.h.b16 %v406
    %v689 = vunpack.c.l.b16 %v407
    %v690 = vunpack.c.h.b16 %v407
    %v691 = vunpack.c.l.b16 %v408
    %v692 = vunpack.c.h.b16 %v408
    %v693 = vunpack.c.l.b16 %v409
    %v694 = vunpack.c.h.b16 %v409
    %v695 = vunpack.c.l.b16 %v410
    %v696 = vunpack.c.h.b16 %v410
    %v697 = vunpack.c.l.b16 %v411
    %v698 = vunpack.c.h.b16 %v411
    %v699 = vunpack.c.l.b16 %v412
    %v700 = vunpack.c.h.b16 %v412
    %v701 = vunpack.c.l.b16 %v413
    %v702 = vunpack.c.h.b16 %v413
    %v703 = vunpack.c.l.b16 %v414
    %v704 = vunpack.c.h.b16 %v414
    %v705 = vunpack.c.l.b16 %v415
    %v706 = vunpack.c.h.b16 %v415
    %v707 = vunpack.c.l.b16 %v416
    %v708 = vunpack.c.h.b16 %v416
    %v709 = vunpack.c.l.b16 %v417
    %v710 = vunpack.c.h.b16 %v417
    %v711 = vunpack.c.l.b16 %v418
    %v712 = vunpack.c.h.b16 %v418
    %v713 = vunpack.c.l.b16 %v419
    %v714 = vunpack.c.h.b16 %v419
    %v715 = vunpack.c.l.b16 %v420
    %v716 = vunpack.c.h.b16 %v420
    %v717 = vunpack.c.l.b16 %v421
    %v718 = vunpack.c.h.b16 %v421
    %v719 = vunpack.c.l.b16 %v422
    %v720 = vunpack.c.h.b16 %v422
    %v721 = vunpack.c.l.b16 %v423
    %v722 = vunpack.c.h.b16 %v423
    %v723 = vunpack.c.l.b16 %v424
    %v724 = vunpack.c.h.b16 %v424
    %v725 = vunpack.c.l.b16 %v425
    %v726 = vunpack.c.h.b16 %v425
    %v727 = vunpack.c.l.b16 %v426
    %v728 = vunpack.c.h.b16 %v426
    %v729 = vunpack.c.l.b16 %v427
    %v730 = vunpack.c.h.b16 %v427
    %v731 = vunpack.c.l.b16 %v428
    %v732 = vunpack.c.h.b16 %v428
    %v733 = vunpack.c.l.b16 %v429
    %v734 = vunpack.c.h.b16 %v429
    %v735 = vunpack.c.l.b16 %v430
    %v736 = vunpack.c.h.b16 %v430
    %v737 = vunpack.c.l.b16 %v431
    %v738 = vunpack.c.h.b16 %v431
    %v739 = vunpack.c.l.b16 %v432
    %v740 = vunpack.c.h.b16 %v432
    %v741 = vunpack.c.l.b16 %v433
    %v742 = vunpack.c.h.b16 %v433
    %v743 = vunpack.c.l.b16 %v434
    %v744 = vunpack.c.h.b16 %v434
    %v745 = vunpack.c.l.b16 %v435
    %v746 = vunpack.c.h.b16 %v435
    %v747 = vunpack.c.l.b16 %v436
    %v748 = vunpack.c.h.b16 %v436
    %v749 = vunpack.c.l.b16 %v437
    %v750 = vunpack.c.h.b16 %v437
    %v751 = vunpack.c.l.b16 %v438
    %v752 = vunpack.c.h.b16 %v438
    %v753 = vunpack.c.l.b16 %v439
    %v754 = vunpack.c.h.b16 %v439
    %v755 = vunpack.c.l.b16 %v440
    %v756 = vunpack.c.h.b16 %v440
    %v757 = vunpack.c.l.b16 %v441
    %v758 = vunpack.c.h.b16 %v441
    %v759 = vunpack.c.l.b16 %v442
    %v760 = vunpack.c.h.b16 %v442
    %v761 = vunpack.c.l.b16 %v443
    %v762 = vunpack.c.h.b16 %v443
    %v763 = vunpack.c.l.b16 %v444
    %v764 = vunpack.c.h.b16 %v444
    %v765 = vunpack.c.l.b16 %v445
    %v766 = vunpack.c.h.b16 %v445
    %v767 = vunpack.c.l.b16 %v446
    %v768 = vunpack.c.h.b16 %v446
    %v769 = vunpack.c.l.b16 %v447
    %v770 = vunpack.c.h.b16 %v447
    %v771 = vunpack.c.l.b16 %v448
    %v772 = vunpack.c.h.b16 %v448
    %v773 = vunpack.c.l.b16 %v449
    %v774 = vunpack.c.h.b16 %v449
    %v775 = vunpack.c.l.b16 %v450
    %v776 = vunpack.c.h.b16 %v450
    %v777 = vunpack.c.l.b16 %v451
    %v778 = vunpack.c.h.b16 %v451
    %v779 = vunpack.c.l.b16 %v452
    %v780 = vunpack.c.h.b16 %v452
    %v781 = vunpack.c.l.b16 %v453
    %v782 = vunpack.c.h.b16 %v453
    %v783 = vunpack.c.l.b16 %v454
    %v784 = vunpack.c.h.b16 %v454
    %v785 = vunpack.c.l.b16 %v455
    %v786 = vunpack.c.h.b16 %v455
    %v787 = vunpack.c.l.b16 %v456
    %v788 = vunpack.c.h.b16 %v456
    %v789 = vunpack.c.l.b16 %v457
    %v790 = vunpack.c.h.b16 %v457
    %v791 = vunpack.c.l.b16 %v458
    %v792 = vunpack.c.h.b16 %v458
    %v793 = vunpack.c.l.b16 %v459
    %v794 = vunpack.c.h.b16 %v459
    %v795 = vunpack.c.l.b16 %v460
    %v796 = vunpack.c.h.b16 %v460
    %v797 = vunpack.c.l.b16 %v461
    %v798 = vunpack.c.h.b16 %v461
    %v799 = vunpack.c.l.b16 %v462
    %v800 = vunpack.c.h.b16 %v462
    %v801 = vunpack.c.l.b16 %v463
    %v802 = vunpack.c.h.b16 %v463
    %v803 = vunpack.c.l.b16 %v464
    %v804 = vunpack.c.h.b16 %v464
    %v805 = vunpack.c.l.b16 %v465
    %v806 = vunpack.c.h.b16 %v465
    %v807 = vunpack.c.l.b16 %v466
    %v808 = vunpack.c.h.b16 %v466
    %v809 = vunpack.c.l.b16 %v467
    %v810 = vunpack.c.h.b16 %v467
    %v811 = vunpack.c.l.b16 %v468
    %v812 = vunpack.c.h.b16 %v468
    %v813 = vunpack.c.l.b16 %v469
    %v814 = vunpack.c.h.b16 %v469
    %v815 = vunpack.c.l.b16 %v470
    %v816 = vunpack.c.h.b16 %v470
    %v817 = vunpack.c.l.b16 %v471
    %v818 = vunpack.c.h.b16 %v471
    %v819 = vunpack.c.l.b16 %v472
    %v820 = vunpack.c.h.b16 %v472
    %v821 = vunpack.c.l.b16 %v473
    %v822 = vunpack.c.h.b16 %v473
    %v823 = vunpack.c.l.b16 %v474
    %v824 = vunpack.c.h.b16 %v474
    %v825 = vunpack.c.l.b16 %v475
    %v826 = vunpack.c.h.b16 %v475
    %v827 = vunpack.c.l.b16 %v476
    %v828 = vunpack.c.h.b16 %v476
    %v829 = vunpack.c.l.b16 %v477
    %v830 = vunpack.c.h.b16 %v477
    %v831 = vunpack.c.l.b16 %v478
    %v832 = vunpack.c.h.b16 %v478
    %v833 = vunpack.c.l.b16 %v479
    %v834 = vunpack.c.h.b16 %v479
    %v835 = vunpack.c.l.b16 %v480
    %v836 = vunpack.c.h.b16 %v480
    %v837 = vunpack.c.l.b16 %v481
    %v838 = vunpack.c.h.b16 %v481
    %v839 = vunpack.c.l.b16 %v482
    %v840 = vunpack.c.h.b16 %v482
    %v841 = vunpack.c.l.b16 %v483
    %v842 = vunpack.c.h.b16 %v483
    %v843 = vunpack.c.l.b16 %v484
    %v844 = vunpack.c.h.b16 %v484
    %v845 = vunpack.c.l.b16 %v485
    %v846 = vunpack.c.h.b16 %v485
    %v847 = vunpack.c.l.b16 %v486
    %v848 = vunpack.c.h.b16 %v486
    %v849 = vunpack.c.l.b16 %v487
    %v850 = vunpack.c.h.b16 %v487
    %v851 = vunpack.c.l.b16 %v488
    %v852 = vunpack.c.h.b16 %v488
    %v853 = vunpack.c.l.b16 %v489
    %v854 = vunpack.c.h.b16 %v489
    %v855 = vunpack.c.l.b16 %v490
    %v856 = vunpack.c.h.b16 %v490
    %v857 = vunpack.c.l.b16 %v491
    %v858 = vunpack.c.h.b16 %v491
    %v859 = vunpack.c.l.b16 %v492
    %v860 = vunpack.c.h.b16 %v492
    %v861 = vunpack.c.l.b16 %v493
    %v862 = vunpack.c.h.b16 %v493
    %v863 = vunpack.c.l.b16 %v494
    %v864 = vunpack.c.h.b16 %v494
    %v865 = vunpack.c.l.b16 %v495
    %v866 = vunpack.c.h.b16 %v495
    %v867 = vunpack.c.l.b16 %v496
    %v868 = vunpack.c.h.b16 %v496
    %v869 = vunpack.c.l.b16 %v497
    %v870 = vunpack.c.h.b16 %v497
    %v871 = vunpack.c.l.b16 %v498
    %v872 = vunpack.c.h.b16 %v498
    %v873 = vunpack.c.l.b16 %v499
    %v874 = vunpack.c.h.b16 %v499
    %v875 = vunpack.c.l.b16 %v500
    %v876 = vunpack.c.h.b16 %v500
    %v877 = vunpack.c.l.b16 %v501
    %v878 = vunpack.c.h.b16 %v501
    %v879 = vunpack.c.l.b16 %v502
    %v880 = vunpack.c.h.b16 %v502
    %v881 = vunpack.c.l.b16 %v503
    %v882 = vunpack.c.h.b16 %v503
    %v883 = vunpack.c.l.b16 %v504
    %v884 = vunpack.c.h.b16 %v504
    %v885 = vunpack.c.l.b16 %v505
    %v886 = vunpack.c.h.b16 %v505
    %v887 = vunpack.c.l.b16 %v506
    %v888 = vunpack.c.h.b16 %v506
    %v889 = vunpack.c.l.b16 %v507
    %v890 = vunpack.c.h.b16 %v507
    %v891 = vunpack.c.l.b16 %v508
    %v892 = vunpack.c.h.b16 %v508
    %v893 = vunpack.c.l.b16 %v509
    %v894 = vunpack.c.h.b16 %v509
    %v895 = vunpack.c.l.b16 %v510
    %v896 = vunpack.c.h.b16 %v510
    %v897 = vunpack.c.l.b16 %v511
    %v898 = vunpack.c.h.b16 %v511
    %v899 = vunpack.c.l.b16 %v512
    %v900 = vunpack.c.h.b16 %v512
    %v901 = vunpack.c.l.b16 %v513
    %v902 = vunpack.c.h.b16 %v513
    %v903 = vunpack.c.l.b16 %v514
    %v904 = vunpack.c.h.b16 %v514
    %v905 = vunpack.c.l.b16 %v515
    %v906 = vunpack.c.h.b16 %v515
    %v907 = vunpack.c.l.b16 %v516
    %v908 = vunpack.c.h.b16 %v516
    %v909 = vunpack.c.l.b16 %v517
    %v910 = vunpack.c.h.b16 %v517
    %v911 = vunpack.c.l.b16 %v518
    %v912 = vunpack.c.h.b16 %v518
    %v913 = vunpack.c.l.b16 %v519
    %v914 = vunpack.c.h.b16 %v519
    %v915 = vunpack.c.l.b16 %v520
    %v916 = vunpack.c.h.b16 %v520
    %v917 = vunpack.c.l.b16 %v521
    %v918 = vunpack.c.h.b16 %v521
    %v919 = vunpack.c.l.b16 %v522
    %v920 = vunpack.c.h.b16 %v522
    %v921 = vunpack.c.l.b16 %v523
    %v922 = vunpack.c.h.b16 %v523
    %v923 = vunpack.c.l.b16 %v524
    %v924 = vunpack.c.h.b16 %v524
    %v925 = vunpack.c.l.b16 %v525
    %v926 = vunpack.c.h.b16 %v525
    %v927 = vunpack.c.l.b16 %v526
    %v928 = vunpack.c.h.b16 %v526
    %v929 = vunpack.c.l.b16 %v527
    %v930 = vunpack.c.h.b16 %v527
    %v931 = vunpack.c.l.b16 %v528
    %v932 = vunpack.c.h.b16 %v528
    %v933 = vunpack.c.l.b16 %v529
    %v934 = vunpack.c.h.b16 %v529
    %v935 = vunpack.c.l.b16 %v530
    %v936 = vunpack.c.h.b16 %v530
    %v937 = vpack.c.b16 %v685, %v681
    %v938 = vpack.c.b16 %v686, %v682
    %v939 = vpack.c.b16 %v687, %v683
    %v940 = vpack.c.b16 %v688, %v684
    %v941 = vpack.c.b16 %v693, %v689
    %v942 = vpack.c.b16 %v694, %v690
    %v943 = vpack.c.b16 %v695, %v691
    %v944 = vpack.c.b16 %v696, %v692
    %v945 = vpack.c.b16 %v701, %v697
    %v946 = vpack.c.b16 %v702, %v698
    %v947 = vpack.c.b16 %v703, %v699
    %v948 = vpack.c.b16 %v704, %v700
    %v949 = vpack.c.b16 %v709, %v705
    %v950 = vpack.c.b16 %v710, %v706
    %v951 = vpack.c.b16 %v711, %v707
    %v952 = vpack.c.b16 %v712, %v708
    %v953 = vpack.c.b16 %v717, %v713
    %v954 = vpack.c.b16 %v718, %v714
    %v955 = vpack.c.b16 %v719, %v715
    %v956 = vpack.c.b16 %v720, %v716
    %v957 = vpack.c.b16 %v725, %v721
    %v958 = vpack.c.b16 %v726, %v722
    %v959 = vpack.c.b16 %v727, %v723
    %v960 = vpack.c.b16 %v728, %v724
    %v961 = vpack.c.b16 %v733, %v729
    %v962 = vpack.c.b16 %v734, %v730
    %v963 = vpack.c.b16 %v735, %v731
    %v964 = vpack.c.b16 %v736, %v732
    %v965 = vpack.c.b16 %v741, %v737
    %v966 = vpack.c.b16 %v742, %v738
    %v967 = vpack.c.b16 %v743, %v739
    %v968 = vpack.c.b16 %v744, %v740
    %v969 = vpack.c.b16 %v749, %v745
    %v970 = vpack.c.b16 %v750, %v746
    %v971 = vpack.c.b16 %v751, %v747
    %v972 = vpack.c.b16 %v752, %v748
    %v973 = vpack.c.b16 %v757, %v753
    %v974 = vpack.c.b16 %v758, %v754
    %v975 = vpack.c.b16 %v759, %v755
    %v976 = vpack.c.b16 %v760, %v756
    %v977 = vpack.c.b16 %v765, %v761
    %v978 = vpack.c.b16 %v766, %v762
    %v979 = vpack.c.b16 %v767, %v763
    %v980 = vpack.c.b16 %v768, %v764
    %v981 = vpack.c.b16 %v773, %v769
    %v982 = vpack.c.b16 %v774, %v770
    %v983 = vpack.c.b16 %v775, %v771
    %v984 = vpack.c.b16 %v776, %v772
    %v985 = vpack.c.b16 %v781, %v777
    %v986 = vpack.c.b16 %v782, %v778
    %v987 = vpack.c.b16 %v783, %v779
    %v988 = vpack.c.b16 %v784, %v780
    %v989 = vpack.c.b16 %v789, %v785
    %v990 = vpack.c.b16 %v790, %v786
    %v991 = vpack.c.b16 %v791, %v787
    %v992 = vpack.c.b16 %v792, %v788
    %v993 = vpack.c.b16 %v797, %v793
    %v994 = vpack.c.b16 %v798, %v794
    %v995 = vpack.c.b16 %v799, %v795
    %v996 = vpack.c.b16 %v800, %v796
    %v997 = vpack.c.b16 %v805, %v801
    %v998 = vpack.c.b16 %v806, %v802
    %v999 = vpack.c.b16 %v807, %v803
    %v1000 = vpack.c.b16 %v808, %v804
    %v1001 = vpack.c.b16 %v813, %v809
    %v1002 = vpack.c.b16 %v814, %v810
    %v1003 = vpack.c.b16 %v815, %v811
    %v1004 = vpack.c.b16 %v816, %v812
    %v1005 = vpack.c.b16 %v821, %v817
    %v1006 = vpack.c.b16 %v822, %v818
    %v1007 = vpack.c.b16 %v823, %v819
    %v1008 = vpack.c.b16 %v824, %v820
    %v1009 = vpack.c.b16 %v829, %v825
    %v1010 = vpack.c.b16 %v830, %v826
    %v1011 = vpack.c.b16 %v831, %v827
    %v1012 = vpack.c.b16 %v832, %v828
    %v1013 = vpack.c.b16 %v837, %v833
    %v1014 = vpack.c.b16 %v838, %v834
    %v1015 = vpack.c.b16 %v839, %v835
    %v1016 = vpack.c.b16 %v840, %v836
    %v1017 = vpack.c.b16 %v845, %v841
    %v1018 = vpack.c.b16 %v846, %v842
    %v1019 = vpack.c.b16 %v847, %v843
    %v1020 = vpack.c.b16 %v848, %v844
    %v1021 = vpack.c.b16 %v853, %v849
    %v1022 = vpack.c.b16 %v854, %v850
    %v1023 = vpack.c.b16 %v855, %v851
    %v1024 = vpack.c.b16 %v856, %v852
    %v1025 = vpack.c.b16 %v861, %v857
    %v1026 = vpack.c.b16 %v862, %v858
    %v1027 = vpack.c.b16 %v863, %v859
    %v1028 = vpack.c.b16 %v864, %v860
    %v1029 = vpack.c.b16 %v869, %v865
    %v1030 = vpack.c.b16 %v870, %v866
    %v1031 = vpack.c.b16 %v871, %v867
    %v1032 = vpack.c.b16 %v872, %v868
    %v1033 = vpack.c.b16 %v877, %v873
    %v1034 = vpack.c.b16 %v878, %v874
    %v1035 = vpack.c.b16 %v879, %v875
    %v1036 = vpack.c.b16 %v880, %v876
    %v1037 = vpack.c.b16 %v885, %v881
    %v1038 = vpack.c.b16 %v886, %v882
    %v1039 = vpack.c.b16 %v887, %v883
    %v1040 = vpack.c.b16 %v888, %v884
    %v1041 = vpack.c.b16 %v893, %v889
    %v1042 = vpack.c.b16 %v894, %v890
    %v1043 = vpack.c.b16 %v895, %v891
    %v1044 = vpack.c.b16 %v896, %v892
    %v1045 = vpack.c.b16 %v901, %v897
    %v1046 = vpack.c.b16 %v902, %v898
    %v1047 = vpack.c.b16 %v903, %v899
    %v1048 = vpack.c.b16 %v904, %v900
    %v1049 = vpack.c.b16 %v909, %v905
    %v1050 = vpack.c.b16 %v910, %v906
    %v1051 = vpack.c.b16 %v911, %v907
    %v1052 = vpack.c.b16 %v912, %v908
    %v1053 = vpack.c.b16 %v917, %v913
    %v1054 = vpack.c.b16 %v918, %v914
    %v1055 = vpack.c.b16 %v919, %v915
    %v1056 = vpack.c.b16 %v920, %v916
    %v1057 = vpack.c.b16 %v925, %v921
    %v1058 = vpack.c.b16 %v926, %v922
    %v1059 = vpack.c.b16 %v927, %v923
    %v1060 = vpack.c.b16 %v928, %v924
    %v1061 = vpack.c.b16 %v933, %v929
    %v1062 = vpack.c.b16 %v934, %v930
    %v1063 = vpack.c.b16 %v935, %v931
    %v1064 = vpack.c.b16 %v936, %v932
    %1193 = vmatprep.subr.bf16.mxu0 %v938
    %1194 = vmatpush1.bf16.msra.mxu0 %v937
    %1195 = vmatprep.subr.bf16.mxu0 %v942
    %1196 = vmatpush1.bf16.msra.mxu0 %v941
    %1197 = vmatprep.subr.bf16.mxu0 %v946
    %1198 = vmatpush1.bf16.msra.mxu0 %v945
    %1199 = vmatprep.subr.bf16.mxu0 %v950
    %1200 = vmatpush1.bf16.msra.mxu0 %v949
    %1201 = vmatprep.subr.bf16.mxu0 %v954
    %1202 = vmatpush1.bf16.msra.mxu0 %v953
    %1203 = vmatprep.subr.bf16.mxu0 %v958
    %1204 = vmatpush1.bf16.msra.mxu0 %v957
    %1205 = vmatprep.subr.bf16.mxu0 %v962
    %1206 = vmatpush1.bf16.msra.mxu0 %v961
    %1207 = vmatprep.subr.bf16.mxu0 %v966
    %1208 = vmatpush1.bf16.msra.mxu0 %v965
    %1209 = vmatprep.subr.bf16.mxu0 %v970
    %1210 = vmatpush1.bf16.msra.mxu0 %v969
    %1211 = vmatprep.subr.bf16.mxu0 %v974
    %1212 = vmatpush1.bf16.msra.mxu0 %v973
    %1213 = vmatprep.subr.bf16.mxu0 %v978
    %1214 = vmatpush1.bf16.msra.mxu0 %v977
    %1215 = vmatprep.subr.bf16.mxu0 %v982
    %1216 = vmatpush1.bf16.msra.mxu0 %v981
    %1217 = vmatprep.subr.bf16.mxu0 %v986
    %1218 = vmatpush1.bf16.msra.mxu0 %v985
    %1219 = vmatprep.subr.bf16.mxu0 %v990
    %1220 = vmatpush1.bf16.msra.mxu0 %v989
    %1221 = vmatprep.subr.bf16.mxu0 %v994
    %1222 = vmatpush1.bf16.msra.mxu0 %v993
    %1223 = vmatprep.subr.bf16.mxu0 %v998
    %1224 = vmatpush1.bf16.msra.mxu0 %v997
    %1225 = vmatprep.mubr.bf16.mxu0 %v400
    %1226 = vmatmul.mubr.bf16.gmra.mrb[0].mxu0 %v399
    %v1227 = vpop.f32.mrb[0].mxu0
    %v1228 = vadd.f32 %v536, %v1227
    %v1229 = vpop.f32.mrb[0].mxu0
    %v1230 = vadd.f32 %v540, %v1229
    %v1231 = vpop.f32.mrb[0].mxu0
    %v1232 = vadd.f32 %v536, %v1231
    %v1233 = vpop.f32.mrb[0].mxu0
    %v1234 = vadd.f32 %v540, %v1233
    %1235 = vdwg.mxu0
    %1236 = vmatprep.subr.bf16.mxu0 %v1002
    %1237 = vmatpush1.bf16.msra.mxu0 %v1001
    %1238 = vmatprep.subr.bf16.mxu0 %v1006
    %1239 = vmatpush1.bf16.msra.mxu0 %v1005
    %1240 = vmatprep.subr.bf16.mxu0 %v1010
    %1241 = vmatpush1.bf16.msra.mxu0 %v1009
    %1242 = vmatprep.subr.bf16.mxu0 %v1014
    %1243 = vmatpush1.bf16.msra.mxu0 %v1013
    %1244 = vmatprep.subr.bf16.mxu0 %v1018
    %1245 = vmatpush1.bf16.msra.mxu0 %v1017
    %1246 = vmatprep.subr.bf16.mxu0 %v1022
    %1247 = vmatpush1.bf16.msra.mxu0 %v1021
    %1248 = vmatprep.subr.bf16.mxu0 %v1026
    %1249 = vmatpush1.bf16.msra.mxu0 %v1025
    %1250 = vmatprep.subr.bf16.mxu0 %v1030
    %1251 = vmatpush1.bf16.msra.mxu0 %v1029
    %1252 = vmatprep.subr.bf16.mxu0 %v1034
    %1253 = vmatpush1.bf16.msra.mxu0 %v1033
    %1254 = vmatprep.subr.bf16.mxu0 %v1038
    %1255 = vmatpush1.bf16.msra.mxu0 %v1037
    %1256 = vmatprep.subr.bf16.mxu0 %v1042
    %1257 = vmatpush1.bf16.msra.mxu0 %v1041
    %1258 = vmatprep.subr.bf16.mxu0 %v1046
    %1259 = vmatpush1.bf16.msra.mxu0 %v1045
    %1260 = vmatprep.subr.bf16.mxu0 %v1050
    %1261 = vmatpush1.bf16.msra.mxu0 %v1049
    %1262 = vmatprep.subr.bf16.mxu0 %v1054
    %1263 = vmatpush1.bf16.msra.mxu0 %v1053
    %1264 = vmatprep.subr.bf16.mxu0 %v1058
    %1265 = vmatpush1.bf16.msra.mxu0 %v1057
    %1266 = vmatprep.subr.bf16.mxu0 %v1062
    %1267 = vmatpush1.bf16.msra.mxu0 %v1061
    %1268 = vmatprep.mubr.bf16.mxu0 %v402
    %1269 = vmatmul.mubr.bf16.gmra.mrb[0].mxu0 %v401
    %v1270 = vpop.f32.mrb[0].mxu0
    %v1271 = vadd.f32 %v1228, %v1270
    %v1272 = vpop.f32.mrb[0].mxu0
    %v1273 = vadd.f32 %v1230, %v1272
    %v1274 = vpop.f32.mrb[0].mxu0
    %v1275 = vadd.f32 %v1232, %v1274
    %v1276 = vpop.f32.mrb[0].mxu0
    %v1277 = vadd.f32 %v1234, %v1276
    %1278 = vdwg.mxu0
    %1279 = vmatprep.subr.bf16.mxu0 %v940
    %1280 = vmatpush1.bf16.msra.mxu0 %v939
    %1281 = vmatprep.subr.bf16.mxu0 %v944
    %1282 = vmatpush1.bf16.msra.mxu0 %v943
    %1283 = vmatprep.subr.bf16.mxu0 %v948
    %1284 = vmatpush1.bf16.msra.mxu0 %v947
    %1285 = vmatprep.subr.bf16.mxu0 %v952
    %1286 = vmatpush1.bf16.msra.mxu0 %v951
    %1287 = vmatprep.subr.bf16.mxu0 %v956
    %1288 = vmatpush1.bf16.msra.mxu0 %v955
    %1289 = vmatprep.subr.bf16.mxu0 %v960
    %1290 = vmatpush1.bf16.msra.mxu0 %v959
    %1291 = vmatprep.subr.bf16.mxu0 %v964
    %1292 = vmatpush1.bf16.msra.mxu0 %v963
    %1293 = vmatprep.subr.bf16.mxu0 %v968
    %1294 = vmatpush1.bf16.msra.mxu0 %v967
    %1295 = vmatprep.subr.bf16.mxu0 %v972
    %1296 = vmatpush1.bf16.msra.mxu0 %v971
    %1297 = vmatprep.subr.bf16.mxu0 %v976
    %1298 = vmatpush1.bf16.msra.mxu0 %v975
    %1299 = vmatprep.subr.bf16.mxu0 %v980
    %1300 = vmatpush1.bf16.msra.mxu0 %v979
    %1301 = vmatprep.subr.bf16.mxu0 %v984
    %1302 = vmatpush1.bf16.msra.mxu0 %v983
    %1303 = vmatprep.subr.bf16.mxu0 %v988
    %1304 = vmatpush1.bf16.msra.mxu0 %v987
    %1305 = vmatprep.subr.bf16.mxu0 %v992
    %1306 = vmatpush1.bf16.msra.mxu0 %v991
    %1307 = vmatprep.subr.bf16.mxu0 %v996
    %1308 = vmatpush1.bf16.msra.mxu0 %v995
    %1309 = vmatprep.subr.bf16.mxu0 %v1000
    %1310 = vmatpush1.bf16.msra.mxu0 %v999
    %1311 = vmatprep.mubr.bf16.mxu0 %v400
    %1312 = vmatmul.mubr.bf16.gmra.mrb[0].mxu0 %v399
    %v1313 = vpop.f32.mrb[0].mxu0
    %v1314 = vadd.f32 %v544, %v1313
    %v1315 = vpop.f32.mrb[0].mxu0
    %v1316 = vadd.f32 %v548, %v1315
    %v1317 = vpop.f32.mrb[0].mxu0
    %v1318 = vadd.f32 %v544, %v1317
    %v1319 = vpop.f32.mrb[0].mxu0
    %v1320 = vadd.f32 %v548, %v1319
    %1321 = vdwg.mxu0
    %1322 = vmatprep.subr.bf16.mxu0 %v1004
    %1323 = vmatpush1.bf16.msra.mxu0 %v1003
    %1324 = vmatprep.subr.bf16.mxu0 %v1008
    %1325 = vmatpush1.bf16.msra.mxu0 %v1007
    %1326 = vmatprep.subr.bf16.mxu0 %v1012
    %1327 = vmatpush1.bf16.msra.mxu0 %v1011
    %1328 = vmatprep.subr.bf16.mxu0 %v1016
    %1329 = vmatpush1.bf16.msra.mxu0 %v1015
    %1330 = vmatprep.subr.bf16.mxu0 %v1020
    %1331 = vmatpush1.bf16.msra.mxu0 %v1019
    %1332 = vmatprep.subr.bf16.mxu0 %v1024
    %1333 = vmatpush1.bf16.msra.mxu0 %v1023
    %1334 = vmatprep.subr.bf16.mxu0 %v1028
    %1335 = vmatpush1.bf16.msra.mxu0 %v1027
    %1336 = vmatprep.subr.bf16.mxu0 %v1032
    %1337 = vmatpush1.bf16.msra.mxu0 %v1031
    %1338 = vmatprep.subr.bf16.mxu0 %v1036
    %1339 = vmatpush1.bf16.msra.mxu0 %v1035
    %1340 = vmatprep.subr.bf16.mxu0 %v1040
    %1341 = vmatpush1.bf16.msra.mxu0 %v1039
    %1342 = vmatprep.subr.bf16.mxu0 %v1044
    %1343 = vmatpush1.bf16.msra.mxu0 %v1043
    %1344 = vmatprep.subr.bf16.mxu0 %v1048
    %1345 = vmatpush1.bf16.msra.mxu0 %v1047
    %1346 = vmatprep.subr.bf16.mxu0 %v1052
    %1347 = vmatpush1.bf16.msra.mxu0 %v1051
    %1348 = vmatprep.subr.bf16.mxu0 %v1056
    %1349 = vmatpush1.bf16.msra.mxu0 %v1055
    %1350 = vmatprep.subr.bf16.mxu0 %v1060
    %1351 = vmatpush1.bf16.msra.mxu0 %v1059
    %1352 = vmatprep.subr.bf16.mxu0 %v1064
    %1353 = vmatpush1.bf16.msra.mxu0 %v1063
    %1354 = vmatprep.mubr.bf16.mxu0 %v402
    %1355 = vmatmul.mubr.bf16.gmra.mrb[0].mxu0 %v401
    %v1356 = vpop.f32.mrb[0].mxu0
    %v1357 = vadd.f32 %v1314, %v1356
    %v1358 = vpop.f32.mrb[0].mxu0
    %v1359 = vadd.f32 %v1316, %v1358
    %v1360 = vpop.f32.mrb[0].mxu0
    %v1361 = vadd.f32 %v1318, %v1360
    %v1362 = vpop.f32.mrb[0].mxu0
    %v1363 = vadd.f32 %v1320, %v1362
    %1364 = vdwg.mxu0
    %v1365 = vmax.f32 %v1271, 0.0
    %v1366 = vmax.f32 %v1273, 0.0
    %v1367 = vmax.f32 %v1357, 0.0
    %v1368 = vmax.f32 %v1359, 0.0
    %v1369 = vmax.f32 %v1275, 0.0
    %v1370 = vmax.f32 %v1277, 0.0
    %v1371 = vmax.f32 %v1361, 0.0
    %v1372 = vmax.f32 %v1363, 0.0
    %v1373 = vpack.c.bf16 %v1369, %v1365
    %v1374 = vpack.c.bf16 %v1370, %v1366
    %v1375 = vpack.c.bf16 %v1371, %v1367
    %v1376 = vpack.c.bf16 %v1372, %v1368
    %v1377 = vld [vmem:[#allocation8] sm:$0xf]
    %v1378 = vld [vmem:[#allocation8 + $0x4] sm:$0xf]
    %v1379 = vld [vmem:[#allocation8 + $0x8] sm:$0xf]
    %v1380 = vld [vmem:[#allocation8 + $0xc] sm:$0xf]
    %v1381 = vld [vmem:[#allocation8 + $0x10] sm:$0xf]
    %v1382 = vld [vmem:[#allocation8 + $0x14] sm:$0xf]
    %v1383 = vld [vmem:[#allocation8 + $0x18] sm:$0xf]
    %v1384 = vld [vmem:[#allocation8 + $0x1c] sm:$0xf]
    %v1385 = vld [vmem:[#allocation8 + $0x20] sm:$0xf]
    %v1386 = vld [vmem:[#allocation8 + $0x24] sm:$0xf]
    %v1387 = vld [vmem:[#allocation8 + $0x28] sm:$0xf]
    %v1388 = vld [vmem:[#allocation8 + $0x2c] sm:$0xf]
    %v1389 = vld [vmem:[#allocation8 + $0x30] sm:$0xf]
    %v1390 = vld [vmem:[#allocation8 + $0x34] sm:$0xf]
    %v1391 = vld [vmem:[#allocation8 + $0x38] sm:$0xf]
    %v1392 = vld [vmem:[#allocation8 + $0x3c] sm:$0xf]
    %v1393 = vld [vmem:[#allocation8 + $0x40] sm:$0xf]
    %v1394 = vld [vmem:[#allocation8 + $0x44] sm:$0xf]
    %v1395 = vld [vmem:[#allocation8 + $0x48] sm:$0xf]
    %v1396 = vld [vmem:[#allocation8 + $0x4c] sm:$0xf]
    %v1397 = vld [vmem:[#allocation8 + $0x50] sm:$0xf]
    %v1398 = vld [vmem:[#allocation8 + $0x54] sm:$0xf]
    %v1399 = vld [vmem:[#allocation8 + $0x58] sm:$0xf]
    %v1400 = vld [vmem:[#allocation8 + $0x5c] sm:$0xf]
    %v1401 = vld [vmem:[#allocation8 + $0x60] sm:$0xf]
    %v1402 = vld [vmem:[#allocation8 + $0x64] sm:$0xf]
    %v1403 = vld [vmem:[#allocation8 + $0x68] sm:$0xf]
    %v1404 = vld [vmem:[#allocation8 + $0x6c] sm:$0xf]
    %v1405 = vld [vmem:[#allocation8 + $0x70] sm:$0xf]
    %v1406 = vld [vmem:[#allocation8 + $0x74] sm:$0xf]
    %v1407 = vld [vmem:[#allocation8 + $0x78] sm:$0xf]
    %v1408 = vld [vmem:[#allocation8 + $0x7c] sm:$0xf]
    %v1409 = vld [vmem:[#allocation8 + $0x80] sm:$0xf]
    %v1410 = vld [vmem:[#allocation8 + $0x84] sm:$0xf]
    %v1411 = vld [vmem:[#allocation8 + $0x88] sm:$0xf]
    %v1412 = vld [vmem:[#allocation8 + $0x8c] sm:$0xf]
    %v1413 = vld [vmem:[#allocation8 + $0x90] sm:$0xf]
    %v1414 = vld [vmem:[#allocation8 + $0x94] sm:$0xf]
    %v1415 = vld [vmem:[#allocation8 + $0x98] sm:$0xf]
    %v1416 = vld [vmem:[#allocation8 + $0x9c] sm:$0xf]
    %v1417 = vld [vmem:[#allocation8 + $0xa0] sm:$0xf]
    %v1418 = vld [vmem:[#allocation8 + $0xa4] sm:$0xf]
    %v1419 = vld [vmem:[#allocation8 + $0xa8] sm:$0xf]
    %v1420 = vld [vmem:[#allocation8 + $0xac] sm:$0xf]
    %v1421 = vld [vmem:[#allocation8 + $0xb0] sm:$0xf]
    %v1422 = vld [vmem:[#allocation8 + $0xb4] sm:$0xf]
    %v1423 = vld [vmem:[#allocation8 + $0xb8] sm:$0xf]
    %v1424 = vld [vmem:[#allocation8 + $0xbc] sm:$0xf]
    %v1425 = vld [vmem:[#allocation8 + $0xc0] sm:$0xf]
    %v1426 = vld [vmem:[#allocation8 + $0xc4] sm:$0xf]
    %v1427 = vld [vmem:[#allocation8 + $0xc8] sm:$0xf]
    %v1428 = vld [vmem:[#allocation8 + $0xcc] sm:$0xf]
    %v1429 = vld [vmem:[#allocation8 + $0xd0] sm:$0xf]
    %v1430 = vld [vmem:[#allocation8 + $0xd4] sm:$0xf]
    %v1431 = vld [vmem:[#allocation8 + $0xd8] sm:$0xf]
    %v1432 = vld [vmem:[#allocation8 + $0xdc] sm:$0xf]
    %v1433 = vld [vmem:[#allocation8 + $0xe0] sm:$0xf]
    %v1434 = vld [vmem:[#allocation8 + $0xe4] sm:$0xf]
    %v1435 = vld [vmem:[#allocation8 + $0xe8] sm:$0xf]
    %v1436 = vld [vmem:[#allocation8 + $0xec] sm:$0xf]
    %v1437 = vld [vmem:[#allocation8 + $0xf0] sm:$0xf]
    %v1438 = vld [vmem:[#allocation8 + $0xf4] sm:$0xf]
    %v1439 = vld [vmem:[#allocation8 + $0xf8] sm:$0xf]
    %v1440 = vld [vmem:[#allocation8 + $0xfc] sm:$0xf]
    %v1441 = vld [vmem:[%s6] sm:$0x1]
    %v1443 = vlaneseq
    %v1444 = vshrl.u32 %v1443, 7
    %v1445 = vsub.s32 0, %v1444
    %v1446 = vrot.slane %v1441, %v1445
    %v1512 = vunpack.c.l.b16 %v1377
    %v1513 = vunpack.c.l.b16 %v1378
    %v1514 = vunpack.c.l.b16 %v1379
    %v1515 = vunpack.c.l.b16 %v1380
    %v1516 = vunpack.c.l.b16 %v1381
    %v1517 = vunpack.c.l.b16 %v1382
    %v1518 = vunpack.c.l.b16 %v1383
    %v1519 = vunpack.c.l.b16 %v1384
    %v1520 = vunpack.c.l.b16 %v1385
    %v1521 = vunpack.c.l.b16 %v1386
    %v1522 = vunpack.c.l.b16 %v1387
    %v1523 = vunpack.c.l.b16 %v1388
    %v1524 = vunpack.c.l.b16 %v1389
    %v1525 = vunpack.c.l.b16 %v1390
    %v1526 = vunpack.c.l.b16 %v1391
    %v1527 = vunpack.c.l.b16 %v1392
    %v1528 = vunpack.c.l.b16 %v1393
    %v1529 = vunpack.c.l.b16 %v1394
    %v1530 = vunpack.c.l.b16 %v1395
    %v1531 = vunpack.c.l.b16 %v1396
    %v1532 = vunpack.c.l.b16 %v1397
    %v1533 = vunpack.c.l.b16 %v1398
    %v1534 = vunpack.c.l.b16 %v1399
    %v1535 = vunpack.c.l.b16 %v1400
    %v1536 = vunpack.c.l.b16 %v1401
    %v1537 = vunpack.c.l.b16 %v1402
    %v1538 = vunpack.c.l.b16 %v1403
    %v1539 = vunpack.c.l.b16 %v1404
    %v1540 = vunpack.c.l.b16 %v1405
    %v1541 = vunpack.c.l.b16 %v1406
    %v1542 = vunpack.c.l.b16 %v1407
    %v1543 = vunpack.c.l.b16 %v1408
    %v1544 = vunpack.c.l.b16 %v1409
    %v1545 = vunpack.c.l.b16 %v1410
    %v1546 = vunpack.c.l.b16 %v1411
    %v1547 = vunpack.c.l.b16 %v1412
    %v1548 = vunpack.c.l.b16 %v1413
    %v1549 = vunpack.c.l.b16 %v1414
    %v1550 = vunpack.c.l.b16 %v1415
    %v1551 = vunpack.c.l.b16 %v1416
    %v1552 = vunpack.c.l.b16 %v1417
    %v1553 = vunpack.c.l.b16 %v1418
    %v1554 = vunpack.c.l.b16 %v1419
    %v1555 = vunpack.c.l.b16 %v1420
    %v1556 = vunpack.c.l.b16 %v1421
    %v1557 = vunpack.c.l.b16 %v1422
    %v1558 = vunpack.c.l.b16 %v1423
    %v1559 = vunpack.c.l.b16 %v1424
    %v1560 = vunpack.c.l.b16 %v1425
    %v1561 = vunpack.c.l.b16 %v1426
    %v1562 = vunpack.c.l.b16 %v1427
    %v1563 = vunpack.c.l.b16 %v1428
    %v1564 = vunpack.c.l.b16 %v1429
    %v1565 = vunpack.c.l.b16 %v1430
    %v1566 = vunpack.c.l.b16 %v1431
    %v1567 = vunpack.c.l.b16 %v1432
    %v1568 = vunpack.c.l.b16 %v1433
    %v1569 = vunpack.c.l.b16 %v1434
    %v1570 = vunpack.c.l.b16 %v1435
    %v1571 = vunpack.c.l.b16 %v1436
    %v1572 = vunpack.c.l.b16 %v1437
    %v1573 = vunpack.c.l.b16 %v1438
    %v1574 = vunpack.c.l.b16 %v1439
    %v1575 = vunpack.c.l.b16 %v1440
    %v1576 = vpack.c.b16 %v1513, %v1512
    %v1577 = vpack.c.b16 %v1515, %v1514
    %v1578 = vpack.c.b16 %v1517, %v1516
    %v1579 = vpack.c.b16 %v1519, %v1518
    %v1580 = vpack.c.b16 %v1521, %v1520
    %v1581 = vpack.c.b16 %v1523, %v1522
    %v1582 = vpack.c.b16 %v1525, %v1524
    %v1583 = vpack.c.b16 %v1527, %v1526
    %v1584 = vpack.c.b16 %v1529, %v1528
    %v1585 = vpack.c.b16 %v1531, %v1530
    %v1586 = vpack.c.b16 %v1533, %v1532
    %v1587 = vpack.c.b16 %v1535, %v1534
    %v1588 = vpack.c.b16 %v1537, %v1536
    %v1589 = vpack.c.b16 %v1539, %v1538
    %v1590 = vpack.c.b16 %v1541, %v1540
    %v1591 = vpack.c.b16 %v1543, %v1542
    %v1592 = vpack.c.b16 %v1545, %v1544
    %v1593 = vpack.c.b16 %v1547, %v1546
    %v1594 = vpack.c.b16 %v1549, %v1548
    %v1595 = vpack.c.b16 %v1551, %v1550
    %v1596 = vpack.c.b16 %v1553, %v1552
    %v1597 = vpack.c.b16 %v1555, %v1554
    %v1598 = vpack.c.b16 %v1557, %v1556
    %v1599 = vpack.c.b16 %v1559, %v1558
    %v1600 = vpack.c.b16 %v1561, %v1560
    %v1601 = vpack.c.b16 %v1563, %v1562
    %v1602 = vpack.c.b16 %v1565, %v1564
    %v1603 = vpack.c.b16 %v1567, %v1566
    %v1604 = vpack.c.b16 %v1569, %v1568
    %v1605 = vpack.c.b16 %v1571, %v1570
    %v1606 = vpack.c.b16 %v1573, %v1572
    %v1607 = vpack.c.b16 %v1575, %v1574
    %1640 = vmatprep.subr.bf16.mxu0 0
    %1641 = vmatpush1.bf16.msra.mxu0 %v1576
    %1642 = vmatprep.subr.bf16.mxu0 0
    %1643 = vmatpush1.bf16.msra.mxu0 %v1577
    %1644 = vmatprep.subr.bf16.mxu0 0
    %1645 = vmatpush1.bf16.msra.mxu0 %v1578
    %1646 = vmatprep.subr.bf16.mxu0 0
    %1647 = vmatpush1.bf16.msra.mxu0 %v1579
    %1648 = vmatprep.subr.bf16.mxu0 0
    %1649 = vmatpush1.bf16.msra.mxu0 %v1580
    %1650 = vmatprep.subr.bf16.mxu0 0
    %1651 = vmatpush1.bf16.msra.mxu0 %v1581
    %1652 = vmatprep.subr.bf16.mxu0 0
    %1653 = vmatpush1.bf16.msra.mxu0 %v1582
    %1654 = vmatprep.subr.bf16.mxu0 0
    %1655 = vmatpush1.bf16.msra.mxu0 %v1583
    %1656 = vmatprep.subr.bf16.mxu0 0
    %1657 = vmatpush1.bf16.msra.mxu0 %v1584
    %1658 = vmatprep.subr.bf16.mxu0 0
    %1659 = vmatpush1.bf16.msra.mxu0 %v1585
    %1660 = vmatprep.subr.bf16.mxu0 0
    %1661 = vmatpush1.bf16.msra.mxu0 %v1586
    %1662 = vmatprep.subr.bf16.mxu0 0
    %1663 = vmatpush1.bf16.msra.mxu0 %v1587
    %1664 = vmatprep.subr.bf16.mxu0 0
    %1665 = vmatpush1.bf16.msra.mxu0 %v1588
    %1666 = vmatprep.subr.bf16.mxu0 0
    %1667 = vmatpush1.bf16.msra.mxu0 %v1589
    %1668 = vmatprep.subr.bf16.mxu0 0
    %1669 = vmatpush1.bf16.msra.mxu0 %v1590
    %1670 = vmatprep.subr.bf16.mxu0 0
    %1671 = vmatpush1.bf16.msra.mxu0 %v1591
    %1672 = vmatprep.mubr.bf16.mxu0 %v1374
    %1673 = vmatmul.mubr.bf16.gmra.mrb[0].mxu0 %v1373
    %v1674 = vpop.f32.mrb[0].mxu0
    %v1675 = vadd.f32 %v1446, %v1674
    %v1676 = vpop.f32.mrb[0].mxu0
    %v1677 = vpop.f32.mrb[0].mxu0
    %v1678 = vadd.f32 %v1446, %v1677
    %v1679 = vpop.f32.mrb[0].mxu0
    %1680 = vdwg.mxu0
    %1681 = vmatprep.subr.bf16.mxu0 0
    %1682 = vmatpush1.bf16.msra.mxu0 %v1592
    %1683 = vmatprep.subr.bf16.mxu0 0
    %1684 = vmatpush1.bf16.msra.mxu0 %v1593
    %1685 = vmatprep.subr.bf16.mxu0 0
    %1686 = vmatpush1.bf16.msra.mxu0 %v1594
    %1687 = vmatprep.subr.bf16.mxu0 0
    %1688 = vmatpush1.bf16.msra.mxu0 %v1595
    %1689 = vmatprep.subr.bf16.mxu0 0
    %1690 = vmatpush1.bf16.msra.mxu0 %v1596
    %1691 = vmatprep.subr.bf16.mxu0 0
    %1692 = vmatpush1.bf16.msra.mxu0 %v1597
    %1693 = vmatprep.subr.bf16.mxu0 0
    %1694 = vmatpush1.bf16.msra.mxu0 %v1598
    %1695 = vmatprep.subr.bf16.mxu0 0
    %1696 = vmatpush1.bf16.msra.mxu0 %v1599
    %1697 = vmatprep.subr.bf16.mxu0 0
    %1698 = vmatpush1.bf16.msra.mxu0 %v1600
    %1699 = vmatprep.subr.bf16.mxu0 0
    %1700 = vmatpush1.bf16.msra.mxu0 %v1601
    %1701 = vmatprep.subr.bf16.mxu0 0
    %1702 = vmatpush1.bf16.msra.mxu0 %v1602
    %1703 = vmatprep.subr.bf16.mxu0 0
    %1704 = vmatpush1.bf16.msra.mxu0 %v1603
    %1705 = vmatprep.subr.bf16.mxu0 0
    %1706 = vmatpush1.bf16.msra.mxu0 %v1604
    %1707 = vmatprep.subr.bf16.mxu0 0
    %1708 = vmatpush1.bf16.msra.mxu0 %v1605
    %1709 = vmatprep.subr.bf16.mxu0 0
    %1710 = vmatpush1.bf16.msra.mxu0 %v1606
    %1711 = vmatprep.subr.bf16.mxu0 0
    %1712 = vmatpush1.bf16.msra.mxu0 %v1607
    %1713 = vmatprep.mubr.bf16.mxu0 %v1376
    %1714 = vmatmul.mubr.bf16.gmra.mrb[0].mxu0 %v1375
    %v1715 = vpop.f32.mrb[0].mxu0
    %v1716 = vadd.f32 %v1675, %v1715
    %v1717 = vpop.f32.mrb[0].mxu0
    %v1718 = vpop.f32.mrb[0].mxu0
    %v1719 = vadd.f32 %v1678, %v1718
    %v1720 = vpop.f32.mrb[0].mxu0
    %1721 = vdwg.mxu0
    %v1722 = vmax.f32 %v1716, 0.0
    %v1723 = vmax.f32 %v1719, 0.0
    %1724 = vst [vmem:[#allocation10] sm:$0xff] %v1722
    %1725 = vst [vmem:[#allocation10 + $0x8] sm:$0xff] %v1723
    // Predicated region
    $region46: #{tpu_custom_call.1} parent=1 // pred_check
      _
    $region47: #{tpu_custom_call.1} parent=1 // pred_check_branch
      %1727 = sbr.rel (0) target = $region49
    $region48: #{tpu_custom_call.1} parent=1 // pred_region
      %s1729 = ssub.s32 256, 256
      %1730 = vsyncadd [#allocation4], %s1729
      %s1731 = sshll.u32 [#allocation10], 4
      %s1732 = int_to_ptr.vmem [resolvable:$true] %s1731
      %1737 = dma.vmem_to_hbm [thread:$0]  %s1732, 256, %s7, [#allocation4], 128, 128, 8
    $region49: #{tpu_custom_call.1} parent=1 // pred_fallthru
      _
    // Predicated region
    $region50: #{tpu_custom_call.1} parent=1 // pred_check
      _
    $region51: #{tpu_custom_call.1} parent=1 // pred_check_branch
      %1739 = sbr.rel (0) target = $region53
    $region52: #{tpu_custom_call.1} parent=1 // pred_region
      %1740 = dma.done [#allocation4], 256
    $region53: #{tpu_custom_call.1} parent=1 // pred_fallthru
      _
    %1741 = vsyncpa [#allocation3], 1
    %1742 = vsyncpa [#allocation6], 1
    %1743 = vsyncpa [#allocation9], 1
    %1744 = vsyncpa [#allocation4], 1

</llo_original>
